<compile_context>
chip_gen: v7x
topology: tpu7x:2x2x1
jax: 0.10.0
libtpu: 0.0.40
codegen_flags: <defaults>
</compile_context>

<pallas_src>
import jax
import jax.numpy as jnp
from jax.experimental import pallas as pl
from jax.experimental.pallas import tpu as pltpu


def cloud_impact_kernel(params_ref, cf_ref, cc_ref, sp_ref, out_ref):
    # params_ref: SMEM float32[10] = [a, b, c, d, e, tanh(v..z)]
    a = params_ref[0]
    b = params_ref[1]
    c = params_ref[2]
    d = params_ref[3]
    e = params_ref[4]
    tv = params_ref[5]
    tw = params_ref[6]
    tx = params_ref[7]
    ty = params_ref[8]
    tz = params_ref[9]

    cf = cf_ref[...]                          # float32 tile
    cc = cc_ref[...].astype(jnp.int32)        # int8 -> int32 (VPU, free slot)
    sp = sp_ref[...].astype(jnp.int32)

    zero = jnp.float32(0.0)

    # coeff_cc = sum_k coeff_k * [cc == k]  (at most one indicator fires)
    coeff_cc = jnp.where(cc == 0, a,
               jnp.where(cc == 1, b,
               jnp.where(cc == 2, c,
               jnp.where(cc == 3, d,
               jnp.where(cc == 4, e, zero)))))
    # reth(x) = relu(tanh(x)); single EUP transcendental per element.
    cloud_out = jnp.maximum(jnp.tanh(coeff_cc * cf), 0.0)

    # tanh(sum_k coeff_k * [sp == k]) == tanh(coeff_sp); tanh(0) = 0 fallback,
    # tanh values precomputed in the wrapper.
    sp_out = jnp.where(sp == 0, tv,
             jnp.where(sp == 1, tw,
             jnp.where(sp == 2, tx,
             jnp.where(sp == 3, ty,
             jnp.where(sp == 4, tz, zero)))))

    out_ref[...] = (cloud_out * sp_out).astype(out_ref.dtype)


def _round_up(x, m):
    return ((x + m - 1) // m) * m


def _balanced_tile(dim, max_tile, align):
    """Pick a tile that splits `dim` into near-equal (aligned) blocks."""
    n_blocks = -(-dim // max_tile)            # cdiv
    return _round_up(-(-dim // n_blocks), align)


def cloud_impact_forward(params, cloud_fraction, cloud_class, sun_pos,
                         max_tile_m=512, max_tile_n=1024,
                         out_dtype=jnp.float32):
    """params: float32[10] = [a, b, c, d, e, v, w, x, y, z] (raw, un-tanh'ed).

    cloud_class / sun_pos should be small-integer-valued arrays; they are
    carried as int8 to minimize HBM traffic.
    """
    assert cloud_fraction.shape == cloud_class.shape == sun_pos.shape
    assert cloud_fraction.ndim == 2, "expects 2-D [M, N] inputs"
    M, N = cloud_fraction.shape

    # Precompute tanh of the sun-position coefficients once (scalars).
    params = jnp.asarray(params, dtype=jnp.float32)
    packed_params = jnp.concatenate([params[:5], jnp.tanh(params[5:])])

    # Keep class inputs narrow (1 B/elem). If callers already pass int8 this is
    # a no-op; otherwise it is one narrowing pass (still cheaper downstream).
    cf = cloud_fraction if cloud_fraction.dtype == jnp.float32 \
        else cloud_fraction.astype(jnp.float32)
    cc = cloud_class if cloud_class.dtype == jnp.int8 \
        else cloud_class.astype(jnp.int8)
    sp = sun_pos if sun_pos.dtype == jnp.int8 else sun_pos.astype(jnp.int8)

    # Balanced, aligned tiles: M-axis 32-aligned (int8 sublane tiling),
    # N-axis 128-aligned (lane-dense stores).
    tile_m = _balanced_tile(M, max_tile_m, 32)
    tile_n = _balanced_tile(N, max_tile_n, 128)
    grid = (-(-M // tile_m), -(-N // tile_n))

    f32_spec = pl.BlockSpec((tile_m, tile_n), lambda i, j: (i, j))
    i8_spec = pl.BlockSpec((tile_m, tile_n), lambda i, j: (i, j))

    return pl.pallas_call(
        cloud_impact_kernel,
        out_shape=jax.ShapeDtypeStruct((M, N), out_dtype),
        grid=grid,
        in_specs=[
            pl.BlockSpec(memory_space=pltpu.SMEM),   # packed params float32[10]
            f32_spec,                                # cloudFraction (f32)
            i8_spec,                                 # cloudClass    (int8)
            i8_spec,                                 # sun_pos       (int8)
        ],
        out_specs=f32_spec,
        compiler_params=pltpu.CompilerParams(
            dimension_semantics=("parallel", "parallel")),
    )(packed_params, cf, cc, sp)


def reference_forward(params, cf, cc, sp):
    # Direct transcription of the PyTorch module's forward (integer classes).
    a, b, c, d, e, v, w, x, y, z = [params[i] for i in range(10)]
    ind = lambda t, k: jnp.where(t == k, 1.0, 0.0).astype(jnp.float32)
    cloud = (a * cf * ind(cc, 0) + b * cf * ind(cc, 1) + c * cf * ind(cc, 2)
             + d * cf * ind(cc, 3) + e * cf * ind(cc, 4))
    cloud = jnp.maximum(jnp.tanh(cloud), 0.0)
    spo = (v * ind(sp, 0) + w * ind(sp, 1) + x * ind(sp, 2)
           + y * ind(sp, 3) + z * ind(sp, 4))
    spo = jnp.tanh(spo)
    return cloud * spo


if __name__ == "__main__":
    key = jax.random.PRNGKey(0)
    k1, k2, k3, k4 = jax.random.split(key, 4)

    # Parameter init matching __init__: a..e fixed constants, v..z ~ randn.
    vwxyz = jax.random.normal(k4, (5,), dtype=jnp.float32)
    params = jnp.concatenate(
        [jnp.array([0.1, 0.5, 0.9, 0.8, 0.3], dtype=jnp.float32), vwxyz])

    # Small elementwise inputs; M deliberately not tile-aligned to exercise the
    # ragged-block path. Class / sun-position arrays are int8 (values 0..5;
    # 5 maps to the "unknown class -> 0" branch in both kernel and reference).
    M, N = 272, 512
    cloud_fraction = jax.random.uniform(k1, (M, N), dtype=jnp.float32)
    cloud_class = jax.random.randint(k2, (M, N), 0, 6, dtype=jnp.int32).astype(jnp.int8)
    sun_pos = jax.random.randint(k3, (M, N), 0, 6, dtype=jnp.int32).astype(jnp.int8)

    out = cloud_impact_forward(params, cloud_fraction, cloud_class, sun_pos)
    out = jax.block_until_ready(out)

    ref = reference_forward(params, cloud_fraction, cloud_class, sun_pos)
    assert out.shape == (M, N) and out.dtype == jnp.float32
    assert jnp.allclose(out, ref, atol=1e-5, rtol=1e-5), "mismatch vs reference"

    print("KERNEL_OK")
</pallas_src>

<mosaic_0001>
module attributes {stable_mosaic.version = 11 : i64} {
  func.func @cloud_impact_kernel(%arg0: i32, %arg1: i32, %arg2: memref<10xf32, #tpu.memory_space<smem>>, %arg3: memref<288x512xf32, #tpu.memory_space<vmem>>, %arg4: memref<288x512xi8, #tpu.memory_space<vmem>>, %arg5: memref<288x512xi8, #tpu.memory_space<vmem>>, %arg6: memref<288x512xf32, #tpu.memory_space<vmem>>) attributes {dimension_semantics = [#tpu.dimension_semantics<parallel>, #tpu.dimension_semantics<parallel>], iteration_bounds = array<i64: 1, 1>, scalar_prefetch = 0 : i64, scratch_operands = 0 : i64, tpu.core_type = #tpu.core_type<tc>, window_params = [{transform_indices = @transform_0, window_bounds = array<i64: 10>}, {transform_indices = @transform_1, window_bounds = array<i64: 288, 512>}, {transform_indices = @transform_2, window_bounds = array<i64: 288, 512>}, {transform_indices = @transform_3, window_bounds = array<i64: 288, 512>}, {transform_indices = @transform_4, window_bounds = array<i64: 288, 512>}]} {
    %c0 = arith.constant 0 : index
    %0 = memref.load %arg2[%c0] : memref<10xf32, #tpu.memory_space<smem>>
    %c1 = arith.constant 1 : index
    %1 = memref.load %arg2[%c1] : memref<10xf32, #tpu.memory_space<smem>>
    %c2 = arith.constant 2 : index
    %2 = memref.load %arg2[%c2] : memref<10xf32, #tpu.memory_space<smem>>
    %c3 = arith.constant 3 : index
    %3 = memref.load %arg2[%c3] : memref<10xf32, #tpu.memory_space<smem>>
    %c4 = arith.constant 4 : index
    %4 = memref.load %arg2[%c4] : memref<10xf32, #tpu.memory_space<smem>>
    %c5 = arith.constant 5 : index
    %5 = memref.load %arg2[%c5] : memref<10xf32, #tpu.memory_space<smem>>
    %c6 = arith.constant 6 : index
    %6 = memref.load %arg2[%c6] : memref<10xf32, #tpu.memory_space<smem>>
    %c7 = arith.constant 7 : index
    %7 = memref.load %arg2[%c7] : memref<10xf32, #tpu.memory_space<smem>>
    %c8 = arith.constant 8 : index
    %8 = memref.load %arg2[%c8] : memref<10xf32, #tpu.memory_space<smem>>
    %c9 = arith.constant 9 : index
    %9 = memref.load %arg2[%c9] : memref<10xf32, #tpu.memory_space<smem>>
    %c0_0 = arith.constant 0 : index
    %c0_1 = arith.constant 0 : index
    %10 = vector.load %arg3[%c0_0, %c0_1] : memref<288x512xf32, #tpu.memory_space<vmem>>, vector<288x512xf32>
    %c0_2 = arith.constant 0 : index
    %c0_3 = arith.constant 0 : index
    %11 = vector.load %arg4[%c0_2, %c0_3] : memref<288x512xi8, #tpu.memory_space<vmem>>, vector<288x512xi8>
    %12 = arith.extsi %11 : vector<288x512xi8> to vector<288x512xi32>
    %c0_4 = arith.constant 0 : index
    %c0_5 = arith.constant 0 : index
    %13 = vector.load %arg5[%c0_4, %c0_5] : memref<288x512xi8, #tpu.memory_space<vmem>>, vector<288x512xi8>
    %14 = arith.extsi %13 : vector<288x512xi8> to vector<288x512xi32>
    %c0_i32 = arith.constant 0 : i32
    %15 = vector.broadcast %c0_i32 : i32 to vector<288x512xi32>
    %16 = arith.cmpi eq, %12, %15 : vector<288x512xi32>
    %c1_i32 = arith.constant 1 : i32
    %17 = vector.broadcast %c1_i32 : i32 to vector<288x512xi32>
    %18 = arith.cmpi eq, %12, %17 : vector<288x512xi32>
    %c2_i32 = arith.constant 2 : i32
    %19 = vector.broadcast %c2_i32 : i32 to vector<288x512xi32>
    %20 = arith.cmpi eq, %12, %19 : vector<288x512xi32>
    %c3_i32 = arith.constant 3 : i32
    %21 = vector.broadcast %c3_i32 : i32 to vector<288x512xi32>
    %22 = arith.cmpi eq, %12, %21 : vector<288x512xi32>
    %c4_i32 = arith.constant 4 : i32
    %23 = vector.broadcast %c4_i32 : i32 to vector<288x512xi32>
    %24 = arith.cmpi eq, %12, %23 : vector<288x512xi32>
    %cst = arith.constant 0.000000e+00 : f32
    %25 = vector.broadcast %4 : f32 to vector<288x512xf32>
    %26 = vector.broadcast %cst : f32 to vector<288x512xf32>
    %27 = arith.select %24, %25, %26 : vector<288x512xi1>, vector<288x512xf32>
    %28 = vector.broadcast %3 : f32 to vector<288x512xf32>
    %29 = arith.select %22, %28, %27 : vector<288x512xi1>, vector<288x512xf32>
    %30 = vector.broadcast %2 : f32 to vector<288x512xf32>
    %31 = arith.select %20, %30, %29 : vector<288x512xi1>, vector<288x512xf32>
    %32 = vector.broadcast %1 : f32 to vector<288x512xf32>
    %33 = arith.select %18, %32, %31 : vector<288x512xi1>, vector<288x512xf32>
    %34 = vector.broadcast %0 : f32 to vector<288x512xf32>
    %35 = arith.select %16, %34, %33 : vector<288x512xi1>, vector<288x512xf32>
    %36 = arith.mulf %35, %10 : vector<288x512xf32>
    %37 = math.tanh %36 : vector<288x512xf32>
    %cst_6 = arith.constant 0.000000e+00 : f32
    %38 = vector.broadcast %cst_6 : f32 to vector<288x512xf32>
    %39 = arith.maximumf %37, %38 : vector<288x512xf32>
    %c0_i32_7 = arith.constant 0 : i32
    %40 = vector.broadcast %c0_i32_7 : i32 to vector<288x512xi32>
    %41 = arith.cmpi eq, %14, %40 : vector<288x512xi32>
    %c1_i32_8 = arith.constant 1 : i32
    %42 = vector.broadcast %c1_i32_8 : i32 to vector<288x512xi32>
    %43 = arith.cmpi eq, %14, %42 : vector<288x512xi32>
    %c2_i32_9 = arith.constant 2 : i32
    %44 = vector.broadcast %c2_i32_9 : i32 to vector<288x512xi32>
    %45 = arith.cmpi eq, %14, %44 : vector<288x512xi32>
    %c3_i32_10 = arith.constant 3 : i32
    %46 = vector.broadcast %c3_i32_10 : i32 to vector<288x512xi32>
    %47 = arith.cmpi eq, %14, %46 : vector<288x512xi32>
    %c4_i32_11 = arith.constant 4 : i32
    %48 = vector.broadcast %c4_i32_11 : i32 to vector<288x512xi32>
    %49 = arith.cmpi eq, %14, %48 : vector<288x512xi32>
    %cst_12 = arith.constant 0.000000e+00 : f32
    %50 = vector.broadcast %9 : f32 to vector<288x512xf32>
    %51 = vector.broadcast %cst_12 : f32 to vector<288x512xf32>
    %52 = arith.select %49, %50, %51 : vector<288x512xi1>, vector<288x512xf32>
    %53 = vector.broadcast %8 : f32 to vector<288x512xf32>
    %54 = arith.select %47, %53, %52 : vector<288x512xi1>, vector<288x512xf32>
    %55 = vector.broadcast %7 : f32 to vector<288x512xf32>
    %56 = arith.select %45, %55, %54 : vector<288x512xi1>, vector<288x512xf32>
    %57 = vector.broadcast %6 : f32 to vector<288x512xf32>
    %58 = arith.select %43, %57, %56 : vector<288x512xi1>, vector<288x512xf32>
    %59 = vector.broadcast %5 : f32 to vector<288x512xf32>
    %60 = arith.select %41, %59, %58 : vector<288x512xi1>, vector<288x512xf32>
    %61 = arith.mulf %39, %60 : vector<288x512xf32>
    %c0_13 = arith.constant 0 : index
    %c0_14 = arith.constant 0 : index
    %62 = vector.load %arg6[%c0_13, %c0_14] : memref<288x512xf32, #tpu.memory_space<vmem>>, vector<288x512xf32>
    tpu.vector_store %arg6[%c0_13, %c0_14], %61 {strides = array<i32>} : memref<288x512xf32, #tpu.memory_space<vmem>>, vector<288x512xf32>,
    return
  }
  func.func @transform_0(%arg0: i32, %arg1: i32) -> i32 {
    %c0_i32 = arith.constant 0 : i32
    %c0_i32_0 = arith.constant 0 : i32
    return %c0_i32 : i32
  }
  func.func @transform_1(%arg0: i32, %arg1: i32) -> (i32, i32) {
    %c0_i32 = arith.constant 0 : i32
    return %arg0, %arg1 : i32, i32
  }
  func.func @transform_2(%arg0: i32, %arg1: i32) -> (i32, i32) {
    %c0_i32 = arith.constant 0 : i32
    return %arg0, %arg1 : i32, i32
  }
  func.func @transform_3(%arg0: i32, %arg1: i32) -> (i32, i32) {
    %c0_i32 = arith.constant 0 : i32
    return %arg0, %arg1 : i32, i32
  }
  func.func @transform_4(%arg0: i32, %arg1: i32) -> (i32, i32) {
    %c0_i32 = arith.constant 0 : i32
    return %arg0, %arg1 : i32, i32
  }
}

</mosaic_0001>

<llo_original>
// kernel: tpu_custom_call.1
$region0: #{tpu_custom_call.1}
  #allocation0 [shape = 'u32[]', space=smem, size = 0x4, offset = 0x4, fixed_abs, tag = 'smem constant byte address 0x4 - core index']
  #allocation1 [shape = 'u32[144,128]{1,0:T(1,128)}', space=vmem, size = 0x12000, scoped, tag = 'internal scratch']
  %s0 = inlined_call_operand.hbm [shape: f32[10], index: 0, kind: input, shape index: {}]
  %s1 = inlined_call_operand.hbm [shape: f32[272,512], index: 1, kind: input, shape index: {}]
  %s2 = inlined_call_operand.hbm [shape: s8[272,512], index: 2, kind: input, shape index: {}]
  %s3 = inlined_call_operand.hbm [shape: s8[272,512], index: 3, kind: input, shape index: {}]
  %s4 = inlined_call_operand.hbm [shape: f32[272,512], index: 4, kind: output, shape index: {}]
  %s5 = sld [smem:[#allocation0]]
  $region42: #{tpu_custom_call.1} parent=0
    _
  %s7 = ssub.s32 1, %s5
  %s8 = scalar_select 0, %s7, %s5
  $region1: #{tpu_custom_call.1} parent=0
    #allocation2 [shape = 'u8[512]{0}', space=smem, size = 0x200, scoped, tag = 'input window, operand 0, single buffered']
    #allocation3 [shape = 's32[1]{0}', space=sflag, size = 0x4, scoped, tag = 'scoped memory for tpu_custom_call.1']
    #allocation4 [shape = 's32[1]{0}', space=sflag, size = 0x4, scoped, tag = 'scoped memory for tpu_custom_call.1']
    #allocation5 [shape = 's32[1]{0}', space=sflag, size = 0x4, scoped, tag = 'scoped memory for tpu_custom_call.1']
    #allocation6 [shape = 'u8[589824]{0}', space=vmem, size = 0x90000, scoped, tag = 'input window, operand 1, single buffered']
    #allocation7 [shape = 'u8[147456]{0}', space=vmem, size = 0x24000, scoped, tag = 'input window, operand 2, single buffered']
    #allocation8 [shape = 's32[1]{0}', space=sflag, size = 0x4, scoped, tag = 'scoped memory for tpu_custom_call.1']
    #allocation9 [shape = 'u8[147456]{0}', space=vmem, size = 0x24000, scoped, tag = 'input window, operand 3, single buffered']
    #allocation10 [shape = 'u8[589824]{0}', space=vmem, size = 0x90000, scoped, tag = 'output window, operand 0, single buffered']
    %9 = vsyncpa [#allocation5], 0
    %10 = vsyncpa [#allocation3], 0
    %11 = vsyncpa [#allocation8], 0
    %12 = vsyncpa [#allocation4], 0
    // Predicated region
    $region2: #{tpu_custom_call.1} parent=1 // pred_check
      _
    $region3: #{tpu_custom_call.1} parent=1 // pred_check_branch
      %14 = sbr.rel (0) target = $region5
    $region4: #{tpu_custom_call.1} parent=1 // pred_region
      %s16 = ssub.s32 16, 16
      %17 = vsyncadd [#allocation5], %s16
      %20 = dma.hbm_to_smem %s0, 16, [#allocation2], [#allocation5]
    $region5: #{tpu_custom_call.1} parent=1 // pred_fallthru
      _
    // Predicated region
    $region6: #{tpu_custom_call.1} parent=1 // pred_check
      _
    $region7: #{tpu_custom_call.1} parent=1 // pred_check_branch
      %22 = sbr.rel (0) target = $region9
    $region8: #{tpu_custom_call.1} parent=1 // pred_region
      %s24 = ssub.s32 18432, 17408
      %25 = vsyncadd [#allocation3], %s24
      %s26 = sshll.u32 [#allocation6], 4
      %s27 = int_to_ptr.vmem [resolvable:$true] %s26
      %32 = dma.hbm_to_vmem [thread:$0]  %s1, 17408, %s27, [#allocation3], 512, 512, 32
    $region9: #{tpu_custom_call.1} parent=1 // pred_fallthru
      _
    // Predicated region
    $region10: #{tpu_custom_call.1} parent=1 // pred_check
      _
    $region11: #{tpu_custom_call.1} parent=1 // pred_check_branch
      %34 = sbr.rel (0) target = $region13
    $region12: #{tpu_custom_call.1} parent=1 // pred_region
      %s36 = ssub.s32 4608, 4352
      %37 = vsyncadd [#allocation8], %s36
      %s38 = sshll.u32 [#allocation7], 4
      %s39 = int_to_ptr.vmem [resolvable:$true] %s38
      %44 = dma.hbm_to_vmem [thread:$0]  %s2, 4352, %s39, [#allocation8], 128, 128, 8
    $region13: #{tpu_custom_call.1} parent=1 // pred_fallthru
      _
    // Predicated region
    $region14: #{tpu_custom_call.1} parent=1 // pred_check
      _
    $region15: #{tpu_custom_call.1} parent=1 // pred_check_branch
      %46 = sbr.rel (0) target = $region17
    $region16: #{tpu_custom_call.1} parent=1 // pred_region
      %s48 = ssub.s32 4608, 4352
      %49 = vsyncadd [#allocation8], %s48
      %s50 = sshll.u32 [#allocation9], 4
      %s51 = int_to_ptr.vmem [resolvable:$true] %s50
      %56 = dma.hbm_to_vmem [thread:$0]  %s3, 4352, %s51, [#allocation8], 128, 128, 8
    $region17: #{tpu_custom_call.1} parent=1 // pred_fallthru
      _
    // Predicated region
    $region18: #{tpu_custom_call.1} parent=1 // pred_check
      _
    $region19: #{tpu_custom_call.1} parent=1 // pred_check_branch
      %58 = sbr.rel (0) target = $region21
    $region20: #{tpu_custom_call.1} parent=1 // pred_region
      %59 = dma.done [#allocation5], 16
    $region21: #{tpu_custom_call.1} parent=1 // pred_fallthru
      _
    // Predicated region
    $region22: #{tpu_custom_call.1} parent=1 // pred_check
      _
    $region23: #{tpu_custom_call.1} parent=1 // pred_check_branch
      %61 = sbr.rel (0) target = $region25
    $region24: #{tpu_custom_call.1} parent=1 // pred_region
      %62 = dma.done [#allocation3], 18432
    $region25: #{tpu_custom_call.1} parent=1 // pred_fallthru
      _
    // Predicated region
    $region26: #{tpu_custom_call.1} parent=1 // pred_check
      _
    $region27: #{tpu_custom_call.1} parent=1 // pred_check_branch
      %64 = sbr.rel (0) target = $region29
    $region28: #{tpu_custom_call.1} parent=1 // pred_region
      %65 = dma.done [#allocation8], 4608
    $region29: #{tpu_custom_call.1} parent=1 // pred_fallthru
      _
    // Predicated region
    $region30: #{tpu_custom_call.1} parent=1 // pred_check
      _
    $region31: #{tpu_custom_call.1} parent=1 // pred_check_branch
      %67 = sbr.rel (0) target = $region33
    $region32: #{tpu_custom_call.1} parent=1 // pred_region
      %68 = dma.done [#allocation8], 4608
    $region33: #{tpu_custom_call.1} parent=1 // pred_fallthru
      _
    %69 = sfence
    %s70 = sld [smem:[#allocation2]]
    %s71 = sld [smem:[#allocation2 + $0x1]]
    %s72 = sld [smem:[#allocation2 + $0x2]]
    %s73 = sld [smem:[#allocation2 + $0x3]]
    %s74 = sld [smem:[#allocation2 + $0x4]]
    %s75 = sld [smem:[#allocation2 + $0x5]]
    %s76 = sld [smem:[#allocation2 + $0x6]]
    %s77 = sld [smem:[#allocation2 + $0x7]]
    %s78 = sld [smem:[#allocation2 + $0x8]]
    %s79 = sld [smem:[#allocation2 + $0x9]]
    %v80 = vld [vmem:[#allocation6] sm:$0xff]
    %v81 = vld [vmem:[#allocation6 + $0x8] sm:$0xff]
    %v82 = vld [vmem:[#allocation6 + $0x10] sm:$0xff]
    %v83 = vld [vmem:[#allocation6 + $0x18] sm:$0xff]
    %v84 = vld [vmem:[#allocation6 + $0x20] sm:$0xff]
    %v85 = vld [vmem:[#allocation6 + $0x28] sm:$0xff]
    %v86 = vld [vmem:[#allocation6 + $0x30] sm:$0xff]
    %v87 = vld [vmem:[#allocation6 + $0x38] sm:$0xff]
    %v88 = vld [vmem:[#allocation6 + $0x40] sm:$0xff]
    %v89 = vld [vmem:[#allocation6 + $0x48] sm:$0xff]
    %v90 = vld [vmem:[#allocation6 + $0x50] sm:$0xff]
    %v91 = vld [vmem:[#allocation6 + $0x58] sm:$0xff]
    %v92 = vld [vmem:[#allocation6 + $0x60] sm:$0xff]
    %v93 = vld [vmem:[#allocation6 + $0x68] sm:$0xff]
    %v94 = vld [vmem:[#allocation6 + $0x70] sm:$0xff]
    %v95 = vld [vmem:[#allocation6 + $0x78] sm:$0xff]
    %v96 = vld [vmem:[#allocation6 + $0x80] sm:$0xff]
    %v97 = vld [vmem:[#allocation6 + $0x88] sm:$0xff]
    %v98 = vld [vmem:[#allocation6 + $0x90] sm:$0xff]
    %v99 = vld [vmem:[#allocation6 + $0x98] sm:$0xff]
    %v100 = vld [vmem:[#allocation6 + $0xa0] sm:$0xff]
    %v101 = vld [vmem:[#allocation6 + $0xa8] sm:$0xff]
    %v102 = vld [vmem:[#allocation6 + $0xb0] sm:$0xff]
    %v103 = vld [vmem:[#allocation6 + $0xb8] sm:$0xff]
    %v104 = vld [vmem:[#allocation6 + $0xc0] sm:$0xff]
    %v105 = vld [vmem:[#allocation6 + $0xc8] sm:$0xff]
    %v106 = vld [vmem:[#allocation6 + $0xd0] sm:$0xff]
    %v107 = vld [vmem:[#allocation6 + $0xd8] sm:$0xff]
    %v108 = vld [vmem:[#allocation6 + $0xe0] sm:$0xff]
    %v109 = vld [vmem:[#allocation6 + $0xe8] sm:$0xff]
    %v110 = vld [vmem:[#allocation6 + $0xf0] sm:$0xff]
    %v111 = vld [vmem:[#allocation6 + $0xf8] sm:$0xff]
    %v112 = vld [vmem:[#allocation6 + $0x100] sm:$0xff]
    %v113 = vld [vmem:[#allocation6 + $0x108] sm:$0xff]
    %v114 = vld [vmem:[#allocation6 + $0x110] sm:$0xff]
    %v115 = vld [vmem:[#allocation6 + $0x118] sm:$0xff]
    %v116 = vld [vmem:[#allocation6 + $0x120] sm:$0xff]
    %v117 = vld [vmem:[#allocation6 + $0x128] sm:$0xff]
    %v118 = vld [vmem:[#allocation6 + $0x130] sm:$0xff]
    %v119 = vld [vmem:[#allocation6 + $0x138] sm:$0xff]
    %v120 = vld [vmem:[#allocation6 + $0x140] sm:$0xff]
    %v121 = vld [vmem:[#allocation6 + $0x148] sm:$0xff]
    %v122 = vld [vmem:[#allocation6 + $0x150] sm:$0xff]
    %v123 = vld [vmem:[#allocation6 + $0x158] sm:$0xff]
    %v124 = vld [vmem:[#allocation6 + $0x160] sm:$0xff]
    %v125 = vld [vmem:[#allocation6 + $0x168] sm:$0xff]
    %v126 = vld [vmem:[#allocation6 + $0x170] sm:$0xff]
    %v127 = vld [vmem:[#allocation6 + $0x178] sm:$0xff]
    %v128 = vld [vmem:[#allocation6 + $0x180] sm:$0xff]
    %v129 = vld [vmem:[#allocation6 + $0x188] sm:$0xff]
    %v130 = vld [vmem:[#allocation6 + $0x190] sm:$0xff]
    %v131 = vld [vmem:[#allocation6 + $0x198] sm:$0xff]
    %v132 = vld [vmem:[#allocation6 + $0x1a0] sm:$0xff]
    %v133 = vld [vmem:[#allocation6 + $0x1a8] sm:$0xff]
    %v134 = vld [vmem:[#allocation6 + $0x1b0] sm:$0xff]
    %v135 = vld [vmem:[#allocation6 + $0x1b8] sm:$0xff]
    %v136 = vld [vmem:[#allocation6 + $0x1c0] sm:$0xff]
    %v137 = vld [vmem:[#allocation6 + $0x1c8] sm:$0xff]
    %v138 = vld [vmem:[#allocation6 + $0x1d0] sm:$0xff]
    %v139 = vld [vmem:[#allocation6 + $0x1d8] sm:$0xff]
    %v140 = vld [vmem:[#allocation6 + $0x1e0] sm:$0xff]
    %v141 = vld [vmem:[#allocation6 + $0x1e8] sm:$0xff]
    %v142 = vld [vmem:[#allocation6 + $0x1f0] sm:$0xff]
    %v143 = vld [vmem:[#allocation6 + $0x1f8] sm:$0xff]
    %v144 = vld [vmem:[#allocation6 + $0x200] sm:$0xff]
    %v145 = vld [vmem:[#allocation6 + $0x208] sm:$0xff]
    %v146 = vld [vmem:[#allocation6 + $0x210] sm:$0xff]
    %v147 = vld [vmem:[#allocation6 + $0x218] sm:$0xff]
    %v148 = vld [vmem:[#allocation6 + $0x220] sm:$0xff]
    %v149 = vld [vmem:[#allocation6 + $0x228] sm:$0xff]
    %v150 = vld [vmem:[#allocation6 + $0x230] sm:$0xff]
    %v151 = vld [vmem:[#allocation6 + $0x238] sm:$0xff]
    %v152 = vld [vmem:[#allocation6 + $0x240] sm:$0xff]
    %v153 = vld [vmem:[#allocation6 + $0x248] sm:$0xff]
    %v154 = vld [vmem:[#allocation6 + $0x250] sm:$0xff]
    %v155 = vld [vmem:[#allocation6 + $0x258] sm:$0xff]
    %v156 = vld [vmem:[#allocation6 + $0x260] sm:$0xff]
    %v157 = vld [vmem:[#allocation6 + $0x268] sm:$0xff]
    %v158 = vld [vmem:[#allocation6 + $0x270] sm:$0xff]
    %v159 = vld [vmem:[#allocation6 + $0x278] sm:$0xff]
    %v160 = vld [vmem:[#allocation6 + $0x280] sm:$0xff]
    %v161 = vld [vmem:[#allocation6 + $0x288] sm:$0xff]
    %v162 = vld [vmem:[#allocation6 + $0x290] sm:$0xff]
    %v163 = vld [vmem:[#allocation6 + $0x298] sm:$0xff]
    %v164 = vld [vmem:[#allocation6 + $0x2a0] sm:$0xff]
    %v165 = vld [vmem:[#allocation6 + $0x2a8] sm:$0xff]
    %v166 = vld [vmem:[#allocation6 + $0x2b0] sm:$0xff]
    %v167 = vld [vmem:[#allocation6 + $0x2b8] sm:$0xff]
    %v168 = vld [vmem:[#allocation6 + $0x2c0] sm:$0xff]
    %v169 = vld [vmem:[#allocation6 + $0x2c8] sm:$0xff]
    %v170 = vld [vmem:[#allocation6 + $0x2d0] sm:$0xff]
    %v171 = vld [vmem:[#allocation6 + $0x2d8] sm:$0xff]
    %v172 = vld [vmem:[#allocation6 + $0x2e0] sm:$0xff]
    %v173 = vld [vmem:[#allocation6 + $0x2e8] sm:$0xff]
    %v174 = vld [vmem:[#allocation6 + $0x2f0] sm:$0xff]
    %v175 = vld [vmem:[#allocation6 + $0x2f8] sm:$0xff]
    %v176 = vld [vmem:[#allocation6 + $0x300] sm:$0xff]
    %v177 = vld [vmem:[#allocation6 + $0x308] sm:$0xff]
    %v178 = vld [vmem:[#allocation6 + $0x310] sm:$0xff]
    %v179 = vld [vmem:[#allocation6 + $0x318] sm:$0xff]
    %v180 = vld [vmem:[#allocation6 + $0x320] sm:$0xff]
    %v181 = vld [vmem:[#allocation6 + $0x328] sm:$0xff]
    %v182 = vld [vmem:[#allocation6 + $0x330] sm:$0xff]
    %v183 = vld [vmem:[#allocation6 + $0x338] sm:$0xff]
    %v184 = vld [vmem:[#allocation6 + $0x340] sm:$0xff]
    %v185 = vld [vmem:[#allocation6 + $0x348] sm:$0xff]
    %v186 = vld [vmem:[#allocation6 + $0x350] sm:$0xff]
    %v187 = vld [vmem:[#allocation6 + $0x358] sm:$0xff]
    %v188 = vld [vmem:[#allocation6 + $0x360] sm:$0xff]
    %v189 = vld [vmem:[#allocation6 + $0x368] sm:$0xff]
    %v190 = vld [vmem:[#allocation6 + $0x370] sm:$0xff]
    %v191 = vld [vmem:[#allocation6 + $0x378] sm:$0xff]
    %v192 = vld [vmem:[#allocation6 + $0x380] sm:$0xff]
    %v193 = vld [vmem:[#allocation6 + $0x388] sm:$0xff]
    %v194 = vld [vmem:[#allocation6 + $0x390] sm:$0xff]
    %v195 = vld [vmem:[#allocation6 + $0x398] sm:$0xff]
    %v196 = vld [vmem:[#allocation6 + $0x3a0] sm:$0xff]
    %v197 = vld [vmem:[#allocation6 + $0x3a8] sm:$0xff]
    %v198 = vld [vmem:[#allocation6 + $0x3b0] sm:$0xff]
    %v199 = vld [vmem:[#allocation6 + $0x3b8] sm:$0xff]
    %v200 = vld [vmem:[#allocation6 + $0x3c0] sm:$0xff]
    %v201 = vld [vmem:[#allocation6 + $0x3c8] sm:$0xff]
    %v202 = vld [vmem:[#allocation6 + $0x3d0] sm:$0xff]
    %v203 = vld [vmem:[#allocation6 + $0x3d8] sm:$0xff]
    %v204 = vld [vmem:[#allocation6 + $0x3e0] sm:$0xff]
    %v205 = vld [vmem:[#allocation6 + $0x3e8] sm:$0xff]
    %v206 = vld [vmem:[#allocation6 + $0x3f0] sm:$0xff]
    %v207 = vld [vmem:[#allocation6 + $0x3f8] sm:$0xff]
    %v208 = vld [vmem:[#allocation6 + $0x400] sm:$0xff]
    %v209 = vld [vmem:[#allocation6 + $0x408] sm:$0xff]
    %v210 = vld [vmem:[#allocation6 + $0x410] sm:$0xff]
    %v211 = vld [vmem:[#allocation6 + $0x418] sm:$0xff]
    %v212 = vld [vmem:[#allocation6 + $0x420] sm:$0xff]
    %v213 = vld [vmem:[#allocation6 + $0x428] sm:$0xff]
    %v214 = vld [vmem:[#allocation6 + $0x430] sm:$0xff]
    %v215 = vld [vmem:[#allocation6 + $0x438] sm:$0xff]
    %v216 = vld [vmem:[#allocation6 + $0x440] sm:$0xff]
    %v217 = vld [vmem:[#allocation6 + $0x448] sm:$0xff]
    %v218 = vld [vmem:[#allocation6 + $0x450] sm:$0xff]
    %v219 = vld [vmem:[#allocation6 + $0x458] sm:$0xff]
    %v220 = vld [vmem:[#allocation6 + $0x460] sm:$0xff]
    %v221 = vld [vmem:[#allocation6 + $0x468] sm:$0xff]
    %v222 = vld [vmem:[#allocation6 + $0x470] sm:$0xff]
    %v223 = vld [vmem:[#allocation6 + $0x478] sm:$0xff]
    %v224 = vld [vmem:[#allocation7] sm:$0xff]
    %v225 = vld [vmem:[#allocation7 + $0x8] sm:$0xff]
    %v226 = vld [vmem:[#allocation7 + $0x10] sm:$0xff]
    %v227 = vld [vmem:[#allocation7 + $0x18] sm:$0xff]
    %v228 = vld [vmem:[#allocation7 + $0x20] sm:$0xff]
    %v229 = vld [vmem:[#allocation7 + $0x28] sm:$0xff]
    %v230 = vld [vmem:[#allocation7 + $0x30] sm:$0xff]
    %v231 = vld [vmem:[#allocation7 + $0x38] sm:$0xff]
    %v232 = vld [vmem:[#allocation7 + $0x40] sm:$0xff]
    %v233 = vld [vmem:[#allocation7 + $0x48] sm:$0xff]
    %v234 = vld [vmem:[#allocation7 + $0x50] sm:$0xff]
    %v235 = vld [vmem:[#allocation7 + $0x58] sm:$0xff]
    %v236 = vld [vmem:[#allocation7 + $0x60] sm:$0xff]
    %v237 = vld [vmem:[#allocation7 + $0x68] sm:$0xff]
    %v238 = vld [vmem:[#allocation7 + $0x70] sm:$0xff]
    %v239 = vld [vmem:[#allocation7 + $0x78] sm:$0xff]
    %v240 = vld [vmem:[#allocation7 + $0x80] sm:$0xff]
    %v241 = vld [vmem:[#allocation7 + $0x88] sm:$0xff]
    %v242 = vld [vmem:[#allocation7 + $0x90] sm:$0xff]
    %v243 = vld [vmem:[#allocation7 + $0x98] sm:$0xff]
    %v244 = vld [vmem:[#allocation7 + $0xa0] sm:$0xff]
    %v245 = vld [vmem:[#allocation7 + $0xa8] sm:$0xff]
    %v246 = vld [vmem:[#allocation7 + $0xb0] sm:$0xff]
    %v247 = vld [vmem:[#allocation7 + $0xb8] sm:$0xff]
    %v248 = vld [vmem:[#allocation7 + $0xc0] sm:$0xff]
    %v249 = vld [vmem:[#allocation7 + $0xc8] sm:$0xff]
    %v250 = vld [vmem:[#allocation7 + $0xd0] sm:$0xff]
    %v251 = vld [vmem:[#allocation7 + $0xd8] sm:$0xff]
    %v252 = vld [vmem:[#allocation7 + $0xe0] sm:$0xff]
    %v253 = vld [vmem:[#allocation7 + $0xe8] sm:$0xff]
    %v254 = vld [vmem:[#allocation7 + $0xf0] sm:$0xff]
    %v255 = vld [vmem:[#allocation7 + $0xf8] sm:$0xff]
    %v256 = vld [vmem:[#allocation7 + $0x100] sm:$0xff]
    %v257 = vld [vmem:[#allocation7 + $0x108] sm:$0xff]
    %v258 = vld [vmem:[#allocation7 + $0x110] sm:$0xff]
    %v259 = vld [vmem:[#allocation7 + $0x118] sm:$0xff]
    %v260 = vunpack.c.0.s8 %v224
    %v261 = vunpack.c.1.s8 %v224
    %v262 = vunpack.c.2.s8 %v224
    %v263 = vunpack.c.3.s8 %v224
    %v264 = vunpack.c.0.s8 %v225
    %v265 = vunpack.c.1.s8 %v225
    %v266 = vunpack.c.2.s8 %v225
    %v267 = vunpack.c.3.s8 %v225
    %v268 = vunpack.c.0.s8 %v226
    %v269 = vunpack.c.1.s8 %v226
    %v270 = vunpack.c.2.s8 %v226
    %v271 = vunpack.c.3.s8 %v226
    %v272 = vunpack.c.0.s8 %v227
    %v273 = vunpack.c.1.s8 %v227
    %v274 = vunpack.c.2.s8 %v227
    %v275 = vunpack.c.3.s8 %v227
    %v276 = vunpack.c.0.s8 %v228
    %v277 = vunpack.c.1.s8 %v228
    %v278 = vunpack.c.2.s8 %v228
    %v279 = vunpack.c.3.s8 %v228
    %v280 = vunpack.c.0.s8 %v229
    %v281 = vunpack.c.1.s8 %v229
    %v282 = vunpack.c.2.s8 %v229
    %v283 = vunpack.c.3.s8 %v229
    %v284 = vunpack.c.0.s8 %v230
    %v285 = vunpack.c.1.s8 %v230
    %v286 = vunpack.c.2.s8 %v230
    %v287 = vunpack.c.3.s8 %v230
    %v288 = vunpack.c.0.s8 %v231
    %v289 = vunpack.c.1.s8 %v231
    %v290 = vunpack.c.2.s8 %v231
    %v291 = vunpack.c.3.s8 %v231
    %v292 = vunpack.c.0.s8 %v232
    %v293 = vunpack.c.1.s8 %v232
    %v294 = vunpack.c.2.s8 %v232
    %v295 = vunpack.c.3.s8 %v232
    %v296 = vunpack.c.0.s8 %v233
    %v297 = vunpack.c.1.s8 %v233
    %v298 = vunpack.c.2.s8 %v233
    %v299 = vunpack.c.3.s8 %v233
    %v300 = vunpack.c.0.s8 %v234
    %v301 = vunpack.c.1.s8 %v234
    %v302 = vunpack.c.2.s8 %v234
    %v303 = vunpack.c.3.s8 %v234
    %v304 = vunpack.c.0.s8 %v235
    %v305 = vunpack.c.1.s8 %v235
    %v306 = vunpack.c.2.s8 %v235
    %v307 = vunpack.c.3.s8 %v235
    %v308 = vunpack.c.0.s8 %v236
    %v309 = vunpack.c.1.s8 %v236
    %v310 = vunpack.c.2.s8 %v236
    %v311 = vunpack.c.3.s8 %v236
    %v312 = vunpack.c.0.s8 %v237
    %v313 = vunpack.c.1.s8 %v237
    %v314 = vunpack.c.2.s8 %v237
    %v315 = vunpack.c.3.s8 %v237
    %v316 = vunpack.c.0.s8 %v238
    %v317 = vunpack.c.1.s8 %v238
    %v318 = vunpack.c.2.s8 %v238
    %v319 = vunpack.c.3.s8 %v238
    %v320 = vunpack.c.0.s8 %v239
    %v321 = vunpack.c.1.s8 %v239
    %v322 = vunpack.c.2.s8 %v239
    %v323 = vunpack.c.3.s8 %v239
    %v324 = vunpack.c.0.s8 %v240
    %v325 = vunpack.c.1.s8 %v240
    %v326 = vunpack.c.2.s8 %v240
    %v327 = vunpack.c.3.s8 %v240
    %v328 = vunpack.c.0.s8 %v241
    %v329 = vunpack.c.1.s8 %v241
    %v330 = vunpack.c.2.s8 %v241
    %v331 = vunpack.c.3.s8 %v241
    %v332 = vunpack.c.0.s8 %v242
    %v333 = vunpack.c.1.s8 %v242
    %v334 = vunpack.c.2.s8 %v242
    %v335 = vunpack.c.3.s8 %v242
    %v336 = vunpack.c.0.s8 %v243
    %v337 = vunpack.c.1.s8 %v243
    %v338 = vunpack.c.2.s8 %v243
    %v339 = vunpack.c.3.s8 %v243
    %v340 = vunpack.c.0.s8 %v244
    %v341 = vunpack.c.1.s8 %v244
    %v342 = vunpack.c.2.s8 %v244
    %v343 = vunpack.c.3.s8 %v244
    %v344 = vunpack.c.0.s8 %v245
    %v345 = vunpack.c.1.s8 %v245
    %v346 = vunpack.c.2.s8 %v245
    %v347 = vunpack.c.3.s8 %v245
    %v348 = vunpack.c.0.s8 %v246
    %v349 = vunpack.c.1.s8 %v246
    %v350 = vunpack.c.2.s8 %v246
    %v351 = vunpack.c.3.s8 %v246
    %v352 = vunpack.c.0.s8 %v247
    %v353 = vunpack.c.1.s8 %v247
    %v354 = vunpack.c.2.s8 %v247
    %v355 = vunpack.c.3.s8 %v247
    %v356 = vunpack.c.0.s8 %v248
    %v357 = vunpack.c.1.s8 %v248
    %v358 = vunpack.c.2.s8 %v248
    %v359 = vunpack.c.3.s8 %v248
    %v360 = vunpack.c.0.s8 %v249
    %v361 = vunpack.c.1.s8 %v249
    %v362 = vunpack.c.2.s8 %v249
    %v363 = vunpack.c.3.s8 %v249
    %v364 = vunpack.c.0.s8 %v250
    %v365 = vunpack.c.1.s8 %v250
    %v366 = vunpack.c.2.s8 %v250
    %v367 = vunpack.c.3.s8 %v250
    %v368 = vunpack.c.0.s8 %v251
    %v369 = vunpack.c.1.s8 %v251
    %v370 = vunpack.c.2.s8 %v251
    %v371 = vunpack.c.3.s8 %v251
    %v372 = vunpack.c.0.s8 %v252
    %v373 = vunpack.c.1.s8 %v252
    %v374 = vunpack.c.2.s8 %v252
    %v375 = vunpack.c.3.s8 %v252
    %v376 = vunpack.c.0.s8 %v253
    %v377 = vunpack.c.1.s8 %v253
    %v378 = vunpack.c.2.s8 %v253
    %v379 = vunpack.c.3.s8 %v253
    %v380 = vunpack.c.0.s8 %v254
    %v381 = vunpack.c.1.s8 %v254
    %v382 = vunpack.c.2.s8 %v254
    %v383 = vunpack.c.3.s8 %v254
    %v384 = vunpack.c.0.s8 %v255
    %v385 = vunpack.c.1.s8 %v255
    %v386 = vunpack.c.2.s8 %v255
    %v387 = vunpack.c.3.s8 %v255
    %v388 = vunpack.c.0.s8 %v256
    %v389 = vunpack.c.1.s8 %v256
    %v390 = vunpack.c.2.s8 %v256
    %v391 = vunpack.c.3.s8 %v256
    %v392 = vunpack.c.0.s8 %v257
    %v393 = vunpack.c.1.s8 %v257
    %v394 = vunpack.c.2.s8 %v257
    %v395 = vunpack.c.3.s8 %v257
    %v396 = vunpack.c.0.s8 %v258
    %v397 = vunpack.c.1.s8 %v258
    %v398 = vunpack.c.2.s8 %v258
    %v399 = vunpack.c.3.s8 %v258
    %v400 = vunpack.c.0.s8 %v259
    %v401 = vunpack.c.1.s8 %v259
    %v402 = vunpack.c.2.s8 %v259
    %v403 = vunpack.c.3.s8 %v259
    %v404 = vld [vmem:[#allocation9] sm:$0xff]
    %v405 = vld [vmem:[#allocation9 + $0x8] sm:$0xff]
    %v406 = vld [vmem:[#allocation9 + $0x10] sm:$0xff]
    %v407 = vld [vmem:[#allocation9 + $0x18] sm:$0xff]
    %v408 = vld [vmem:[#allocation9 + $0x20] sm:$0xff]
    %v409 = vld [vmem:[#allocation9 + $0x28] sm:$0xff]
    %v410 = vld [vmem:[#allocation9 + $0x30] sm:$0xff]
    %v411 = vld [vmem:[#allocation9 + $0x38] sm:$0xff]
    %v412 = vld [vmem:[#allocation9 + $0x40] sm:$0xff]
    %v413 = vld [vmem:[#allocation9 + $0x48] sm:$0xff]
    %v414 = vld [vmem:[#allocation9 + $0x50] sm:$0xff]
    %v415 = vld [vmem:[#allocation9 + $0x58] sm:$0xff]
    %v416 = vld [vmem:[#allocation9 + $0x60] sm:$0xff]
    %v417 = vld [vmem:[#allocation9 + $0x68] sm:$0xff]
    %v418 = vld [vmem:[#allocation9 + $0x70] sm:$0xff]
    %v419 = vld [vmem:[#allocation9 + $0x78] sm:$0xff]
    %v420 = vld [vmem:[#allocation9 + $0x80] sm:$0xff]
    %v421 = vld [vmem:[#allocation9 + $0x88] sm:$0xff]
    %v422 = vld [vmem:[#allocation9 + $0x90] sm:$0xff]
    %v423 = vld [vmem:[#allocation9 + $0x98] sm:$0xff]
    %v424 = vld [vmem:[#allocation9 + $0xa0] sm:$0xff]
    %v425 = vld [vmem:[#allocation9 + $0xa8] sm:$0xff]
    %v426 = vld [vmem:[#allocation9 + $0xb0] sm:$0xff]
    %v427 = vld [vmem:[#allocation9 + $0xb8] sm:$0xff]
    %v428 = vld [vmem:[#allocation9 + $0xc0] sm:$0xff]
    %v429 = vld [vmem:[#allocation9 + $0xc8] sm:$0xff]
    %v430 = vld [vmem:[#allocation9 + $0xd0] sm:$0xff]
    %v431 = vld [vmem:[#allocation9 + $0xd8] sm:$0xff]
    %v432 = vld [vmem:[#allocation9 + $0xe0] sm:$0xff]
    %v433 = vld [vmem:[#allocation9 + $0xe8] sm:$0xff]
    %v434 = vld [vmem:[#allocation9 + $0xf0] sm:$0xff]
    %v435 = vld [vmem:[#allocation9 + $0xf8] sm:$0xff]
    %v436 = vld [vmem:[#allocation9 + $0x100] sm:$0xff]
    %v437 = vld [vmem:[#allocation9 + $0x108] sm:$0xff]
    %v438 = vld [vmem:[#allocation9 + $0x110] sm:$0xff]
    %v439 = vld [vmem:[#allocation9 + $0x118] sm:$0xff]
    %v440 = vunpack.c.0.s8 %v404
    %v441 = vunpack.c.1.s8 %v404
    %v442 = vunpack.c.2.s8 %v404
    %v443 = vunpack.c.3.s8 %v404
    %v444 = vunpack.c.0.s8 %v405
    %v445 = vunpack.c.1.s8 %v405
    %v446 = vunpack.c.2.s8 %v405
    %v447 = vunpack.c.3.s8 %v405
    %v448 = vunpack.c.0.s8 %v406
    %v449 = vunpack.c.1.s8 %v406
    %v450 = vunpack.c.2.s8 %v406
    %v451 = vunpack.c.3.s8 %v406
    %v452 = vunpack.c.0.s8 %v407
    %v453 = vunpack.c.1.s8 %v407
    %v454 = vunpack.c.2.s8 %v407
    %v455 = vunpack.c.3.s8 %v407
    %v456 = vunpack.c.0.s8 %v408
    %v457 = vunpack.c.1.s8 %v408
    %v458 = vunpack.c.2.s8 %v408
    %v459 = vunpack.c.3.s8 %v408
    %v460 = vunpack.c.0.s8 %v409
    %v461 = vunpack.c.1.s8 %v409
    %v462 = vunpack.c.2.s8 %v409
    %v463 = vunpack.c.3.s8 %v409
    %v464 = vunpack.c.0.s8 %v410
    %v465 = vunpack.c.1.s8 %v410
    %v466 = vunpack.c.2.s8 %v410
    %v467 = vunpack.c.3.s8 %v410
    %v468 = vunpack.c.0.s8 %v411
    %v469 = vunpack.c.1.s8 %v411
    %v470 = vunpack.c.2.s8 %v411
    %v471 = vunpack.c.3.s8 %v411
    %v472 = vunpack.c.0.s8 %v412
    %v473 = vunpack.c.1.s8 %v412
    %v474 = vunpack.c.2.s8 %v412
    %v475 = vunpack.c.3.s8 %v412
    %v476 = vunpack.c.0.s8 %v413
    %v477 = vunpack.c.1.s8 %v413
    %v478 = vunpack.c.2.s8 %v413
    %v479 = vunpack.c.3.s8 %v413
    %v480 = vunpack.c.0.s8 %v414
    %v481 = vunpack.c.1.s8 %v414
    %v482 = vunpack.c.2.s8 %v414
    %v483 = vunpack.c.3.s8 %v414
    %v484 = vunpack.c.0.s8 %v415
    %v485 = vunpack.c.1.s8 %v415
    %v486 = vunpack.c.2.s8 %v415
    %v487 = vunpack.c.3.s8 %v415
    %v488 = vunpack.c.0.s8 %v416
    %v489 = vunpack.c.1.s8 %v416
    %v490 = vunpack.c.2.s8 %v416
    %v491 = vunpack.c.3.s8 %v416
    %v492 = vunpack.c.0.s8 %v417
    %v493 = vunpack.c.1.s8 %v417
    %v494 = vunpack.c.2.s8 %v417
    %v495 = vunpack.c.3.s8 %v417
    %v496 = vunpack.c.0.s8 %v418
    %v497 = vunpack.c.1.s8 %v418
    %v498 = vunpack.c.2.s8 %v418
    %v499 = vunpack.c.3.s8 %v418
    %v500 = vunpack.c.0.s8 %v419
    %v501 = vunpack.c.1.s8 %v419
    %v502 = vunpack.c.2.s8 %v419
    %v503 = vunpack.c.3.s8 %v419
    %v504 = vunpack.c.0.s8 %v420
    %v505 = vunpack.c.1.s8 %v420
    %v506 = vunpack.c.2.s8 %v420
    %v507 = vunpack.c.3.s8 %v420
    %v508 = vunpack.c.0.s8 %v421
    %v509 = vunpack.c.1.s8 %v421
    %v510 = vunpack.c.2.s8 %v421
    %v511 = vunpack.c.3.s8 %v421
    %v512 = vunpack.c.0.s8 %v422
    %v513 = vunpack.c.1.s8 %v422
    %v514 = vunpack.c.2.s8 %v422
    %v515 = vunpack.c.3.s8 %v422
    %v516 = vunpack.c.0.s8 %v423
    %v517 = vunpack.c.1.s8 %v423
    %v518 = vunpack.c.2.s8 %v423
    %v519 = vunpack.c.3.s8 %v423
    %v520 = vunpack.c.0.s8 %v424
    %v521 = vunpack.c.1.s8 %v424
    %v522 = vunpack.c.2.s8 %v424
    %v523 = vunpack.c.3.s8 %v424
    %v524 = vunpack.c.0.s8 %v425
    %v525 = vunpack.c.1.s8 %v425
    %v526 = vunpack.c.2.s8 %v425
    %v527 = vunpack.c.3.s8 %v425
    %v528 = vunpack.c.0.s8 %v426
    %v529 = vunpack.c.1.s8 %v426
    %v530 = vunpack.c.2.s8 %v426
    %v531 = vunpack.c.3.s8 %v426
    %v532 = vunpack.c.0.s8 %v427
    %v533 = vunpack.c.1.s8 %v427
    %v534 = vunpack.c.2.s8 %v427
    %v535 = vunpack.c.3.s8 %v427
    %v536 = vunpack.c.0.s8 %v428
    %v537 = vunpack.c.1.s8 %v428
    %v538 = vunpack.c.2.s8 %v428
    %v539 = vunpack.c.3.s8 %v428
    %v540 = vunpack.c.0.s8 %v429
    %v541 = vunpack.c.1.s8 %v429
    %v542 = vunpack.c.2.s8 %v429
    %v543 = vunpack.c.3.s8 %v429
    %v544 = vunpack.c.0.s8 %v430
    %v545 = vunpack.c.1.s8 %v430
    %v546 = vunpack.c.2.s8 %v430
    %v547 = vunpack.c.3.s8 %v430
    %v548 = vunpack.c.0.s8 %v431
    %v549 = vunpack.c.1.s8 %v431
    %v550 = vunpack.c.2.s8 %v431
    %v551 = vunpack.c.3.s8 %v431
    %v552 = vunpack.c.0.s8 %v432
    %v553 = vunpack.c.1.s8 %v432
    %v554 = vunpack.c.2.s8 %v432
    %v555 = vunpack.c.3.s8 %v432
    %v556 = vunpack.c.0.s8 %v433
    %v557 = vunpack.c.1.s8 %v433
    %v558 = vunpack.c.2.s8 %v433
    %v559 = vunpack.c.3.s8 %v433
    %v560 = vunpack.c.0.s8 %v434
    %v561 = vunpack.c.1.s8 %v434
    %v562 = vunpack.c.2.s8 %v434
    %v563 = vunpack.c.3.s8 %v434
    %v564 = vunpack.c.0.s8 %v435
    %v565 = vunpack.c.1.s8 %v435
    %v566 = vunpack.c.2.s8 %v435
    %v567 = vunpack.c.3.s8 %v435
    %v568 = vunpack.c.0.s8 %v436
    %v569 = vunpack.c.1.s8 %v436
    %v570 = vunpack.c.2.s8 %v436
    %v571 = vunpack.c.3.s8 %v436
    %v572 = vunpack.c.0.s8 %v437
    %v573 = vunpack.c.1.s8 %v437
    %v574 = vunpack.c.2.s8 %v437
    %v575 = vunpack.c.3.s8 %v437
    %v576 = vunpack.c.0.s8 %v438
    %v577 = vunpack.c.1.s8 %v438
    %v578 = vunpack.c.2.s8 %v438
    %v579 = vunpack.c.3.s8 %v438
    %v580 = vunpack.c.0.s8 %v439
    %v581 = vunpack.c.1.s8 %v439
    %v582 = vunpack.c.2.s8 %v439
    %v583 = vunpack.c.3.s8 %v439
    %vm584 = vcmp.eq.s32.totalorder %v260, 0
    %vm585 = vcmp.eq.s32.totalorder %v261, 0
    %vm586 = vcmp.eq.s32.totalorder %v262, 0
    %vm587 = vcmp.eq.s32.totalorder %v263, 0
    %vm588 = vcmp.eq.s32.totalorder %v264, 0
    %vm589 = vcmp.eq.s32.totalorder %v265, 0
    %vm590 = vcmp.eq.s32.totalorder %v266, 0
    %vm591 = vcmp.eq.s32.totalorder %v267, 0
    %vm592 = vcmp.eq.s32.totalorder %v268, 0
    %vm593 = vcmp.eq.s32.totalorder %v269, 0
    %vm594 = vcmp.eq.s32.totalorder %v270, 0
    %vm595 = vcmp.eq.s32.totalorder %v271, 0
    %vm596 = vcmp.eq.s32.totalorder %v272, 0
    %vm597 = vcmp.eq.s32.totalorder %v273, 0
    %vm598 = vcmp.eq.s32.totalorder %v274, 0
    %vm599 = vcmp.eq.s32.totalorder %v275, 0
    %vm600 = vcmp.eq.s32.totalorder %v276, 0
    %vm601 = vcmp.eq.s32.totalorder %v277, 0
    %vm602 = vcmp.eq.s32.totalorder %v278, 0
    %vm603 = vcmp.eq.s32.totalorder %v279, 0
    %vm604 = vcmp.eq.s32.totalorder %v280, 0
    %vm605 = vcmp.eq.s32.totalorder %v281, 0
    %vm606 = vcmp.eq.s32.totalorder %v282, 0
    %vm607 = vcmp.eq.s32.totalorder %v283, 0
    %vm608 = vcmp.eq.s32.totalorder %v284, 0
    %vm609 = vcmp.eq.s32.totalorder %v285, 0
    %vm610 = vcmp.eq.s32.totalorder %v286, 0
    %vm611 = vcmp.eq.s32.totalorder %v287, 0
    %vm612 = vcmp.eq.s32.totalorder %v288, 0
    %vm613 = vcmp.eq.s32.totalorder %v289, 0
    %vm614 = vcmp.eq.s32.totalorder %v290, 0
    %vm615 = vcmp.eq.s32.totalorder %v291, 0
    %vm616 = vcmp.eq.s32.totalorder %v292, 0
    %vm617 = vcmp.eq.s32.totalorder %v293, 0
    %vm618 = vcmp.eq.s32.totalorder %v294, 0
    %vm619 = vcmp.eq.s32.totalorder %v295, 0
    %vm620 = vcmp.eq.s32.totalorder %v296, 0
    %vm621 = vcmp.eq.s32.totalorder %v297, 0
    %vm622 = vcmp.eq.s32.totalorder %v298, 0
    %vm623 = vcmp.eq.s32.totalorder %v299, 0
    %vm624 = vcmp.eq.s32.totalorder %v300, 0
    %vm625 = vcmp.eq.s32.totalorder %v301, 0
    %vm626 = vcmp.eq.s32.totalorder %v302, 0
    %vm627 = vcmp.eq.s32.totalorder %v303, 0
    %vm628 = vcmp.eq.s32.totalorder %v304, 0
    %vm629 = vcmp.eq.s32.totalorder %v305, 0
    %vm630 = vcmp.eq.s32.totalorder %v306, 0
    %vm631 = vcmp.eq.s32.totalorder %v307, 0
    %vm632 = vcmp.eq.s32.totalorder %v308, 0
    %vm633 = vcmp.eq.s32.totalorder %v309, 0
    %vm634 = vcmp.eq.s32.totalorder %v310, 0
    %vm635 = vcmp.eq.s32.totalorder %v311, 0
    %vm636 = vcmp.eq.s32.totalorder %v312, 0
    %vm637 = vcmp.eq.s32.totalorder %v313, 0
    %vm638 = vcmp.eq.s32.totalorder %v314, 0
    %vm639 = vcmp.eq.s32.totalorder %v315, 0
    %vm640 = vcmp.eq.s32.totalorder %v316, 0
    %vm641 = vcmp.eq.s32.totalorder %v317, 0
    %vm642 = vcmp.eq.s32.totalorder %v318, 0
    %vm643 = vcmp.eq.s32.totalorder %v319, 0
    %vm644 = vcmp.eq.s32.totalorder %v320, 0
    %vm645 = vcmp.eq.s32.totalorder %v321, 0
    %vm646 = vcmp.eq.s32.totalorder %v322, 0
    %vm647 = vcmp.eq.s32.totalorder %v323, 0
    %vm648 = vcmp.eq.s32.totalorder %v324, 0
    %vm649 = vcmp.eq.s32.totalorder %v325, 0
    %vm650 = vcmp.eq.s32.totalorder %v326, 0
    %vm651 = vcmp.eq.s32.totalorder %v327, 0
    %vm652 = vcmp.eq.s32.totalorder %v328, 0
    %vm653 = vcmp.eq.s32.totalorder %v329, 0
    %vm654 = vcmp.eq.s32.totalorder %v330, 0
    %vm655 = vcmp.eq.s32.totalorder %v331, 0
    %vm656 = vcmp.eq.s32.totalorder %v332, 0
    %vm657 = vcmp.eq.s32.totalorder %v333, 0
    %vm658 = vcmp.eq.s32.totalorder %v334, 0
    %vm659 = vcmp.eq.s32.totalorder %v335, 0
    %vm660 = vcmp.eq.s32.totalorder %v336, 0
    %vm661 = vcmp.eq.s32.totalorder %v337, 0
    %vm662 = vcmp.eq.s32.totalorder %v338, 0
    %vm663 = vcmp.eq.s32.totalorder %v339, 0
    %vm664 = vcmp.eq.s32.totalorder %v340, 0
    %vm665 = vcmp.eq.s32.totalorder %v341, 0
    %vm666 = vcmp.eq.s32.totalorder %v342, 0
    %vm667 = vcmp.eq.s32.totalorder %v343, 0
    %vm668 = vcmp.eq.s32.totalorder %v344, 0
    %vm669 = vcmp.eq.s32.totalorder %v345, 0
    %vm670 = vcmp.eq.s32.totalorder %v346, 0
    %vm671 = vcmp.eq.s32.totalorder %v347, 0
    %vm672 = vcmp.eq.s32.totalorder %v348, 0
    %vm673 = vcmp.eq.s32.totalorder %v349, 0
    %vm674 = vcmp.eq.s32.totalorder %v350, 0
    %vm675 = vcmp.eq.s32.totalorder %v351, 0
    %vm676 = vcmp.eq.s32.totalorder %v352, 0
    %vm677 = vcmp.eq.s32.totalorder %v353, 0
    %vm678 = vcmp.eq.s32.totalorder %v354, 0
    %vm679 = vcmp.eq.s32.totalorder %v355, 0
    %vm680 = vcmp.eq.s32.totalorder %v356, 0
    %vm681 = vcmp.eq.s32.totalorder %v357, 0
    %vm682 = vcmp.eq.s32.totalorder %v358, 0
    %vm683 = vcmp.eq.s32.totalorder %v359, 0
    %vm684 = vcmp.eq.s32.totalorder %v360, 0
    %vm685 = vcmp.eq.s32.totalorder %v361, 0
    %vm686 = vcmp.eq.s32.totalorder %v362, 0
    %vm687 = vcmp.eq.s32.totalorder %v363, 0
    %vm688 = vcmp.eq.s32.totalorder %v364, 0
    %vm689 = vcmp.eq.s32.totalorder %v365, 0
    %vm690 = vcmp.eq.s32.totalorder %v366, 0
    %vm691 = vcmp.eq.s32.totalorder %v367, 0
    %vm692 = vcmp.eq.s32.totalorder %v368, 0
    %vm693 = vcmp.eq.s32.totalorder %v369, 0
    %vm694 = vcmp.eq.s32.totalorder %v370, 0
    %vm695 = vcmp.eq.s32.totalorder %v371, 0
    %vm696 = vcmp.eq.s32.totalorder %v372, 0
    %vm697 = vcmp.eq.s32.totalorder %v373, 0
    %vm698 = vcmp.eq.s32.totalorder %v374, 0
    %vm699 = vcmp.eq.s32.totalorder %v375, 0
    %vm700 = vcmp.eq.s32.totalorder %v376, 0
    %vm701 = vcmp.eq.s32.totalorder %v377, 0
    %vm702 = vcmp.eq.s32.totalorder %v378, 0
    %vm703 = vcmp.eq.s32.totalorder %v379, 0
    %vm704 = vcmp.eq.s32.totalorder %v380, 0
    %vm705 = vcmp.eq.s32.totalorder %v381, 0
    %vm706 = vcmp.eq.s32.totalorder %v382, 0
    %vm707 = vcmp.eq.s32.totalorder %v383, 0
    %vm708 = vcmp.eq.s32.totalorder %v384, 0
    %vm709 = vcmp.eq.s32.totalorder %v385, 0
    %vm710 = vcmp.eq.s32.totalorder %v386, 0
    %vm711 = vcmp.eq.s32.totalorder %v387, 0
    %vm712 = vcmp.eq.s32.totalorder %v388, 0
    %vm713 = vcmp.eq.s32.totalorder %v389, 0
    %vm714 = vcmp.eq.s32.totalorder %v390, 0
    %vm715 = vcmp.eq.s32.totalorder %v391, 0
    %vm716 = vcmp.eq.s32.totalorder %v392, 0
    %vm717 = vcmp.eq.s32.totalorder %v393, 0
    %vm718 = vcmp.eq.s32.totalorder %v394, 0
    %vm719 = vcmp.eq.s32.totalorder %v395, 0
    %vm720 = vcmp.eq.s32.totalorder %v396, 0
    %vm721 = vcmp.eq.s32.totalorder %v397, 0
    %vm722 = vcmp.eq.s32.totalorder %v398, 0
    %vm723 = vcmp.eq.s32.totalorder %v399, 0
    %vm724 = vcmp.eq.s32.totalorder %v400, 0
    %vm725 = vcmp.eq.s32.totalorder %v401, 0
    %vm726 = vcmp.eq.s32.totalorder %v402, 0
    %vm727 = vcmp.eq.s32.totalorder %v403, 0
    %vm728 = vcmp.eq.s32.totalorder %v260, 1
    %vm729 = vcmp.eq.s32.totalorder %v261, 1
    %vm730 = vcmp.eq.s32.totalorder %v262, 1
    %vm731 = vcmp.eq.s32.totalorder %v263, 1
    %vm732 = vcmp.eq.s32.totalorder %v264, 1
    %vm733 = vcmp.eq.s32.totalorder %v265, 1
    %vm734 = vcmp.eq.s32.totalorder %v266, 1
    %vm735 = vcmp.eq.s32.totalorder %v267, 1
    %vm736 = vcmp.eq.s32.totalorder %v268, 1
    %vm737 = vcmp.eq.s32.totalorder %v269, 1
    %vm738 = vcmp.eq.s32.totalorder %v270, 1
    %vm739 = vcmp.eq.s32.totalorder %v271, 1
    %vm740 = vcmp.eq.s32.totalorder %v272, 1
    %vm741 = vcmp.eq.s32.totalorder %v273, 1
    %vm742 = vcmp.eq.s32.totalorder %v274, 1
    %vm743 = vcmp.eq.s32.totalorder %v275, 1
    %vm744 = vcmp.eq.s32.totalorder %v276, 1
    %vm745 = vcmp.eq.s32.totalorder %v277, 1
    %vm746 = vcmp.eq.s32.totalorder %v278, 1
    %vm747 = vcmp.eq.s32.totalorder %v279, 1
    %vm748 = vcmp.eq.s32.totalorder %v280, 1
    %vm749 = vcmp.eq.s32.totalorder %v281, 1
    %vm750 = vcmp.eq.s32.totalorder %v282, 1
    %vm751 = vcmp.eq.s32.totalorder %v283, 1
    %vm752 = vcmp.eq.s32.totalorder %v284, 1
    %vm753 = vcmp.eq.s32.totalorder %v285, 1
    %vm754 = vcmp.eq.s32.totalorder %v286, 1
    %vm755 = vcmp.eq.s32.totalorder %v287, 1
    %vm756 = vcmp.eq.s32.totalorder %v288, 1
    %vm757 = vcmp.eq.s32.totalorder %v289, 1
    %vm758 = vcmp.eq.s32.totalorder %v290, 1
    %vm759 = vcmp.eq.s32.totalorder %v291, 1
    %vm760 = vcmp.eq.s32.totalorder %v292, 1
    %vm761 = vcmp.eq.s32.totalorder %v293, 1
    %vm762 = vcmp.eq.s32.totalorder %v294, 1
    %vm763 = vcmp.eq.s32.totalorder %v295, 1
    %vm764 = vcmp.eq.s32.totalorder %v296, 1
    %vm765 = vcmp.eq.s32.totalorder %v297, 1
    %vm766 = vcmp.eq.s32.totalorder %v298, 1
    %vm767 = vcmp.eq.s32.totalorder %v299, 1
    %vm768 = vcmp.eq.s32.totalorder %v300, 1
    %vm769 = vcmp.eq.s32.totalorder %v301, 1
    %vm770 = vcmp.eq.s32.totalorder %v302, 1
    %vm771 = vcmp.eq.s32.totalorder %v303, 1
    %vm772 = vcmp.eq.s32.totalorder %v304, 1
    %vm773 = vcmp.eq.s32.totalorder %v305, 1
    %vm774 = vcmp.eq.s32.totalorder %v306, 1
    %vm775 = vcmp.eq.s32.totalorder %v307, 1
    %vm776 = vcmp.eq.s32.totalorder %v308, 1
    %vm777 = vcmp.eq.s32.totalorder %v309, 1
    %vm778 = vcmp.eq.s32.totalorder %v310, 1
    %vm779 = vcmp.eq.s32.totalorder %v311, 1
    %vm780 = vcmp.eq.s32.totalorder %v312, 1
    %vm781 = vcmp.eq.s32.totalorder %v313, 1
    %vm782 = vcmp.eq.s32.totalorder %v314, 1
    %vm783 = vcmp.eq.s32.totalorder %v315, 1
    %vm784 = vcmp.eq.s32.totalorder %v316, 1
    %vm785 = vcmp.eq.s32.totalorder %v317, 1
    %vm786 = vcmp.eq.s32.totalorder %v318, 1
    %vm787 = vcmp.eq.s32.totalorder %v319, 1
    %vm788 = vcmp.eq.s32.totalorder %v320, 1
    %vm789 = vcmp.eq.s32.totalorder %v321, 1
    %vm790 = vcmp.eq.s32.totalorder %v322, 1
    %vm791 = vcmp.eq.s32.totalorder %v323, 1
    %vm792 = vcmp.eq.s32.totalorder %v324, 1
    %vm793 = vcmp.eq.s32.totalorder %v325, 1
    %vm794 = vcmp.eq.s32.totalorder %v326, 1
    %vm795 = vcmp.eq.s32.totalorder %v327, 1
    %vm796 = vcmp.eq.s32.totalorder %v328, 1
    %vm797 = vcmp.eq.s32.totalorder %v329, 1
    %vm798 = vcmp.eq.s32.totalorder %v330, 1
    %vm799 = vcmp.eq.s32.totalorder %v331, 1
    %vm800 = vcmp.eq.s32.totalorder %v332, 1
    %vm801 = vcmp.eq.s32.totalorder %v333, 1
    %vm802 = vcmp.eq.s32.totalorder %v334, 1
    %vm803 = vcmp.eq.s32.totalorder %v335, 1
    %vm804 = vcmp.eq.s32.totalorder %v336, 1
    %vm805 = vcmp.eq.s32.totalorder %v337, 1
    %vm806 = vcmp.eq.s32.totalorder %v338, 1
    %vm807 = vcmp.eq.s32.totalorder %v339, 1
    %vm808 = vcmp.eq.s32.totalorder %v340, 1
    %vm809 = vcmp.eq.s32.totalorder %v341, 1
    %vm810 = vcmp.eq.s32.totalorder %v342, 1
    %vm811 = vcmp.eq.s32.totalorder %v343, 1
    %vm812 = vcmp.eq.s32.totalorder %v344, 1
    %vm813 = vcmp.eq.s32.totalorder %v345, 1
    %vm814 = vcmp.eq.s32.totalorder %v346, 1
    %vm815 = vcmp.eq.s32.totalorder %v347, 1
    %vm816 = vcmp.eq.s32.totalorder %v348, 1
    %vm817 = vcmp.eq.s32.totalorder %v349, 1
    %vm818 = vcmp.eq.s32.totalorder %v350, 1
    %vm819 = vcmp.eq.s32.totalorder %v351, 1
    %vm820 = vcmp.eq.s32.totalorder %v352, 1
    %vm821 = vcmp.eq.s32.totalorder %v353, 1
    %vm822 = vcmp.eq.s32.totalorder %v354, 1
    %vm823 = vcmp.eq.s32.totalorder %v355, 1
    %vm824 = vcmp.eq.s32.totalorder %v356, 1
    %vm825 = vcmp.eq.s32.totalorder %v357, 1
    %vm826 = vcmp.eq.s32.totalorder %v358, 1
    %vm827 = vcmp.eq.s32.totalorder %v359, 1
    %vm828 = vcmp.eq.s32.totalorder %v360, 1
    %vm829 = vcmp.eq.s32.totalorder %v361, 1
    %vm830 = vcmp.eq.s32.totalorder %v362, 1
    %vm831 = vcmp.eq.s32.totalorder %v363, 1
    %vm832 = vcmp.eq.s32.totalorder %v364, 1
    %vm833 = vcmp.eq.s32.totalorder %v365, 1
    %vm834 = vcmp.eq.s32.totalorder %v366, 1
    %vm835 = vcmp.eq.s32.totalorder %v367, 1
    %vm836 = vcmp.eq.s32.totalorder %v368, 1
    %vm837 = vcmp.eq.s32.totalorder %v369, 1
    %vm838 = vcmp.eq.s32.totalorder %v370, 1
    %vm839 = vcmp.eq.s32.totalorder %v371, 1
    %vm840 = vcmp.eq.s32.totalorder %v372, 1
    %vm841 = vcmp.eq.s32.totalorder %v373, 1
    %vm842 = vcmp.eq.s32.totalorder %v374, 1
    %vm843 = vcmp.eq.s32.totalorder %v375, 1
    %vm844 = vcmp.eq.s32.totalorder %v376, 1
    %vm845 = vcmp.eq.s32.totalorder %v377, 1
    %vm846 = vcmp.eq.s32.totalorder %v378, 1
    %vm847 = vcmp.eq.s32.totalorder %v379, 1
    %vm848 = vcmp.eq.s32.totalorder %v380, 1
    %vm849 = vcmp.eq.s32.totalorder %v381, 1
    %vm850 = vcmp.eq.s32.totalorder %v382, 1
    %vm851 = vcmp.eq.s32.totalorder %v383, 1
    %vm852 = vcmp.eq.s32.totalorder %v384, 1
    %vm853 = vcmp.eq.s32.totalorder %v385, 1
    %vm854 = vcmp.eq.s32.totalorder %v386, 1
    %vm855 = vcmp.eq.s32.totalorder %v387, 1
    %vm856 = vcmp.eq.s32.totalorder %v388, 1
    %vm857 = vcmp.eq.s32.totalorder %v389, 1
    %vm858 = vcmp.eq.s32.totalorder %v390, 1
    %vm859 = vcmp.eq.s32.totalorder %v391, 1
    %vm860 = vcmp.eq.s32.totalorder %v392, 1
    %vm861 = vcmp.eq.s32.totalorder %v393, 1
    %vm862 = vcmp.eq.s32.totalorder %v394, 1
    %vm863 = vcmp.eq.s32.totalorder %v395, 1
    %vm864 = vcmp.eq.s32.totalorder %v396, 1
    %vm865 = vcmp.eq.s32.totalorder %v397, 1
    %vm866 = vcmp.eq.s32.totalorder %v398, 1
    %vm867 = vcmp.eq.s32.totalorder %v399, 1
    %vm868 = vcmp.eq.s32.totalorder %v400, 1
    %vm869 = vcmp.eq.s32.totalorder %v401, 1
    %vm870 = vcmp.eq.s32.totalorder %v402, 1
    %vm871 = vcmp.eq.s32.totalorder %v403, 1
    %vm872 = vcmp.eq.s32.totalorder %v260, 2
    %vm873 = vcmp.eq.s32.totalorder %v261, 2
    %vm874 = vcmp.eq.s32.totalorder %v262, 2
    %vm875 = vcmp.eq.s32.totalorder %v263, 2
    %vm876 = vcmp.eq.s32.totalorder %v264, 2
    %vm877 = vcmp.eq.s32.totalorder %v265, 2
    %vm878 = vcmp.eq.s32.totalorder %v266, 2
    %vm879 = vcmp.eq.s32.totalorder %v267, 2
    %vm880 = vcmp.eq.s32.totalorder %v268, 2
    %vm881 = vcmp.eq.s32.totalorder %v269, 2
    %vm882 = vcmp.eq.s32.totalorder %v270, 2
    %vm883 = vcmp.eq.s32.totalorder %v271, 2
    %vm884 = vcmp.eq.s32.totalorder %v272, 2
    %vm885 = vcmp.eq.s32.totalorder %v273, 2
    %vm886 = vcmp.eq.s32.totalorder %v274, 2
    %vm887 = vcmp.eq.s32.totalorder %v275, 2
    %vm888 = vcmp.eq.s32.totalorder %v276, 2
    %vm889 = vcmp.eq.s32.totalorder %v277, 2
    %vm890 = vcmp.eq.s32.totalorder %v278, 2
    %vm891 = vcmp.eq.s32.totalorder %v279, 2
    %vm892 = vcmp.eq.s32.totalorder %v280, 2
    %vm893 = vcmp.eq.s32.totalorder %v281, 2
    %vm894 = vcmp.eq.s32.totalorder %v282, 2
    %vm895 = vcmp.eq.s32.totalorder %v283, 2
    %vm896 = vcmp.eq.s32.totalorder %v284, 2
    %vm897 = vcmp.eq.s32.totalorder %v285, 2
    %vm898 = vcmp.eq.s32.totalorder %v286, 2
    %vm899 = vcmp.eq.s32.totalorder %v287, 2
    %vm900 = vcmp.eq.s32.totalorder %v288, 2
    %vm901 = vcmp.eq.s32.totalorder %v289, 2
    %vm902 = vcmp.eq.s32.totalorder %v290, 2
    %vm903 = vcmp.eq.s32.totalorder %v291, 2
    %vm904 = vcmp.eq.s32.totalorder %v292, 2
    %vm905 = vcmp.eq.s32.totalorder %v293, 2
    %vm906 = vcmp.eq.s32.totalorder %v294, 2
    %vm907 = vcmp.eq.s32.totalorder %v295, 2
    %vm908 = vcmp.eq.s32.totalorder %v296, 2
    %vm909 = vcmp.eq.s32.totalorder %v297, 2
    %vm910 = vcmp.eq.s32.totalorder %v298, 2
    %vm911 = vcmp.eq.s32.totalorder %v299, 2
    %vm912 = vcmp.eq.s32.totalorder %v300, 2
    %vm913 = vcmp.eq.s32.totalorder %v301, 2
    %vm914 = vcmp.eq.s32.totalorder %v302, 2
    %vm915 = vcmp.eq.s32.totalorder %v303, 2
    %vm916 = vcmp.eq.s32.totalorder %v304, 2
    %vm917 = vcmp.eq.s32.totalorder %v305, 2
    %vm918 = vcmp.eq.s32.totalorder %v306, 2
    %vm919 = vcmp.eq.s32.totalorder %v307, 2
    %vm920 = vcmp.eq.s32.totalorder %v308, 2
    %vm921 = vcmp.eq.s32.totalorder %v309, 2
    %vm922 = vcmp.eq.s32.totalorder %v310, 2
    %vm923 = vcmp.eq.s32.totalorder %v311, 2
    %vm924 = vcmp.eq.s32.totalorder %v312, 2
    %vm925 = vcmp.eq.s32.totalorder %v313, 2
    %vm926 = vcmp.eq.s32.totalorder %v314, 2
    %vm927 = vcmp.eq.s32.totalorder %v315, 2
    %vm928 = vcmp.eq.s32.totalorder %v316, 2
    %vm929 = vcmp.eq.s32.totalorder %v317, 2
    %vm930 = vcmp.eq.s32.totalorder %v318, 2
    %vm931 = vcmp.eq.s32.totalorder %v319, 2
    %vm932 = vcmp.eq.s32.totalorder %v320, 2
    %vm933 = vcmp.eq.s32.totalorder %v321, 2
    %vm934 = vcmp.eq.s32.totalorder %v322, 2
    %vm935 = vcmp.eq.s32.totalorder %v323, 2
    %vm936 = vcmp.eq.s32.totalorder %v324, 2
    %vm937 = vcmp.eq.s32.totalorder %v325, 2
    %vm938 = vcmp.eq.s32.totalorder %v326, 2
    %vm939 = vcmp.eq.s32.totalorder %v327, 2
    %vm940 = vcmp.eq.s32.totalorder %v328, 2
    %vm941 = vcmp.eq.s32.totalorder %v329, 2
    %vm942 = vcmp.eq.s32.totalorder %v330, 2
    %vm943 = vcmp.eq.s32.totalorder %v331, 2
    %vm944 = vcmp.eq.s32.totalorder %v332, 2
    %vm945 = vcmp.eq.s32.totalorder %v333, 2
    %vm946 = vcmp.eq.s32.totalorder %v334, 2
    %vm947 = vcmp.eq.s32.totalorder %v335, 2
    %vm948 = vcmp.eq.s32.totalorder %v336, 2
    %vm949 = vcmp.eq.s32.totalorder %v337, 2
    %vm950 = vcmp.eq.s32.totalorder %v338, 2
    %vm951 = vcmp.eq.s32.totalorder %v339, 2
    %vm952 = vcmp.eq.s32.totalorder %v340, 2
    %vm953 = vcmp.eq.s32.totalorder %v341, 2
    %vm954 = vcmp.eq.s32.totalorder %v342, 2
    %vm955 = vcmp.eq.s32.totalorder %v343, 2
    %vm956 = vcmp.eq.s32.totalorder %v344, 2
    %vm957 = vcmp.eq.s32.totalorder %v345, 2
    %vm958 = vcmp.eq.s32.totalorder %v346, 2
    %vm959 = vcmp.eq.s32.totalorder %v347, 2
    %vm960 = vcmp.eq.s32.totalorder %v348, 2
    %vm961 = vcmp.eq.s32.totalorder %v349, 2
    %vm962 = vcmp.eq.s32.totalorder %v350, 2
    %vm963 = vcmp.eq.s32.totalorder %v351, 2
    %vm964 = vcmp.eq.s32.totalorder %v352, 2
    %vm965 = vcmp.eq.s32.totalorder %v353, 2
    %vm966 = vcmp.eq.s32.totalorder %v354, 2
    %vm967 = vcmp.eq.s32.totalorder %v355, 2
    %vm968 = vcmp.eq.s32.totalorder %v356, 2
    %vm969 = vcmp.eq.s32.totalorder %v357, 2
    %vm970 = vcmp.eq.s32.totalorder %v358, 2
    %vm971 = vcmp.eq.s32.totalorder %v359, 2
    %vm972 = vcmp.eq.s32.totalorder %v360, 2
    %vm973 = vcmp.eq.s32.totalorder %v361, 2
    %vm974 = vcmp.eq.s32.totalorder %v362, 2
    %vm975 = vcmp.eq.s32.totalorder %v363, 2
    %vm976 = vcmp.eq.s32.totalorder %v364, 2
    %vm977 = vcmp.eq.s32.totalorder %v365, 2
    %vm978 = vcmp.eq.s32.totalorder %v366, 2
    %vm979 = vcmp.eq.s32.totalorder %v367, 2
    %vm980 = vcmp.eq.s32.totalorder %v368, 2
    %vm981 = vcmp.eq.s32.totalorder %v369, 2
    %vm982 = vcmp.eq.s32.totalorder %v370, 2
    %vm983 = vcmp.eq.s32.totalorder %v371, 2
    %vm984 = vcmp.eq.s32.totalorder %v372, 2
    %vm985 = vcmp.eq.s32.totalorder %v373, 2
    %vm986 = vcmp.eq.s32.totalorder %v374, 2
    %vm987 = vcmp.eq.s32.totalorder %v375, 2
    %vm988 = vcmp.eq.s32.totalorder %v376, 2
    %vm989 = vcmp.eq.s32.totalorder %v377, 2
    %vm990 = vcmp.eq.s32.totalorder %v378, 2
    %vm991 = vcmp.eq.s32.totalorder %v379, 2
    %vm992 = vcmp.eq.s32.totalorder %v380, 2
    %vm993 = vcmp.eq.s32.totalorder %v381, 2
    %vm994 = vcmp.eq.s32.totalorder %v382, 2
    %vm995 = vcmp.eq.s32.totalorder %v383, 2
    %vm996 = vcmp.eq.s32.totalorder %v384, 2
    %vm997 = vcmp.eq.s32.totalorder %v385, 2
    %vm998 = vcmp.eq.s32.totalorder %v386, 2
    %vm999 = vcmp.eq.s32.totalorder %v387, 2
    %vm1000 = vcmp.eq.s32.totalorder %v388, 2
    %vm1001 = vcmp.eq.s32.totalorder %v389, 2
    %vm1002 = vcmp.eq.s32.totalorder %v390, 2
    %vm1003 = vcmp.eq.s32.totalorder %v391, 2
    %vm1004 = vcmp.eq.s32.totalorder %v392, 2
    %vm1005 = vcmp.eq.s32.totalorder %v393, 2
    %vm1006 = vcmp.eq.s32.totalorder %v394, 2
    %vm1007 = vcmp.eq.s32.totalorder %v395, 2
    %vm1008 = vcmp.eq.s32.totalorder %v396, 2
    %vm1009 = vcmp.eq.s32.totalorder %v397, 2
    %vm1010 = vcmp.eq.s32.totalorder %v398, 2
    %vm1011 = vcmp.eq.s32.totalorder %v399, 2
    %vm1012 = vcmp.eq.s32.totalorder %v400, 2
    %vm1013 = vcmp.eq.s32.totalorder %v401, 2
    %vm1014 = vcmp.eq.s32.totalorder %v402, 2
    %vm1015 = vcmp.eq.s32.totalorder %v403, 2
    %vm1016 = vcmp.eq.s32.totalorder %v260, 3
    %vm1017 = vcmp.eq.s32.totalorder %v261, 3
    %vm1018 = vcmp.eq.s32.totalorder %v262, 3
    %vm1019 = vcmp.eq.s32.totalorder %v263, 3
    %vm1020 = vcmp.eq.s32.totalorder %v264, 3
    %vm1021 = vcmp.eq.s32.totalorder %v265, 3
    %vm1022 = vcmp.eq.s32.totalorder %v266, 3
    %vm1023 = vcmp.eq.s32.totalorder %v267, 3
    %vm1024 = vcmp.eq.s32.totalorder %v268, 3
    %vm1025 = vcmp.eq.s32.totalorder %v269, 3
    %vm1026 = vcmp.eq.s32.totalorder %v270, 3
    %vm1027 = vcmp.eq.s32.totalorder %v271, 3
    %vm1028 = vcmp.eq.s32.totalorder %v272, 3
    %vm1029 = vcmp.eq.s32.totalorder %v273, 3
    %vm1030 = vcmp.eq.s32.totalorder %v274, 3
    %vm1031 = vcmp.eq.s32.totalorder %v275, 3
    %vm1032 = vcmp.eq.s32.totalorder %v276, 3
    %vm1033 = vcmp.eq.s32.totalorder %v277, 3
    %vm1034 = vcmp.eq.s32.totalorder %v278, 3
    %vm1035 = vcmp.eq.s32.totalorder %v279, 3
    %vm1036 = vcmp.eq.s32.totalorder %v280, 3
    %vm1037 = vcmp.eq.s32.totalorder %v281, 3
    %vm1038 = vcmp.eq.s32.totalorder %v282, 3
    %vm1039 = vcmp.eq.s32.totalorder %v283, 3
    %vm1040 = vcmp.eq.s32.totalorder %v284, 3
    %vm1041 = vcmp.eq.s32.totalorder %v285, 3
    %vm1042 = vcmp.eq.s32.totalorder %v286, 3
    %vm1043 = vcmp.eq.s32.totalorder %v287, 3
    %vm1044 = vcmp.eq.s32.totalorder %v288, 3
    %vm1045 = vcmp.eq.s32.totalorder %v289, 3
    %vm1046 = vcmp.eq.s32.totalorder %v290, 3
    %vm1047 = vcmp.eq.s32.totalorder %v291, 3
    %vm1048 = vcmp.eq.s32.totalorder %v292, 3
    %vm1049 = vcmp.eq.s32.totalorder %v293, 3
    %vm1050 = vcmp.eq.s32.totalorder %v294, 3
    %vm1051 = vcmp.eq.s32.totalorder %v295, 3
    %vm1052 = vcmp.eq.s32.totalorder %v296, 3
    %vm1053 = vcmp.eq.s32.totalorder %v297, 3
    %vm1054 = vcmp.eq.s32.totalorder %v298, 3
    %vm1055 = vcmp.eq.s32.totalorder %v299, 3
    %vm1056 = vcmp.eq.s32.totalorder %v300, 3
    %vm1057 = vcmp.eq.s32.totalorder %v301, 3
    %vm1058 = vcmp.eq.s32.totalorder %v302, 3
    %vm1059 = vcmp.eq.s32.totalorder %v303, 3
    %vm1060 = vcmp.eq.s32.totalorder %v304, 3
    %vm1061 = vcmp.eq.s32.totalorder %v305, 3
    %vm1062 = vcmp.eq.s32.totalorder %v306, 3
    %vm1063 = vcmp.eq.s32.totalorder %v307, 3
    %vm1064 = vcmp.eq.s32.totalorder %v308, 3
    %vm1065 = vcmp.eq.s32.totalorder %v309, 3
    %vm1066 = vcmp.eq.s32.totalorder %v310, 3
    %vm1067 = vcmp.eq.s32.totalorder %v311, 3
    %vm1068 = vcmp.eq.s32.totalorder %v312, 3
    %vm1069 = vcmp.eq.s32.totalorder %v313, 3
    %vm1070 = vcmp.eq.s32.totalorder %v314, 3
    %vm1071 = vcmp.eq.s32.totalorder %v315, 3
    %vm1072 = vcmp.eq.s32.totalorder %v316, 3
    %vm1073 = vcmp.eq.s32.totalorder %v317, 3
    %vm1074 = vcmp.eq.s32.totalorder %v318, 3
    %vm1075 = vcmp.eq.s32.totalorder %v319, 3
    %vm1076 = vcmp.eq.s32.totalorder %v320, 3
    %vm1077 = vcmp.eq.s32.totalorder %v321, 3
    %vm1078 = vcmp.eq.s32.totalorder %v322, 3
    %vm1079 = vcmp.eq.s32.totalorder %v323, 3
    %vm1080 = vcmp.eq.s32.totalorder %v324, 3
    %vm1081 = vcmp.eq.s32.totalorder %v325, 3
    %vm1082 = vcmp.eq.s32.totalorder %v326, 3
    %vm1083 = vcmp.eq.s32.totalorder %v327, 3
    %vm1084 = vcmp.eq.s32.totalorder %v328, 3
    %vm1085 = vcmp.eq.s32.totalorder %v329, 3
    %vm1086 = vcmp.eq.s32.totalorder %v330, 3
    %vm1087 = vcmp.eq.s32.totalorder %v331, 3
    %vm1088 = vcmp.eq.s32.totalorder %v332, 3
    %vm1089 = vcmp.eq.s32.totalorder %v333, 3
    %vm1090 = vcmp.eq.s32.totalorder %v334, 3
    %vm1091 = vcmp.eq.s32.totalorder %v335, 3
    %vm1092 = vcmp.eq.s32.totalorder %v336, 3
    %vm1093 = vcmp.eq.s32.totalorder %v337, 3
    %vm1094 = vcmp.eq.s32.totalorder %v338, 3
    %vm1095 = vcmp.eq.s32.totalorder %v339, 3
    %vm1096 = vcmp.eq.s32.totalorder %v340, 3
    %vm1097 = vcmp.eq.s32.totalorder %v341, 3
    %vm1098 = vcmp.eq.s32.totalorder %v342, 3
    %vm1099 = vcmp.eq.s32.totalorder %v343, 3
    %vm1100 = vcmp.eq.s32.totalorder %v344, 3
    %vm1101 = vcmp.eq.s32.totalorder %v345, 3
    %vm1102 = vcmp.eq.s32.totalorder %v346, 3
    %vm1103 = vcmp.eq.s32.totalorder %v347, 3
    %vm1104 = vcmp.eq.s32.totalorder %v348, 3
    %vm1105 = vcmp.eq.s32.totalorder %v349, 3
    %vm1106 = vcmp.eq.s32.totalorder %v350, 3
    %vm1107 = vcmp.eq.s32.totalorder %v351, 3
    %vm1108 = vcmp.eq.s32.totalorder %v352, 3
    %vm1109 = vcmp.eq.s32.totalorder %v353, 3
    %vm1110 = vcmp.eq.s32.totalorder %v354, 3
    %vm1111 = vcmp.eq.s32.totalorder %v355, 3
    %vm1112 = vcmp.eq.s32.totalorder %v356, 3
    %vm1113 = vcmp.eq.s32.totalorder %v357, 3
    %vm1114 = vcmp.eq.s32.totalorder %v358, 3
    %vm1115 = vcmp.eq.s32.totalorder %v359, 3
    %vm1116 = vcmp.eq.s32.totalorder %v360, 3
    %vm1117 = vcmp.eq.s32.totalorder %v361, 3
    %vm1118 = vcmp.eq.s32.totalorder %v362, 3
    %vm1119 = vcmp.eq.s32.totalorder %v363, 3
    %vm1120 = vcmp.eq.s32.totalorder %v364, 3
    %vm1121 = vcmp.eq.s32.totalorder %v365, 3
    %vm1122 = vcmp.eq.s32.totalorder %v366, 3
    %vm1123 = vcmp.eq.s32.totalorder %v367, 3
    %vm1124 = vcmp.eq.s32.totalorder %v368, 3
    %vm1125 = vcmp.eq.s32.totalorder %v369, 3
    %vm1126 = vcmp.eq.s32.totalorder %v370, 3
    %vm1127 = vcmp.eq.s32.totalorder %v371, 3
    %vm1128 = vcmp.eq.s32.totalorder %v372, 3
    %vm1129 = vcmp.eq.s32.totalorder %v373, 3
    %vm1130 = vcmp.eq.s32.totalorder %v374, 3
    %vm1131 = vcmp.eq.s32.totalorder %v375, 3
    %vm1132 = vcmp.eq.s32.totalorder %v376, 3
    %vm1133 = vcmp.eq.s32.totalorder %v377, 3
    %vm1134 = vcmp.eq.s32.totalorder %v378, 3
    %vm1135 = vcmp.eq.s32.totalorder %v379, 3
    %vm1136 = vcmp.eq.s32.totalorder %v380, 3
    %vm1137 = vcmp.eq.s32.totalorder %v381, 3
    %vm1138 = vcmp.eq.s32.totalorder %v382, 3
    %vm1139 = vcmp.eq.s32.totalorder %v383, 3
    %vm1140 = vcmp.eq.s32.totalorder %v384, 3
    %vm1141 = vcmp.eq.s32.totalorder %v385, 3
    %vm1142 = vcmp.eq.s32.totalorder %v386, 3
    %vm1143 = vcmp.eq.s32.totalorder %v387, 3
    %vm1144 = vcmp.eq.s32.totalorder %v388, 3
    %vm1145 = vcmp.eq.s32.totalorder %v389, 3
    %vm1146 = vcmp.eq.s32.totalorder %v390, 3
    %vm1147 = vcmp.eq.s32.totalorder %v391, 3
    %vm1148 = vcmp.eq.s32.totalorder %v392, 3
    %vm1149 = vcmp.eq.s32.totalorder %v393, 3
    %vm1150 = vcmp.eq.s32.totalorder %v394, 3
    %vm1151 = vcmp.eq.s32.totalorder %v395, 3
    %vm1152 = vcmp.eq.s32.totalorder %v396, 3
    %vm1153 = vcmp.eq.s32.totalorder %v397, 3
    %vm1154 = vcmp.eq.s32.totalorder %v398, 3
    %vm1155 = vcmp.eq.s32.totalorder %v399, 3
    %vm1156 = vcmp.eq.s32.totalorder %v400, 3
    %vm1157 = vcmp.eq.s32.totalorder %v401, 3
    %vm1158 = vcmp.eq.s32.totalorder %v402, 3
    %vm1159 = vcmp.eq.s32.totalorder %v403, 3
    %vm1160 = vcmp.eq.s32.totalorder %v260, 4
    %vm1161 = vcmp.eq.s32.totalorder %v261, 4
    %vm1162 = vcmp.eq.s32.totalorder %v262, 4
    %vm1163 = vcmp.eq.s32.totalorder %v263, 4
    %vm1164 = vcmp.eq.s32.totalorder %v264, 4
    %vm1165 = vcmp.eq.s32.totalorder %v265, 4
    %vm1166 = vcmp.eq.s32.totalorder %v266, 4
    %vm1167 = vcmp.eq.s32.totalorder %v267, 4
    %vm1168 = vcmp.eq.s32.totalorder %v268, 4
    %vm1169 = vcmp.eq.s32.totalorder %v269, 4
    %vm1170 = vcmp.eq.s32.totalorder %v270, 4
    %vm1171 = vcmp.eq.s32.totalorder %v271, 4
    %vm1172 = vcmp.eq.s32.totalorder %v272, 4
    %vm1173 = vcmp.eq.s32.totalorder %v273, 4
    %vm1174 = vcmp.eq.s32.totalorder %v274, 4
    %vm1175 = vcmp.eq.s32.totalorder %v275, 4
    %vm1176 = vcmp.eq.s32.totalorder %v276, 4
    %vm1177 = vcmp.eq.s32.totalorder %v277, 4
    %vm1178 = vcmp.eq.s32.totalorder %v278, 4
    %vm1179 = vcmp.eq.s32.totalorder %v279, 4
    %vm1180 = vcmp.eq.s32.totalorder %v280, 4
    %vm1181 = vcmp.eq.s32.totalorder %v281, 4
    %vm1182 = vcmp.eq.s32.totalorder %v282, 4
    %vm1183 = vcmp.eq.s32.totalorder %v283, 4
    %vm1184 = vcmp.eq.s32.totalorder %v284, 4
    %vm1185 = vcmp.eq.s32.totalorder %v285, 4
    %vm1186 = vcmp.eq.s32.totalorder %v286, 4
    %vm1187 = vcmp.eq.s32.totalorder %v287, 4
    %vm1188 = vcmp.eq.s32.totalorder %v288, 4
    %vm1189 = vcmp.eq.s32.totalorder %v289, 4
    %vm1190 = vcmp.eq.s32.totalorder %v290, 4
    %vm1191 = vcmp.eq.s32.totalorder %v291, 4
    %vm1192 = vcmp.eq.s32.totalorder %v292, 4
    %vm1193 = vcmp.eq.s32.totalorder %v293, 4
    %vm1194 = vcmp.eq.s32.totalorder %v294, 4
    %vm1195 = vcmp.eq.s32.totalorder %v295, 4
    %vm1196 = vcmp.eq.s32.totalorder %v296, 4
    %vm1197 = vcmp.eq.s32.totalorder %v297, 4
    %vm1198 = vcmp.eq.s32.totalorder %v298, 4
    %vm1199 = vcmp.eq.s32.totalorder %v299, 4
    %vm1200 = vcmp.eq.s32.totalorder %v300, 4
    %vm1201 = vcmp.eq.s32.totalorder %v301, 4
    %vm1202 = vcmp.eq.s32.totalorder %v302, 4
    %vm1203 = vcmp.eq.s32.totalorder %v303, 4
    %vm1204 = vcmp.eq.s32.totalorder %v304, 4
    %vm1205 = vcmp.eq.s32.totalorder %v305, 4
    %vm1206 = vcmp.eq.s32.totalorder %v306, 4
    %vm1207 = vcmp.eq.s32.totalorder %v307, 4
    %vm1208 = vcmp.eq.s32.totalorder %v308, 4
    %vm1209 = vcmp.eq.s32.totalorder %v309, 4
    %vm1210 = vcmp.eq.s32.totalorder %v310, 4
    %vm1211 = vcmp.eq.s32.totalorder %v311, 4
    %vm1212 = vcmp.eq.s32.totalorder %v312, 4
    %vm1213 = vcmp.eq.s32.totalorder %v313, 4
    %vm1214 = vcmp.eq.s32.totalorder %v314, 4
    %vm1215 = vcmp.eq.s32.totalorder %v315, 4
    %vm1216 = vcmp.eq.s32.totalorder %v316, 4
    %vm1217 = vcmp.eq.s32.totalorder %v317, 4
    %vm1218 = vcmp.eq.s32.totalorder %v318, 4
    %vm1219 = vcmp.eq.s32.totalorder %v319, 4
    %vm1220 = vcmp.eq.s32.totalorder %v320, 4
    %vm1221 = vcmp.eq.s32.totalorder %v321, 4
    %vm1222 = vcmp.eq.s32.totalorder %v322, 4
    %vm1223 = vcmp.eq.s32.totalorder %v323, 4
    %vm1224 = vcmp.eq.s32.totalorder %v324, 4
    %vm1225 = vcmp.eq.s32.totalorder %v325, 4
    %vm1226 = vcmp.eq.s32.totalorder %v326, 4
    %vm1227 = vcmp.eq.s32.totalorder %v327, 4
    %vm1228 = vcmp.eq.s32.totalorder %v328, 4
    %vm1229 = vcmp.eq.s32.totalorder %v329, 4
    %vm1230 = vcmp.eq.s32.totalorder %v330, 4
    %vm1231 = vcmp.eq.s32.totalorder %v331, 4
    %vm1232 = vcmp.eq.s32.totalorder %v332, 4
    %vm1233 = vcmp.eq.s32.totalorder %v333, 4
    %vm1234 = vcmp.eq.s32.totalorder %v334, 4
    %vm1235 = vcmp.eq.s32.totalorder %v335, 4
    %vm1236 = vcmp.eq.s32.totalorder %v336, 4
    %vm1237 = vcmp.eq.s32.totalorder %v337, 4
    %vm1238 = vcmp.eq.s32.totalorder %v338, 4
    %vm1239 = vcmp.eq.s32.totalorder %v339, 4
    %vm1240 = vcmp.eq.s32.totalorder %v340, 4
    %vm1241 = vcmp.eq.s32.totalorder %v341, 4
    %vm1242 = vcmp.eq.s32.totalorder %v342, 4
    %vm1243 = vcmp.eq.s32.totalorder %v343, 4
    %vm1244 = vcmp.eq.s32.totalorder %v344, 4
    %vm1245 = vcmp.eq.s32.totalorder %v345, 4
    %vm1246 = vcmp.eq.s32.totalorder %v346, 4
    %vm1247 = vcmp.eq.s32.totalorder %v347, 4
    %vm1248 = vcmp.eq.s32.totalorder %v348, 4
    %vm1249 = vcmp.eq.s32.totalorder %v349, 4
    %vm1250 = vcmp.eq.s32.totalorder %v350, 4
    %vm1251 = vcmp.eq.s32.totalorder %v351, 4
    %vm1252 = vcmp.eq.s32.totalorder %v352, 4
    %vm1253 = vcmp.eq.s32.totalorder %v353, 4
    %vm1254 = vcmp.eq.s32.totalorder %v354, 4
    %vm1255 = vcmp.eq.s32.totalorder %v355, 4
    %vm1256 = vcmp.eq.s32.totalorder %v356, 4
    %vm1257 = vcmp.eq.s32.totalorder %v357, 4
    %vm1258 = vcmp.eq.s32.totalorder %v358, 4
    %vm1259 = vcmp.eq.s32.totalorder %v359, 4
    %vm1260 = vcmp.eq.s32.totalorder %v360, 4
    %vm1261 = vcmp.eq.s32.totalorder %v361, 4
    %vm1262 = vcmp.eq.s32.totalorder %v362, 4
    %vm1263 = vcmp.eq.s32.totalorder %v363, 4
    %vm1264 = vcmp.eq.s32.totalorder %v364, 4
    %vm1265 = vcmp.eq.s32.totalorder %v365, 4
    %vm1266 = vcmp.eq.s32.totalorder %v366, 4
    %vm1267 = vcmp.eq.s32.totalorder %v367, 4
    %vm1268 = vcmp.eq.s32.totalorder %v368, 4
    %vm1269 = vcmp.eq.s32.totalorder %v369, 4
    %vm1270 = vcmp.eq.s32.totalorder %v370, 4
    %vm1271 = vcmp.eq.s32.totalorder %v371, 4
    %vm1272 = vcmp.eq.s32.totalorder %v372, 4
    %vm1273 = vcmp.eq.s32.totalorder %v373, 4
    %vm1274 = vcmp.eq.s32.totalorder %v374, 4
    %vm1275 = vcmp.eq.s32.totalorder %v375, 4
    %vm1276 = vcmp.eq.s32.totalorder %v376, 4
    %vm1277 = vcmp.eq.s32.totalorder %v377, 4
    %vm1278 = vcmp.eq.s32.totalorder %v378, 4
    %vm1279 = vcmp.eq.s32.totalorder %v379, 4
    %vm1280 = vcmp.eq.s32.totalorder %v380, 4
    %vm1281 = vcmp.eq.s32.totalorder %v381, 4
    %vm1282 = vcmp.eq.s32.totalorder %v382, 4
    %vm1283 = vcmp.eq.s32.totalorder %v383, 4
    %vm1284 = vcmp.eq.s32.totalorder %v384, 4
    %vm1285 = vcmp.eq.s32.totalorder %v385, 4
    %vm1286 = vcmp.eq.s32.totalorder %v386, 4
    %vm1287 = vcmp.eq.s32.totalorder %v387, 4
    %vm1288 = vcmp.eq.s32.totalorder %v388, 4
    %vm1289 = vcmp.eq.s32.totalorder %v389, 4
    %vm1290 = vcmp.eq.s32.totalorder %v390, 4
    %vm1291 = vcmp.eq.s32.totalorder %v391, 4
    %vm1292 = vcmp.eq.s32.totalorder %v392, 4
    %vm1293 = vcmp.eq.s32.totalorder %v393, 4
    %vm1294 = vcmp.eq.s32.totalorder %v394, 4
    %vm1295 = vcmp.eq.s32.totalorder %v395, 4
    %vm1296 = vcmp.eq.s32.totalorder %v396, 4
    %vm1297 = vcmp.eq.s32.totalorder %v397, 4
    %vm1298 = vcmp.eq.s32.totalorder %v398, 4
    %vm1299 = vcmp.eq.s32.totalorder %v399, 4
    %vm1300 = vcmp.eq.s32.totalorder %v400, 4
    %vm1301 = vcmp.eq.s32.totalorder %v401, 4
    %vm1302 = vcmp.eq.s32.totalorder %v402, 4
    %vm1303 = vcmp.eq.s32.totalorder %v403, 4
    %v1304 = vstv %s74
    %v1305 = vsel %vm1160, %v1304, 0.0
    %v1306 = vsel %vm1161, %v1304, 0.0
    %v1307 = vsel %vm1162, %v1304, 0.0
    %v1308 = vsel %vm1163, %v1304, 0.0
    %v1309 = vsel %vm1164, %v1304, 0.0
    %v1310 = vsel %vm1165, %v1304, 0.0
    %v1311 = vsel %vm1166, %v1304, 0.0
    %v1312 = vsel %vm1167, %v1304, 0.0
    %v1313 = vsel %vm1168, %v1304, 0.0
    %v1314 = vsel %vm1169, %v1304, 0.0
    %v1315 = vsel %vm1170, %v1304, 0.0
    %v1316 = vsel %vm1171, %v1304, 0.0
    %v1317 = vsel %vm1172, %v1304, 0.0
    %v1318 = vsel %vm1173, %v1304, 0.0
    %v1319 = vsel %vm1174, %v1304, 0.0
    %v1320 = vsel %vm1175, %v1304, 0.0
    %v1321 = vsel %vm1176, %v1304, 0.0
    %v1322 = vsel %vm1177, %v1304, 0.0
    %v1323 = vsel %vm1178, %v1304, 0.0
    %v1324 = vsel %vm1179, %v1304, 0.0
    %v1325 = vsel %vm1180, %v1304, 0.0
    %v1326 = vsel %vm1181, %v1304, 0.0
    %v1327 = vsel %vm1182, %v1304, 0.0
    %v1328 = vsel %vm1183, %v1304, 0.0
    %v1329 = vsel %vm1184, %v1304, 0.0
    %v1330 = vsel %vm1185, %v1304, 0.0
    %v1331 = vsel %vm1186, %v1304, 0.0
    %v1332 = vsel %vm1187, %v1304, 0.0
    %v1333 = vsel %vm1188, %v1304, 0.0
    %v1334 = vsel %vm1189, %v1304, 0.0
    %v1335 = vsel %vm1190, %v1304, 0.0
    %v1336 = vsel %vm1191, %v1304, 0.0
    %v1337 = vsel %vm1192, %v1304, 0.0
    %v1338 = vsel %vm1193, %v1304, 0.0
    %v1339 = vsel %vm1194, %v1304, 0.0
    %v1340 = vsel %vm1195, %v1304, 0.0
    %v1341 = vsel %vm1196, %v1304, 0.0
    %v1342 = vsel %vm1197, %v1304, 0.0
    %v1343 = vsel %vm1198, %v1304, 0.0
    %v1344 = vsel %vm1199, %v1304, 0.0
    %v1345 = vsel %vm1200, %v1304, 0.0
    %v1346 = vsel %vm1201, %v1304, 0.0
    %v1347 = vsel %vm1202, %v1304, 0.0
    %v1348 = vsel %vm1203, %v1304, 0.0
    %v1349 = vsel %vm1204, %v1304, 0.0
    %v1350 = vsel %vm1205, %v1304, 0.0
    %v1351 = vsel %vm1206, %v1304, 0.0
    %v1352 = vsel %vm1207, %v1304, 0.0
    %v1353 = vsel %vm1208, %v1304, 0.0
    %v1354 = vsel %vm1209, %v1304, 0.0
    %v1355 = vsel %vm1210, %v1304, 0.0
    %v1356 = vsel %vm1211, %v1304, 0.0
    %v1357 = vsel %vm1212, %v1304, 0.0
    %v1358 = vsel %vm1213, %v1304, 0.0
    %v1359 = vsel %vm1214, %v1304, 0.0
    %v1360 = vsel %vm1215, %v1304, 0.0
    %v1361 = vsel %vm1216, %v1304, 0.0
    %v1362 = vsel %vm1217, %v1304, 0.0
    %v1363 = vsel %vm1218, %v1304, 0.0
    %v1364 = vsel %vm1219, %v1304, 0.0
    %v1365 = vsel %vm1220, %v1304, 0.0
    %v1366 = vsel %vm1221, %v1304, 0.0
    %v1367 = vsel %vm1222, %v1304, 0.0
    %v1368 = vsel %vm1223, %v1304, 0.0
    %v1369 = vsel %vm1224, %v1304, 0.0
    %v1370 = vsel %vm1225, %v1304, 0.0
    %v1371 = vsel %vm1226, %v1304, 0.0
    %v1372 = vsel %vm1227, %v1304, 0.0
    %v1373 = vsel %vm1228, %v1304, 0.0
    %v1374 = vsel %vm1229, %v1304, 0.0
    %v1375 = vsel %vm1230, %v1304, 0.0
    %v1376 = vsel %vm1231, %v1304, 0.0
    %v1377 = vsel %vm1232, %v1304, 0.0
    %v1378 = vsel %vm1233, %v1304, 0.0
    %v1379 = vsel %vm1234, %v1304, 0.0
    %v1380 = vsel %vm1235, %v1304, 0.0
    %v1381 = vsel %vm1236, %v1304, 0.0
    %v1382 = vsel %vm1237, %v1304, 0.0
    %v1383 = vsel %vm1238, %v1304, 0.0
    %v1384 = vsel %vm1239, %v1304, 0.0
    %v1385 = vsel %vm1240, %v1304, 0.0
    %v1386 = vsel %vm1241, %v1304, 0.0
    %v1387 = vsel %vm1242, %v1304, 0.0
    %v1388 = vsel %vm1243, %v1304, 0.0
    %v1389 = vsel %vm1244, %v1304, 0.0
    %v1390 = vsel %vm1245, %v1304, 0.0
    %v1391 = vsel %vm1246, %v1304, 0.0
    %v1392 = vsel %vm1247, %v1304, 0.0
    %v1393 = vsel %vm1248, %v1304, 0.0
    %v1394 = vsel %vm1249, %v1304, 0.0
    %v1395 = vsel %vm1250, %v1304, 0.0
    %v1396 = vsel %vm1251, %v1304, 0.0
    %v1397 = vsel %vm1252, %v1304, 0.0
    %v1398 = vsel %vm1253, %v1304, 0.0
    %v1399 = vsel %vm1254, %v1304, 0.0
    %v1400 = vsel %vm1255, %v1304, 0.0
    %v1401 = vsel %vm1256, %v1304, 0.0
    %v1402 = vsel %vm1257, %v1304, 0.0
    %v1403 = vsel %vm1258, %v1304, 0.0
    %v1404 = vsel %vm1259, %v1304, 0.0
    %v1405 = vsel %vm1260, %v1304, 0.0
    %v1406 = vsel %vm1261, %v1304, 0.0
    %v1407 = vsel %vm1262, %v1304, 0.0
    %v1408 = vsel %vm1263, %v1304, 0.0
    %v1409 = vsel %vm1264, %v1304, 0.0
    %v1410 = vsel %vm1265, %v1304, 0.0
    %v1411 = vsel %vm1266, %v1304, 0.0
    %v1412 = vsel %vm1267, %v1304, 0.0
    %v1413 = vsel %vm1268, %v1304, 0.0
    %v1414 = vsel %vm1269, %v1304, 0.0
    %v1415 = vsel %vm1270, %v1304, 0.0
    %v1416 = vsel %vm1271, %v1304, 0.0
    %v1417 = vsel %vm1272, %v1304, 0.0
    %v1418 = vsel %vm1273, %v1304, 0.0
    %v1419 = vsel %vm1274, %v1304, 0.0
    %v1420 = vsel %vm1275, %v1304, 0.0
    %v1421 = vsel %vm1276, %v1304, 0.0
    %v1422 = vsel %vm1277, %v1304, 0.0
    %v1423 = vsel %vm1278, %v1304, 0.0
    %v1424 = vsel %vm1279, %v1304, 0.0
    %v1425 = vsel %vm1280, %v1304, 0.0
    %v1426 = vsel %vm1281, %v1304, 0.0
    %v1427 = vsel %vm1282, %v1304, 0.0
    %v1428 = vsel %vm1283, %v1304, 0.0
    %v1429 = vsel %vm1284, %v1304, 0.0
    %v1430 = vsel %vm1285, %v1304, 0.0
    %v1431 = vsel %vm1286, %v1304, 0.0
    %v1432 = vsel %vm1287, %v1304, 0.0
    %v1433 = vsel %vm1288, %v1304, 0.0
    %v1434 = vsel %vm1289, %v1304, 0.0
    %v1435 = vsel %vm1290, %v1304, 0.0
    %v1436 = vsel %vm1291, %v1304, 0.0
    %v1437 = vsel %vm1292, %v1304, 0.0
    %v1438 = vsel %vm1293, %v1304, 0.0
    %v1439 = vsel %vm1294, %v1304, 0.0
    %v1440 = vsel %vm1295, %v1304, 0.0
    %v1441 = vsel %vm1296, %v1304, 0.0
    %v1442 = vsel %vm1297, %v1304, 0.0
    %v1443 = vsel %vm1298, %v1304, 0.0
    %v1444 = vsel %vm1299, %v1304, 0.0
    %v1445 = vsel %vm1300, %v1304, 0.0
    %v1446 = vsel %vm1301, %v1304, 0.0
    %v1447 = vsel %vm1302, %v1304, 0.0
    %v1448 = vsel %vm1303, %v1304, 0.0
    %v1449 = vstv %s73
    %v1450 = vsel %vm1016, %v1449, %v1305
    %v1451 = vsel %vm1017, %v1449, %v1306
    %v1452 = vsel %vm1018, %v1449, %v1307
    %v1453 = vsel %vm1019, %v1449, %v1308
    %v1454 = vsel %vm1020, %v1449, %v1309
    %v1455 = vsel %vm1021, %v1449, %v1310
    %v1456 = vsel %vm1022, %v1449, %v1311
    %v1457 = vsel %vm1023, %v1449, %v1312
    %v1458 = vsel %vm1024, %v1449, %v1313
    %v1459 = vsel %vm1025, %v1449, %v1314
    %v1460 = vsel %vm1026, %v1449, %v1315
    %v1461 = vsel %vm1027, %v1449, %v1316
    %v1462 = vsel %vm1028, %v1449, %v1317
    %v1463 = vsel %vm1029, %v1449, %v1318
    %v1464 = vsel %vm1030, %v1449, %v1319
    %v1465 = vsel %vm1031, %v1449, %v1320
    %v1466 = vsel %vm1032, %v1449, %v1321
    %v1467 = vsel %vm1033, %v1449, %v1322
    %v1468 = vsel %vm1034, %v1449, %v1323
    %v1469 = vsel %vm1035, %v1449, %v1324
    %v1470 = vsel %vm1036, %v1449, %v1325
    %v1471 = vsel %vm1037, %v1449, %v1326
    %v1472 = vsel %vm1038, %v1449, %v1327
    %v1473 = vsel %vm1039, %v1449, %v1328
    %v1474 = vsel %vm1040, %v1449, %v1329
    %v1475 = vsel %vm1041, %v1449, %v1330
    %v1476 = vsel %vm1042, %v1449, %v1331
    %v1477 = vsel %vm1043, %v1449, %v1332
    %v1478 = vsel %vm1044, %v1449, %v1333
    %v1479 = vsel %vm1045, %v1449, %v1334
    %v1480 = vsel %vm1046, %v1449, %v1335
    %v1481 = vsel %vm1047, %v1449, %v1336
    %v1482 = vsel %vm1048, %v1449, %v1337
    %v1483 = vsel %vm1049, %v1449, %v1338
    %v1484 = vsel %vm1050, %v1449, %v1339
    %v1485 = vsel %vm1051, %v1449, %v1340
    %v1486 = vsel %vm1052, %v1449, %v1341
    %v1487 = vsel %vm1053, %v1449, %v1342
    %v1488 = vsel %vm1054, %v1449, %v1343
    %v1489 = vsel %vm1055, %v1449, %v1344
    %v1490 = vsel %vm1056, %v1449, %v1345
    %v1491 = vsel %vm1057, %v1449, %v1346
    %v1492 = vsel %vm1058, %v1449, %v1347
    %v1493 = vsel %vm1059, %v1449, %v1348
    %v1494 = vsel %vm1060, %v1449, %v1349
    %v1495 = vsel %vm1061, %v1449, %v1350
    %v1496 = vsel %vm1062, %v1449, %v1351
    %v1497 = vsel %vm1063, %v1449, %v1352
    %v1498 = vsel %vm1064, %v1449, %v1353
    %v1499 = vsel %vm1065, %v1449, %v1354
    %v1500 = vsel %vm1066, %v1449, %v1355
    %v1501 = vsel %vm1067, %v1449, %v1356
    %v1502 = vsel %vm1068, %v1449, %v1357
    %v1503 = vsel %vm1069, %v1449, %v1358
    %v1504 = vsel %vm1070, %v1449, %v1359
    %v1505 = vsel %vm1071, %v1449, %v1360
    %v1506 = vsel %vm1072, %v1449, %v1361
    %v1507 = vsel %vm1073, %v1449, %v1362
    %v1508 = vsel %vm1074, %v1449, %v1363
    %v1509 = vsel %vm1075, %v1449, %v1364
    %v1510 = vsel %vm1076, %v1449, %v1365
    %v1511 = vsel %vm1077, %v1449, %v1366
    %v1512 = vsel %vm1078, %v1449, %v1367
    %v1513 = vsel %vm1079, %v1449, %v1368
    %v1514 = vsel %vm1080, %v1449, %v1369
    %v1515 = vsel %vm1081, %v1449, %v1370
    %v1516 = vsel %vm1082, %v1449, %v1371
    %v1517 = vsel %vm1083, %v1449, %v1372
    %v1518 = vsel %vm1084, %v1449, %v1373
    %v1519 = vsel %vm1085, %v1449, %v1374
    %v1520 = vsel %vm1086, %v1449, %v1375
    %v1521 = vsel %vm1087, %v1449, %v1376
    %v1522 = vsel %vm1088, %v1449, %v1377
    %v1523 = vsel %vm1089, %v1449, %v1378
    %v1524 = vsel %vm1090, %v1449, %v1379
    %v1525 = vsel %vm1091, %v1449, %v1380
    %v1526 = vsel %vm1092, %v1449, %v1381
    %v1527 = vsel %vm1093, %v1449, %v1382
    %v1528 = vsel %vm1094, %v1449, %v1383
    %v1529 = vsel %vm1095, %v1449, %v1384
    %v1530 = vsel %vm1096, %v1449, %v1385
    %v1531 = vsel %vm1097, %v1449, %v1386
    %v1532 = vsel %vm1098, %v1449, %v1387
    %v1533 = vsel %vm1099, %v1449, %v1388
    %v1534 = vsel %vm1100, %v1449, %v1389
    %v1535 = vsel %vm1101, %v1449, %v1390
    %v1536 = vsel %vm1102, %v1449, %v1391
    %v1537 = vsel %vm1103, %v1449, %v1392
    %v1538 = vsel %vm1104, %v1449, %v1393
    %v1539 = vsel %vm1105, %v1449, %v1394
    %v1540 = vsel %vm1106, %v1449, %v1395
    %v1541 = vsel %vm1107, %v1449, %v1396
    %v1542 = vsel %vm1108, %v1449, %v1397
    %v1543 = vsel %vm1109, %v1449, %v1398
    %v1544 = vsel %vm1110, %v1449, %v1399
    %v1545 = vsel %vm1111, %v1449, %v1400
    %v1546 = vsel %vm1112, %v1449, %v1401
    %v1547 = vsel %vm1113, %v1449, %v1402
    %v1548 = vsel %vm1114, %v1449, %v1403
    %v1549 = vsel %vm1115, %v1449, %v1404
    %v1550 = vsel %vm1116, %v1449, %v1405
    %v1551 = vsel %vm1117, %v1449, %v1406
    %v1552 = vsel %vm1118, %v1449, %v1407
    %v1553 = vsel %vm1119, %v1449, %v1408
    %v1554 = vsel %vm1120, %v1449, %v1409
    %v1555 = vsel %vm1121, %v1449, %v1410
    %v1556 = vsel %vm1122, %v1449, %v1411
    %v1557 = vsel %vm1123, %v1449, %v1412
    %v1558 = vsel %vm1124, %v1449, %v1413
    %v1559 = vsel %vm1125, %v1449, %v1414
    %v1560 = vsel %vm1126, %v1449, %v1415
    %v1561 = vsel %vm1127, %v1449, %v1416
    %v1562 = vsel %vm1128, %v1449, %v1417
    %v1563 = vsel %vm1129, %v1449, %v1418
    %v1564 = vsel %vm1130, %v1449, %v1419
    %v1565 = vsel %vm1131, %v1449, %v1420
    %v1566 = vsel %vm1132, %v1449, %v1421
    %v1567 = vsel %vm1133, %v1449, %v1422
    %v1568 = vsel %vm1134, %v1449, %v1423
    %v1569 = vsel %vm1135, %v1449, %v1424
    %v1570 = vsel %vm1136, %v1449, %v1425
    %v1571 = vsel %vm1137, %v1449, %v1426
    %v1572 = vsel %vm1138, %v1449, %v1427
    %v1573 = vsel %vm1139, %v1449, %v1428
    %v1574 = vsel %vm1140, %v1449, %v1429
    %v1575 = vsel %vm1141, %v1449, %v1430
    %v1576 = vsel %vm1142, %v1449, %v1431
    %v1577 = vsel %vm1143, %v1449, %v1432
    %v1578 = vsel %vm1144, %v1449, %v1433
    %v1579 = vsel %vm1145, %v1449, %v1434
    %v1580 = vsel %vm1146, %v1449, %v1435
    %v1581 = vsel %vm1147, %v1449, %v1436
    %v1582 = vsel %vm1148, %v1449, %v1437
    %v1583 = vsel %vm1149, %v1449, %v1438
    %v1584 = vsel %vm1150, %v1449, %v1439
    %v1585 = vsel %vm1151, %v1449, %v1440
    %v1586 = vsel %vm1152, %v1449, %v1441
    %v1587 = vsel %vm1153, %v1449, %v1442
    %v1588 = vsel %vm1154, %v1449, %v1443
    %v1589 = vsel %vm1155, %v1449, %v1444
    %v1590 = vsel %vm1156, %v1449, %v1445
    %v1591 = vsel %vm1157, %v1449, %v1446
    %v1592 = vsel %vm1158, %v1449, %v1447
    %v1593 = vsel %vm1159, %v1449, %v1448
    %v1594 = vstv %s72
    %v1595 = vsel %vm872, %v1594, %v1450
    %v1596 = vsel %vm873, %v1594, %v1451
    %v1597 = vsel %vm874, %v1594, %v1452
    %v1598 = vsel %vm875, %v1594, %v1453
    %v1599 = vsel %vm876, %v1594, %v1454
    %v1600 = vsel %vm877, %v1594, %v1455
    %v1601 = vsel %vm878, %v1594, %v1456
    %v1602 = vsel %vm879, %v1594, %v1457
    %v1603 = vsel %vm880, %v1594, %v1458
    %v1604 = vsel %vm881, %v1594, %v1459
    %v1605 = vsel %vm882, %v1594, %v1460
    %v1606 = vsel %vm883, %v1594, %v1461
    %v1607 = vsel %vm884, %v1594, %v1462
    %v1608 = vsel %vm885, %v1594, %v1463
    %v1609 = vsel %vm886, %v1594, %v1464
    %v1610 = vsel %vm887, %v1594, %v1465
    %v1611 = vsel %vm888, %v1594, %v1466
    %v1612 = vsel %vm889, %v1594, %v1467
    %v1613 = vsel %vm890, %v1594, %v1468
    %v1614 = vsel %vm891, %v1594, %v1469
    %v1615 = vsel %vm892, %v1594, %v1470
    %v1616 = vsel %vm893, %v1594, %v1471
    %v1617 = vsel %vm894, %v1594, %v1472
    %v1618 = vsel %vm895, %v1594, %v1473
    %v1619 = vsel %vm896, %v1594, %v1474
    %v1620 = vsel %vm897, %v1594, %v1475
    %v1621 = vsel %vm898, %v1594, %v1476
    %v1622 = vsel %vm899, %v1594, %v1477
    %v1623 = vsel %vm900, %v1594, %v1478
    %v1624 = vsel %vm901, %v1594, %v1479
    %v1625 = vsel %vm902, %v1594, %v1480
    %v1626 = vsel %vm903, %v1594, %v1481
    %v1627 = vsel %vm904, %v1594, %v1482
    %v1628 = vsel %vm905, %v1594, %v1483
    %v1629 = vsel %vm906, %v1594, %v1484
    %v1630 = vsel %vm907, %v1594, %v1485
    %v1631 = vsel %vm908, %v1594, %v1486
    %v1632 = vsel %vm909, %v1594, %v1487
    %v1633 = vsel %vm910, %v1594, %v1488
    %v1634 = vsel %vm911, %v1594, %v1489
    %v1635 = vsel %vm912, %v1594, %v1490
    %v1636 = vsel %vm913, %v1594, %v1491
    %v1637 = vsel %vm914, %v1594, %v1492
    %v1638 = vsel %vm915, %v1594, %v1493
    %v1639 = vsel %vm916, %v1594, %v1494
    %v1640 = vsel %vm917, %v1594, %v1495
    %v1641 = vsel %vm918, %v1594, %v1496
    %v1642 = vsel %vm919, %v1594, %v1497
    %v1643 = vsel %vm920, %v1594, %v1498
    %v1644 = vsel %vm921, %v1594, %v1499
    %v1645 = vsel %vm922, %v1594, %v1500
    %v1646 = vsel %vm923, %v1594, %v1501
    %v1647 = vsel %vm924, %v1594, %v1502
    %v1648 = vsel %vm925, %v1594, %v1503
    %v1649 = vsel %vm926, %v1594, %v1504
    %v1650 = vsel %vm927, %v1594, %v1505
    %v1651 = vsel %vm928, %v1594, %v1506
    %v1652 = vsel %vm929, %v1594, %v1507
    %v1653 = vsel %vm930, %v1594, %v1508
    %v1654 = vsel %vm931, %v1594, %v1509
    %v1655 = vsel %vm932, %v1594, %v1510
    %v1656 = vsel %vm933, %v1594, %v1511
    %v1657 = vsel %vm934, %v1594, %v1512
    %v1658 = vsel %vm935, %v1594, %v1513
    %v1659 = vsel %vm936, %v1594, %v1514
    %v1660 = vsel %vm937, %v1594, %v1515
    %v1661 = vsel %vm938, %v1594, %v1516
    %v1662 = vsel %vm939, %v1594, %v1517
    %v1663 = vsel %vm940, %v1594, %v1518
    %v1664 = vsel %vm941, %v1594, %v1519
    %v1665 = vsel %vm942, %v1594, %v1520
    %v1666 = vsel %vm943, %v1594, %v1521
    %v1667 = vsel %vm944, %v1594, %v1522
    %v1668 = vsel %vm945, %v1594, %v1523
    %v1669 = vsel %vm946, %v1594, %v1524
    %v1670 = vsel %vm947, %v1594, %v1525
    %v1671 = vsel %vm948, %v1594, %v1526
    %v1672 = vsel %vm949, %v1594, %v1527
    %v1673 = vsel %vm950, %v1594, %v1528
    %v1674 = vsel %vm951, %v1594, %v1529
    %v1675 = vsel %vm952, %v1594, %v1530
    %v1676 = vsel %vm953, %v1594, %v1531
    %v1677 = vsel %vm954, %v1594, %v1532
    %v1678 = vsel %vm955, %v1594, %v1533
    %v1679 = vsel %vm956, %v1594, %v1534
    %v1680 = vsel %vm957, %v1594, %v1535
    %v1681 = vsel %vm958, %v1594, %v1536
    %v1682 = vsel %vm959, %v1594, %v1537
    %v1683 = vsel %vm960, %v1594, %v1538
    %v1684 = vsel %vm961, %v1594, %v1539
    %v1685 = vsel %vm962, %v1594, %v1540
    %v1686 = vsel %vm963, %v1594, %v1541
    %v1687 = vsel %vm964, %v1594, %v1542
    %v1688 = vsel %vm965, %v1594, %v1543
    %v1689 = vsel %vm966, %v1594, %v1544
    %v1690 = vsel %vm967, %v1594, %v1545
    %v1691 = vsel %vm968, %v1594, %v1546
    %v1692 = vsel %vm969, %v1594, %v1547
    %v1693 = vsel %vm970, %v1594, %v1548
    %v1694 = vsel %vm971, %v1594, %v1549
    %v1695 = vsel %vm972, %v1594, %v1550
    %v1696 = vsel %vm973, %v1594, %v1551
    %v1697 = vsel %vm974, %v1594, %v1552
    %v1698 = vsel %vm975, %v1594, %v1553
    %v1699 = vsel %vm976, %v1594, %v1554
    %v1700 = vsel %vm977, %v1594, %v1555
    %v1701 = vsel %vm978, %v1594, %v1556
    %v1702 = vsel %vm979, %v1594, %v1557
    %v1703 = vsel %vm980, %v1594, %v1558
    %v1704 = vsel %vm981, %v1594, %v1559
    %v1705 = vsel %vm982, %v1594, %v1560
    %v1706 = vsel %vm983, %v1594, %v1561
    %v1707 = vsel %vm984, %v1594, %v1562
    %v1708 = vsel %vm985, %v1594, %v1563
    %v1709 = vsel %vm986, %v1594, %v1564
    %v1710 = vsel %vm987, %v1594, %v1565
    %v1711 = vsel %vm988, %v1594, %v1566
    %v1712 = vsel %vm989, %v1594, %v1567
    %v1713 = vsel %vm990, %v1594, %v1568
    %v1714 = vsel %vm991, %v1594, %v1569
    %v1715 = vsel %vm992, %v1594, %v1570
    %v1716 = vsel %vm993, %v1594, %v1571
    %v1717 = vsel %vm994, %v1594, %v1572
    %v1718 = vsel %vm995, %v1594, %v1573
    %v1719 = vsel %vm996, %v1594, %v1574
    %v1720 = vsel %vm997, %v1594, %v1575
    %v1721 = vsel %vm998, %v1594, %v1576
    %v1722 = vsel %vm999, %v1594, %v1577
    %v1723 = vsel %vm1000, %v1594, %v1578
    %v1724 = vsel %vm1001, %v1594, %v1579
    %v1725 = vsel %vm1002, %v1594, %v1580
    %v1726 = vsel %vm1003, %v1594, %v1581
    %v1727 = vsel %vm1004, %v1594, %v1582
    %v1728 = vsel %vm1005, %v1594, %v1583
    %v1729 = vsel %vm1006, %v1594, %v1584
    %v1730 = vsel %vm1007, %v1594, %v1585
    %v1731 = vsel %vm1008, %v1594, %v1586
    %v1732 = vsel %vm1009, %v1594, %v1587
    %v1733 = vsel %vm1010, %v1594, %v1588
    %v1734 = vsel %vm1011, %v1594, %v1589
    %v1735 = vsel %vm1012, %v1594, %v1590
    %v1736 = vsel %vm1013, %v1594, %v1591
    %v1737 = vsel %vm1014, %v1594, %v1592
    %v1738 = vsel %vm1015, %v1594, %v1593
    %v1739 = vstv %s71
    %v1740 = vsel %vm728, %v1739, %v1595
    %v1741 = vsel %vm729, %v1739, %v1596
    %v1742 = vsel %vm730, %v1739, %v1597
    %v1743 = vsel %vm731, %v1739, %v1598
    %v1744 = vsel %vm732, %v1739, %v1599
    %v1745 = vsel %vm733, %v1739, %v1600
    %v1746 = vsel %vm734, %v1739, %v1601
    %v1747 = vsel %vm735, %v1739, %v1602
    %v1748 = vsel %vm736, %v1739, %v1603
    %v1749 = vsel %vm737, %v1739, %v1604
    %v1750 = vsel %vm738, %v1739, %v1605
    %v1751 = vsel %vm739, %v1739, %v1606
    %v1752 = vsel %vm740, %v1739, %v1607
    %v1753 = vsel %vm741, %v1739, %v1608
    %v1754 = vsel %vm742, %v1739, %v1609
    %v1755 = vsel %vm743, %v1739, %v1610
    %v1756 = vsel %vm744, %v1739, %v1611
    %v1757 = vsel %vm745, %v1739, %v1612
    %v1758 = vsel %vm746, %v1739, %v1613
    %v1759 = vsel %vm747, %v1739, %v1614
    %v1760 = vsel %vm748, %v1739, %v1615
    %v1761 = vsel %vm749, %v1739, %v1616
    %v1762 = vsel %vm750, %v1739, %v1617
    %v1763 = vsel %vm751, %v1739, %v1618
    %v1764 = vsel %vm752, %v1739, %v1619
    %v1765 = vsel %vm753, %v1739, %v1620
    %v1766 = vsel %vm754, %v1739, %v1621
    %v1767 = vsel %vm755, %v1739, %v1622
    %v1768 = vsel %vm756, %v1739, %v1623
    %v1769 = vsel %vm757, %v1739, %v1624
    %v1770 = vsel %vm758, %v1739, %v1625
    %v1771 = vsel %vm759, %v1739, %v1626
    %v1772 = vsel %vm760, %v1739, %v1627
    %v1773 = vsel %vm761, %v1739, %v1628
    %v1774 = vsel %vm762, %v1739, %v1629
    %v1775 = vsel %vm763, %v1739, %v1630
    %v1776 = vsel %vm764, %v1739, %v1631
    %v1777 = vsel %vm765, %v1739, %v1632
    %v1778 = vsel %vm766, %v1739, %v1633
    %v1779 = vsel %vm767, %v1739, %v1634
    %v1780 = vsel %vm768, %v1739, %v1635
    %v1781 = vsel %vm769, %v1739, %v1636
    %v1782 = vsel %vm770, %v1739, %v1637
    %v1783 = vsel %vm771, %v1739, %v1638
    %v1784 = vsel %vm772, %v1739, %v1639
    %v1785 = vsel %vm773, %v1739, %v1640
    %v1786 = vsel %vm774, %v1739, %v1641
    %v1787 = vsel %vm775, %v1739, %v1642
    %v1788 = vsel %vm776, %v1739, %v1643
    %v1789 = vsel %vm777, %v1739, %v1644
    %v1790 = vsel %vm778, %v1739, %v1645
    %v1791 = vsel %vm779, %v1739, %v1646
    %v1792 = vsel %vm780, %v1739, %v1647
    %v1793 = vsel %vm781, %v1739, %v1648
    %v1794 = vsel %vm782, %v1739, %v1649
    %v1795 = vsel %vm783, %v1739, %v1650
    %v1796 = vsel %vm784, %v1739, %v1651
    %v1797 = vsel %vm785, %v1739, %v1652
    %v1798 = vsel %vm786, %v1739, %v1653
    %v1799 = vsel %vm787, %v1739, %v1654
    %v1800 = vsel %vm788, %v1739, %v1655
    %v1801 = vsel %vm789, %v1739, %v1656
    %v1802 = vsel %vm790, %v1739, %v1657
    %v1803 = vsel %vm791, %v1739, %v1658
    %v1804 = vsel %vm792, %v1739, %v1659
    %v1805 = vsel %vm793, %v1739, %v1660
    %v1806 = vsel %vm794, %v1739, %v1661
    %v1807 = vsel %vm795, %v1739, %v1662
    %v1808 = vsel %vm796, %v1739, %v1663
    %v1809 = vsel %vm797, %v1739, %v1664
    %v1810 = vsel %vm798, %v1739, %v1665
    %v1811 = vsel %vm799, %v1739, %v1666
    %v1812 = vsel %vm800, %v1739, %v1667
    %v1813 = vsel %vm801, %v1739, %v1668
    %v1814 = vsel %vm802, %v1739, %v1669
    %v1815 = vsel %vm803, %v1739, %v1670
    %v1816 = vsel %vm804, %v1739, %v1671
    %v1817 = vsel %vm805, %v1739, %v1672
    %v1818 = vsel %vm806, %v1739, %v1673
    %v1819 = vsel %vm807, %v1739, %v1674
    %v1820 = vsel %vm808, %v1739, %v1675
    %v1821 = vsel %vm809, %v1739, %v1676
    %v1822 = vsel %vm810, %v1739, %v1677
    %v1823 = vsel %vm811, %v1739, %v1678
    %v1824 = vsel %vm812, %v1739, %v1679
    %v1825 = vsel %vm813, %v1739, %v1680
    %v1826 = vsel %vm814, %v1739, %v1681
    %v1827 = vsel %vm815, %v1739, %v1682
    %v1828 = vsel %vm816, %v1739, %v1683
    %v1829 = vsel %vm817, %v1739, %v1684
    %v1830 = vsel %vm818, %v1739, %v1685
    %v1831 = vsel %vm819, %v1739, %v1686
    %v1832 = vsel %vm820, %v1739, %v1687
    %v1833 = vsel %vm821, %v1739, %v1688
    %v1834 = vsel %vm822, %v1739, %v1689
    %v1835 = vsel %vm823, %v1739, %v1690
    %v1836 = vsel %vm824, %v1739, %v1691
    %v1837 = vsel %vm825, %v1739, %v1692
    %v1838 = vsel %vm826, %v1739, %v1693
    %v1839 = vsel %vm827, %v1739, %v1694
    %v1840 = vsel %vm828, %v1739, %v1695
    %v1841 = vsel %vm829, %v1739, %v1696
    %v1842 = vsel %vm830, %v1739, %v1697
    %v1843 = vsel %vm831, %v1739, %v1698
    %v1844 = vsel %vm832, %v1739, %v1699
    %v1845 = vsel %vm833, %v1739, %v1700
    %v1846 = vsel %vm834, %v1739, %v1701
    %v1847 = vsel %vm835, %v1739, %v1702
    %v1848 = vsel %vm836, %v1739, %v1703
    %v1849 = vsel %vm837, %v1739, %v1704
    %v1850 = vsel %vm838, %v1739, %v1705
    %v1851 = vsel %vm839, %v1739, %v1706
    %v1852 = vsel %vm840, %v1739, %v1707
    %v1853 = vsel %vm841, %v1739, %v1708
    %v1854 = vsel %vm842, %v1739, %v1709
    %v1855 = vsel %vm843, %v1739, %v1710
    %v1856 = vsel %vm844, %v1739, %v1711
    %v1857 = vsel %vm845, %v1739, %v1712
    %v1858 = vsel %vm846, %v1739, %v1713
    %v1859 = vsel %vm847, %v1739, %v1714
    %v1860 = vsel %vm848, %v1739, %v1715
    %v1861 = vsel %vm849, %v1739, %v1716
    %v1862 = vsel %vm850, %v1739, %v1717
    %v1863 = vsel %vm851, %v1739, %v1718
    %v1864 = vsel %vm852, %v1739, %v1719
    %v1865 = vsel %vm853, %v1739, %v1720
    %v1866 = vsel %vm854, %v1739, %v1721
    %v1867 = vsel %vm855, %v1739, %v1722
    %v1868 = vsel %vm856, %v1739, %v1723
    %v1869 = vsel %vm857, %v1739, %v1724
    %v1870 = vsel %vm858, %v1739, %v1725
    %v1871 = vsel %vm859, %v1739, %v1726
    %v1872 = vsel %vm860, %v1739, %v1727
    %v1873 = vsel %vm861, %v1739, %v1728
    %v1874 = vsel %vm862, %v1739, %v1729
    %v1875 = vsel %vm863, %v1739, %v1730
    %v1876 = vsel %vm864, %v1739, %v1731
    %v1877 = vsel %vm865, %v1739, %v1732
    %v1878 = vsel %vm866, %v1739, %v1733
    %v1879 = vsel %vm867, %v1739, %v1734
    %v1880 = vsel %vm868, %v1739, %v1735
    %v1881 = vsel %vm869, %v1739, %v1736
    %v1882 = vsel %vm870, %v1739, %v1737
    %v1883 = vsel %vm871, %v1739, %v1738
    %v1884 = vstv %s70
    %v1885 = vsel %vm584, %v1884, %v1740
    %v1886 = vsel %vm585, %v1884, %v1741
    %v1887 = vsel %vm586, %v1884, %v1742
    %v1888 = vsel %vm587, %v1884, %v1743
    %v1889 = vsel %vm588, %v1884, %v1744
    %v1890 = vsel %vm589, %v1884, %v1745
    %v1891 = vsel %vm590, %v1884, %v1746
    %v1892 = vsel %vm591, %v1884, %v1747
    %v1893 = vsel %vm592, %v1884, %v1748
    %v1894 = vsel %vm593, %v1884, %v1749
    %v1895 = vsel %vm594, %v1884, %v1750
    %v1896 = vsel %vm595, %v1884, %v1751
    %v1897 = vsel %vm596, %v1884, %v1752
    %v1898 = vsel %vm597, %v1884, %v1753
    %v1899 = vsel %vm598, %v1884, %v1754
    %v1900 = vsel %vm599, %v1884, %v1755
    %v1901 = vsel %vm600, %v1884, %v1756
    %v1902 = vsel %vm601, %v1884, %v1757
    %v1903 = vsel %vm602, %v1884, %v1758
    %v1904 = vsel %vm603, %v1884, %v1759
    %v1905 = vsel %vm604, %v1884, %v1760
    %v1906 = vsel %vm605, %v1884, %v1761
    %v1907 = vsel %vm606, %v1884, %v1762
    %v1908 = vsel %vm607, %v1884, %v1763
    %v1909 = vsel %vm608, %v1884, %v1764
    %v1910 = vsel %vm609, %v1884, %v1765
    %v1911 = vsel %vm610, %v1884, %v1766
    %v1912 = vsel %vm611, %v1884, %v1767
    %v1913 = vsel %vm612, %v1884, %v1768
    %v1914 = vsel %vm613, %v1884, %v1769
    %v1915 = vsel %vm614, %v1884, %v1770
    %v1916 = vsel %vm615, %v1884, %v1771
    %v1917 = vsel %vm616, %v1884, %v1772
    %v1918 = vsel %vm617, %v1884, %v1773
    %v1919 = vsel %vm618, %v1884, %v1774
    %v1920 = vsel %vm619, %v1884, %v1775
    %v1921 = vsel %vm620, %v1884, %v1776
    %v1922 = vsel %vm621, %v1884, %v1777
    %v1923 = vsel %vm622, %v1884, %v1778
    %v1924 = vsel %vm623, %v1884, %v1779
    %v1925 = vsel %vm624, %v1884, %v1780
    %v1926 = vsel %vm625, %v1884, %v1781
    %v1927 = vsel %vm626, %v1884, %v1782
    %v1928 = vsel %vm627, %v1884, %v1783
    %v1929 = vsel %vm628, %v1884, %v1784
    %v1930 = vsel %vm629, %v1884, %v1785
    %v1931 = vsel %vm630, %v1884, %v1786
    %v1932 = vsel %vm631, %v1884, %v1787
    %v1933 = vsel %vm632, %v1884, %v1788
    %v1934 = vsel %vm633, %v1884, %v1789
    %v1935 = vsel %vm634, %v1884, %v1790
    %v1936 = vsel %vm635, %v1884, %v1791
    %v1937 = vsel %vm636, %v1884, %v1792
    %v1938 = vsel %vm637, %v1884, %v1793
    %v1939 = vsel %vm638, %v1884, %v1794
    %v1940 = vsel %vm639, %v1884, %v1795
    %v1941 = vsel %vm640, %v1884, %v1796
    %v1942 = vsel %vm641, %v1884, %v1797
    %v1943 = vsel %vm642, %v1884, %v1798
    %v1944 = vsel %vm643, %v1884, %v1799
    %v1945 = vsel %vm644, %v1884, %v1800
    %v1946 = vsel %vm645, %v1884, %v1801
    %v1947 = vsel %vm646, %v1884, %v1802
    %v1948 = vsel %vm647, %v1884, %v1803
    %v1949 = vsel %vm648, %v1884, %v1804
    %v1950 = vsel %vm649, %v1884, %v1805
    %v1951 = vsel %vm650, %v1884, %v1806
    %v1952 = vsel %vm651, %v1884, %v1807
    %v1953 = vsel %vm652, %v1884, %v1808
    %v1954 = vsel %vm653, %v1884, %v1809
    %v1955 = vsel %vm654, %v1884, %v1810
    %v1956 = vsel %vm655, %v1884, %v1811
    %v1957 = vsel %vm656, %v1884, %v1812
    %v1958 = vsel %vm657, %v1884, %v1813
    %v1959 = vsel %vm658, %v1884, %v1814
    %v1960 = vsel %vm659, %v1884, %v1815
    %v1961 = vsel %vm660, %v1884, %v1816
    %v1962 = vsel %vm661, %v1884, %v1817
    %v1963 = vsel %vm662, %v1884, %v1818
    %v1964 = vsel %vm663, %v1884, %v1819
    %v1965 = vsel %vm664, %v1884, %v1820
    %v1966 = vsel %vm665, %v1884, %v1821
    %v1967 = vsel %vm666, %v1884, %v1822
    %v1968 = vsel %vm667, %v1884, %v1823
    %v1969 = vsel %vm668, %v1884, %v1824
    %v1970 = vsel %vm669, %v1884, %v1825
    %v1971 = vsel %vm670, %v1884, %v1826
    %v1972 = vsel %vm671, %v1884, %v1827
    %v1973 = vsel %vm672, %v1884, %v1828
    %v1974 = vsel %vm673, %v1884, %v1829
    %v1975 = vsel %vm674, %v1884, %v1830
    %v1976 = vsel %vm675, %v1884, %v1831
    %v1977 = vsel %vm676, %v1884, %v1832
    %v1978 = vsel %vm677, %v1884, %v1833
    %v1979 = vsel %vm678, %v1884, %v1834
    %v1980 = vsel %vm679, %v1884, %v1835
    %v1981 = vsel %vm680, %v1884, %v1836
    %v1982 = vsel %vm681, %v1884, %v1837
    %v1983 = vsel %vm682, %v1884, %v1838
    %v1984 = vsel %vm683, %v1884, %v1839
    %v1985 = vsel %vm684, %v1884, %v1840
    %v1986 = vsel %vm685, %v1884, %v1841
    %v1987 = vsel %vm686, %v1884, %v1842
    %v1988 = vsel %vm687, %v1884, %v1843
    %v1989 = vsel %vm688, %v1884, %v1844
    %v1990 = vsel %vm689, %v1884, %v1845
    %v1991 = vsel %vm690, %v1884, %v1846
    %v1992 = vsel %vm691, %v1884, %v1847
    %v1993 = vsel %vm692, %v1884, %v1848
    %v1994 = vsel %vm693, %v1884, %v1849
    %v1995 = vsel %vm694, %v1884, %v1850
    %v1996 = vsel %vm695, %v1884, %v1851
    %v1997 = vsel %vm696, %v1884, %v1852
    %v1998 = vsel %vm697, %v1884, %v1853
    %v1999 = vsel %vm698, %v1884, %v1854
    %v2000 = vsel %vm699, %v1884, %v1855
    %v2001 = vsel %vm700, %v1884, %v1856
    %v2002 = vsel %vm701, %v1884, %v1857
    %v2003 = vsel %vm702, %v1884, %v1858
    %v2004 = vsel %vm703, %v1884, %v1859
    %v2005 = vsel %vm704, %v1884, %v1860
    %v2006 = vsel %vm705, %v1884, %v1861
    %v2007 = vsel %vm706, %v1884, %v1862
    %v2008 = vsel %vm707, %v1884, %v1863
    %v2009 = vsel %vm708, %v1884, %v1864
    %v2010 = vsel %vm709, %v1884, %v1865
    %v2011 = vsel %vm710, %v1884, %v1866
    %v2012 = vsel %vm711, %v1884, %v1867
    %v2013 = vsel %vm712, %v1884, %v1868
    %v2014 = vsel %vm713, %v1884, %v1869
    %v2015 = vsel %vm714, %v1884, %v1870
    %v2016 = vsel %vm715, %v1884, %v1871
    %v2017 = vsel %vm716, %v1884, %v1872
    %v2018 = vsel %vm717, %v1884, %v1873
    %v2019 = vsel %vm718, %v1884, %v1874
    %v2020 = vsel %vm719, %v1884, %v1875
    %v2021 = vsel %vm720, %v1884, %v1876
    %v2022 = vsel %vm721, %v1884, %v1877
    %v2023 = vsel %vm722, %v1884, %v1878
    %v2024 = vsel %vm723, %v1884, %v1879
    %v2025 = vsel %vm724, %v1884, %v1880
    %v2026 = vsel %vm725, %v1884, %v1881
    %v2027 = vsel %vm726, %v1884, %v1882
    %v2028 = vsel %vm727, %v1884, %v1883
    %v2029 = vmul.f32 %v1885, %v80
    %v2030 = vmul.f32 %v1886, %v81
    %v2031 = vmul.f32 %v1887, %v82
    %v2032 = vmul.f32 %v1888, %v83
    %v2033 = vmul.f32 %v1889, %v84
    %v2034 = vmul.f32 %v1890, %v85
    %v2035 = vmul.f32 %v1891, %v86
    %v2036 = vmul.f32 %v1892, %v87
    %v2037 = vmul.f32 %v1893, %v88
    %v2038 = vmul.f32 %v1894, %v89
    %v2039 = vmul.f32 %v1895, %v90
    %v2040 = vmul.f32 %v1896, %v91
    %v2041 = vmul.f32 %v1897, %v92
    %v2042 = vmul.f32 %v1898, %v93
    %v2043 = vmul.f32 %v1899, %v94
    %v2044 = vmul.f32 %v1900, %v95
    %v2045 = vmul.f32 %v1901, %v96
    %v2046 = vmul.f32 %v1902, %v97
    %v2047 = vmul.f32 %v1903, %v98
    %v2048 = vmul.f32 %v1904, %v99
    %v2049 = vmul.f32 %v1905, %v100
    %v2050 = vmul.f32 %v1906, %v101
    %v2051 = vmul.f32 %v1907, %v102
    %v2052 = vmul.f32 %v1908, %v103
    %v2053 = vmul.f32 %v1909, %v104
    %v2054 = vmul.f32 %v1910, %v105
    %v2055 = vmul.f32 %v1911, %v106
    %v2056 = vmul.f32 %v1912, %v107
    %v2057 = vmul.f32 %v1913, %v108
    %v2058 = vmul.f32 %v1914, %v109
    %v2059 = vmul.f32 %v1915, %v110
    %v2060 = vmul.f32 %v1916, %v111
    %v2061 = vmul.f32 %v1917, %v112
    %v2062 = vmul.f32 %v1918, %v113
    %v2063 = vmul.f32 %v1919, %v114
    %v2064 = vmul.f32 %v1920, %v115
    %v2065 = vmul.f32 %v1921, %v116
    %v2066 = vmul.f32 %v1922, %v117
    %v2067 = vmul.f32 %v1923, %v118
    %v2068 = vmul.f32 %v1924, %v119
    %v2069 = vmul.f32 %v1925, %v120
    %v2070 = vmul.f32 %v1926, %v121
    %v2071 = vmul.f32 %v1927, %v122
    %v2072 = vmul.f32 %v1928, %v123
    %v2073 = vmul.f32 %v1929, %v124
    %v2074 = vmul.f32 %v1930, %v125
    %v2075 = vmul.f32 %v1931, %v126
    %v2076 = vmul.f32 %v1932, %v127
    %v2077 = vmul.f32 %v1933, %v128
    %v2078 = vmul.f32 %v1934, %v129
    %v2079 = vmul.f32 %v1935, %v130
    %v2080 = vmul.f32 %v1936, %v131
    %v2081 = vmul.f32 %v1937, %v132
    %v2082 = vmul.f32 %v1938, %v133
    %v2083 = vmul.f32 %v1939, %v134
    %v2084 = vmul.f32 %v1940, %v135
    %v2085 = vmul.f32 %v1941, %v136
    %v2086 = vmul.f32 %v1942, %v137
    %v2087 = vmul.f32 %v1943, %v138
    %v2088 = vmul.f32 %v1944, %v139
    %v2089 = vmul.f32 %v1945, %v140
    %v2090 = vmul.f32 %v1946, %v141
    %v2091 = vmul.f32 %v1947, %v142
    %v2092 = vmul.f32 %v1948, %v143
    %v2093 = vmul.f32 %v1949, %v144
    %v2094 = vmul.f32 %v1950, %v145
    %v2095 = vmul.f32 %v1951, %v146
    %v2096 = vmul.f32 %v1952, %v147
    %v2097 = vmul.f32 %v1953, %v148
    %v2098 = vmul.f32 %v1954, %v149
    %v2099 = vmul.f32 %v1955, %v150
    %v2100 = vmul.f32 %v1956, %v151
    %v2101 = vmul.f32 %v1957, %v152
    %v2102 = vmul.f32 %v1958, %v153
    %v2103 = vmul.f32 %v1959, %v154
    %v2104 = vmul.f32 %v1960, %v155
    %v2105 = vmul.f32 %v1961, %v156
    %v2106 = vmul.f32 %v1962, %v157
    %v2107 = vmul.f32 %v1963, %v158
    %v2108 = vmul.f32 %v1964, %v159
    %v2109 = vmul.f32 %v1965, %v160
    %v2110 = vmul.f32 %v1966, %v161
    %v2111 = vmul.f32 %v1967, %v162
    %v2112 = vmul.f32 %v1968, %v163
    %v2113 = vmul.f32 %v1969, %v164
    %v2114 = vmul.f32 %v1970, %v165
    %v2115 = vmul.f32 %v1971, %v166
    %v2116 = vmul.f32 %v1972, %v167
    %v2117 = vmul.f32 %v1973, %v168
    %v2118 = vmul.f32 %v1974, %v169
    %v2119 = vmul.f32 %v1975, %v170
    %v2120 = vmul.f32 %v1976, %v171
    %v2121 = vmul.f32 %v1977, %v172
    %v2122 = vmul.f32 %v1978, %v173
    %v2123 = vmul.f32 %v1979, %v174
    %v2124 = vmul.f32 %v1980, %v175
    %v2125 = vmul.f32 %v1981, %v176
    %v2126 = vmul.f32 %v1982, %v177
    %v2127 = vmul.f32 %v1983, %v178
    %v2128 = vmul.f32 %v1984, %v179
    %v2129 = vmul.f32 %v1985, %v180
    %v2130 = vmul.f32 %v1986, %v181
    %v2131 = vmul.f32 %v1987, %v182
    %v2132 = vmul.f32 %v1988, %v183
    %v2133 = vmul.f32 %v1989, %v184
    %v2134 = vmul.f32 %v1990, %v185
    %v2135 = vmul.f32 %v1991, %v186
    %v2136 = vmul.f32 %v1992, %v187
    %v2137 = vmul.f32 %v1993, %v188
    %v2138 = vmul.f32 %v1994, %v189
    %v2139 = vmul.f32 %v1995, %v190
    %v2140 = vmul.f32 %v1996, %v191
    %v2141 = vmul.f32 %v1997, %v192
    %v2142 = vmul.f32 %v1998, %v193
    %v2143 = vmul.f32 %v1999, %v194
    %v2144 = vmul.f32 %v2000, %v195
    %v2145 = vmul.f32 %v2001, %v196
    %v2146 = vmul.f32 %v2002, %v197
    %v2147 = vmul.f32 %v2003, %v198
    %v2148 = vmul.f32 %v2004, %v199
    %v2149 = vmul.f32 %v2005, %v200
    %v2150 = vmul.f32 %v2006, %v201
    %v2151 = vmul.f32 %v2007, %v202
    %v2152 = vmul.f32 %v2008, %v203
    %v2153 = vmul.f32 %v2009, %v204
    %v2154 = vmul.f32 %v2010, %v205
    %v2155 = vmul.f32 %v2011, %v206
    %v2156 = vmul.f32 %v2012, %v207
    %v2157 = vmul.f32 %v2013, %v208
    %v2158 = vmul.f32 %v2014, %v209
    %v2159 = vmul.f32 %v2015, %v210
    %v2160 = vmul.f32 %v2016, %v211
    %v2161 = vmul.f32 %v2017, %v212
    %v2162 = vmul.f32 %v2018, %v213
    %v2163 = vmul.f32 %v2019, %v214
    %v2164 = vmul.f32 %v2020, %v215
    %v2165 = vmul.f32 %v2021, %v216
    %v2166 = vmul.f32 %v2022, %v217
    %v2167 = vmul.f32 %v2023, %v218
    %v2168 = vmul.f32 %v2024, %v219
    %v2169 = vmul.f32 %v2025, %v220
    %v2170 = vmul.f32 %v2026, %v221
    %v2171 = vmul.f32 %v2027, %v222
    %v2172 = vmul.f32 %v2028, %v223
    %v2173 = vtanh.pop %v2029
    %v2174 = vtanh.pop %v2030
    %v2175 = vtanh.pop %v2031
    %v2176 = vtanh.pop %v2032
    %v2177 = vtanh.pop %v2033
    %v2178 = vtanh.pop %v2034
    %v2179 = vtanh.pop %v2035
    %v2180 = vtanh.pop %v2036
    %v2181 = vtanh.pop %v2037
    %v2182 = vtanh.pop %v2038
    %v2183 = vtanh.pop %v2039
    %v2184 = vtanh.pop %v2040
    %v2185 = vtanh.pop %v2041
    %v2186 = vtanh.pop %v2042
    %v2187 = vtanh.pop %v2043
    %v2188 = vtanh.pop %v2044
    %v2189 = vtanh.pop %v2045
    %v2190 = vtanh.pop %v2046
    %v2191 = vtanh.pop %v2047
    %v2192 = vtanh.pop %v2048
    %v2193 = vtanh.pop %v2049
    %v2194 = vtanh.pop %v2050
    %v2195 = vtanh.pop %v2051
    %v2196 = vtanh.pop %v2052
    %v2197 = vtanh.pop %v2053
    %v2198 = vtanh.pop %v2054
    %v2199 = vtanh.pop %v2055
    %v2200 = vtanh.pop %v2056
    %v2201 = vtanh.pop %v2057
    %v2202 = vtanh.pop %v2058
    %v2203 = vtanh.pop %v2059
    %v2204 = vtanh.pop %v2060
    %v2205 = vtanh.pop %v2061
    %v2206 = vtanh.pop %v2062
    %v2207 = vtanh.pop %v2063
    %v2208 = vtanh.pop %v2064
    %v2209 = vtanh.pop %v2065
    %v2210 = vtanh.pop %v2066
    %v2211 = vtanh.pop %v2067
    %v2212 = vtanh.pop %v2068
    %v2213 = vtanh.pop %v2069
    %v2214 = vtanh.pop %v2070
    %v2215 = vtanh.pop %v2071
    %v2216 = vtanh.pop %v2072
    %v2217 = vtanh.pop %v2073
    %v2218 = vtanh.pop %v2074
    %v2219 = vtanh.pop %v2075
    %v2220 = vtanh.pop %v2076
    %v2221 = vtanh.pop %v2077
    %v2222 = vtanh.pop %v2078
    %v2223 = vtanh.pop %v2079
    %v2224 = vtanh.pop %v2080
    %v2225 = vtanh.pop %v2081
    %v2226 = vtanh.pop %v2082
    %v2227 = vtanh.pop %v2083
    %v2228 = vtanh.pop %v2084
    %v2229 = vtanh.pop %v2085
    %v2230 = vtanh.pop %v2086
    %v2231 = vtanh.pop %v2087
    %v2232 = vtanh.pop %v2088
    %v2233 = vtanh.pop %v2089
    %v2234 = vtanh.pop %v2090
    %v2235 = vtanh.pop %v2091
    %v2236 = vtanh.pop %v2092
    %v2237 = vtanh.pop %v2093
    %v2238 = vtanh.pop %v2094
    %v2239 = vtanh.pop %v2095
    %v2240 = vtanh.pop %v2096
    %v2241 = vtanh.pop %v2097
    %v2242 = vtanh.pop %v2098
    %v2243 = vtanh.pop %v2099
    %v2244 = vtanh.pop %v2100
    %v2245 = vtanh.pop %v2101
    %v2246 = vtanh.pop %v2102
    %v2247 = vtanh.pop %v2103
    %v2248 = vtanh.pop %v2104
    %v2249 = vtanh.pop %v2105
    %v2250 = vtanh.pop %v2106
    %v2251 = vtanh.pop %v2107
    %v2252 = vtanh.pop %v2108
    %v2253 = vtanh.pop %v2109
    %v2254 = vtanh.pop %v2110
    %v2255 = vtanh.pop %v2111
    %v2256 = vtanh.pop %v2112
    %v2257 = vtanh.pop %v2113
    %v2258 = vtanh.pop %v2114
    %v2259 = vtanh.pop %v2115
    %v2260 = vtanh.pop %v2116
    %v2261 = vtanh.pop %v2117
    %v2262 = vtanh.pop %v2118
    %v2263 = vtanh.pop %v2119
    %v2264 = vtanh.pop %v2120
    %v2265 = vtanh.pop %v2121
    %v2266 = vtanh.pop %v2122
    %v2267 = vtanh.pop %v2123
    %v2268 = vtanh.pop %v2124
    %v2269 = vtanh.pop %v2125
    %v2270 = vtanh.pop %v2126
    %v2271 = vtanh.pop %v2127
    %v2272 = vtanh.pop %v2128
    %v2273 = vtanh.pop %v2129
    %v2274 = vtanh.pop %v2130
    %v2275 = vtanh.pop %v2131
    %v2276 = vtanh.pop %v2132
    %v2277 = vtanh.pop %v2133
    %v2278 = vtanh.pop %v2134
    %v2279 = vtanh.pop %v2135
    %v2280 = vtanh.pop %v2136
    %v2281 = vtanh.pop %v2137
    %v2282 = vtanh.pop %v2138
    %v2283 = vtanh.pop %v2139
    %v2284 = vtanh.pop %v2140
    %v2285 = vtanh.pop %v2141
    %v2286 = vtanh.pop %v2142
    %v2287 = vtanh.pop %v2143
    %v2288 = vtanh.pop %v2144
    %v2289 = vtanh.pop %v2145
    %v2290 = vtanh.pop %v2146
    %v2291 = vtanh.pop %v2147
    %v2292 = vtanh.pop %v2148
    %v2293 = vtanh.pop %v2149
    %v2294 = vtanh.pop %v2150
    %v2295 = vtanh.pop %v2151
    %v2296 = vtanh.pop %v2152
    %v2297 = vtanh.pop %v2153
    %v2298 = vtanh.pop %v2154
    %v2299 = vtanh.pop %v2155
    %v2300 = vtanh.pop %v2156
    %v2301 = vtanh.pop %v2157
    %v2302 = vtanh.pop %v2158
    %v2303 = vtanh.pop %v2159
    %v2304 = vtanh.pop %v2160
    %v2305 = vtanh.pop %v2161
    %v2306 = vtanh.pop %v2162
    %v2307 = vtanh.pop %v2163
    %v2308 = vtanh.pop %v2164
    %v2309 = vtanh.pop %v2165
    %v2310 = vtanh.pop %v2166
    %v2311 = vtanh.pop %v2167
    %v2312 = vtanh.pop %v2168
    %v2313 = vtanh.pop %v2169
    %v2314 = vtanh.pop %v2170
    %v2315 = vtanh.pop %v2171
    %v2316 = vtanh.pop %v2172
    %v2317 = vmax.f32 %v2173, 0.0
    %v2318 = vmax.f32 %v2174, 0.0
    %v2319 = vmax.f32 %v2175, 0.0
    %v2320 = vmax.f32 %v2176, 0.0
    %v2321 = vmax.f32 %v2177, 0.0
    %v2322 = vmax.f32 %v2178, 0.0
    %v2323 = vmax.f32 %v2179, 0.0
    %v2324 = vmax.f32 %v2180, 0.0
    %v2325 = vmax.f32 %v2181, 0.0
    %v2326 = vmax.f32 %v2182, 0.0
    %v2327 = vmax.f32 %v2183, 0.0
    %v2328 = vmax.f32 %v2184, 0.0
    %v2329 = vmax.f32 %v2185, 0.0
    %v2330 = vmax.f32 %v2186, 0.0
    %v2331 = vmax.f32 %v2187, 0.0
    %v2332 = vmax.f32 %v2188, 0.0
    %v2333 = vmax.f32 %v2189, 0.0
    %v2334 = vmax.f32 %v2190, 0.0
    %v2335 = vmax.f32 %v2191, 0.0
    %v2336 = vmax.f32 %v2192, 0.0
    %v2337 = vmax.f32 %v2193, 0.0
    %v2338 = vmax.f32 %v2194, 0.0
    %v2339 = vmax.f32 %v2195, 0.0
    %v2340 = vmax.f32 %v2196, 0.0
    %v2341 = vmax.f32 %v2197, 0.0
    %v2342 = vmax.f32 %v2198, 0.0
    %v2343 = vmax.f32 %v2199, 0.0
    %v2344 = vmax.f32 %v2200, 0.0
    %v2345 = vmax.f32 %v2201, 0.0
    %v2346 = vmax.f32 %v2202, 0.0
    %v2347 = vmax.f32 %v2203, 0.0
    %v2348 = vmax.f32 %v2204, 0.0
    %v2349 = vmax.f32 %v2205, 0.0
    %v2350 = vmax.f32 %v2206, 0.0
    %v2351 = vmax.f32 %v2207, 0.0
    %v2352 = vmax.f32 %v2208, 0.0
    %v2353 = vmax.f32 %v2209, 0.0
    %v2354 = vmax.f32 %v2210, 0.0
    %v2355 = vmax.f32 %v2211, 0.0
    %v2356 = vmax.f32 %v2212, 0.0
    %v2357 = vmax.f32 %v2213, 0.0
    %v2358 = vmax.f32 %v2214, 0.0
    %v2359 = vmax.f32 %v2215, 0.0
    %v2360 = vmax.f32 %v2216, 0.0
    %v2361 = vmax.f32 %v2217, 0.0
    %v2362 = vmax.f32 %v2218, 0.0
    %v2363 = vmax.f32 %v2219, 0.0
    %v2364 = vmax.f32 %v2220, 0.0
    %v2365 = vmax.f32 %v2221, 0.0
    %v2366 = vmax.f32 %v2222, 0.0
    %v2367 = vmax.f32 %v2223, 0.0
    %v2368 = vmax.f32 %v2224, 0.0
    %v2369 = vmax.f32 %v2225, 0.0
    %v2370 = vmax.f32 %v2226, 0.0
    %v2371 = vmax.f32 %v2227, 0.0
    %v2372 = vmax.f32 %v2228, 0.0
    %v2373 = vmax.f32 %v2229, 0.0
    %v2374 = vmax.f32 %v2230, 0.0
    %v2375 = vmax.f32 %v2231, 0.0
    %v2376 = vmax.f32 %v2232, 0.0
    %v2377 = vmax.f32 %v2233, 0.0
    %v2378 = vmax.f32 %v2234, 0.0
    %v2379 = vmax.f32 %v2235, 0.0
    %v2380 = vmax.f32 %v2236, 0.0
    %v2381 = vmax.f32 %v2237, 0.0
    %v2382 = vmax.f32 %v2238, 0.0
    %v2383 = vmax.f32 %v2239, 0.0
    %v2384 = vmax.f32 %v2240, 0.0
    %v2385 = vmax.f32 %v2241, 0.0
    %v2386 = vmax.f32 %v2242, 0.0
    %v2387 = vmax.f32 %v2243, 0.0
    %v2388 = vmax.f32 %v2244, 0.0
    %v2389 = vmax.f32 %v2245, 0.0
    %v2390 = vmax.f32 %v2246, 0.0
    %v2391 = vmax.f32 %v2247, 0.0
    %v2392 = vmax.f32 %v2248, 0.0
    %v2393 = vmax.f32 %v2249, 0.0
    %v2394 = vmax.f32 %v2250, 0.0
    %v2395 = vmax.f32 %v2251, 0.0
    %v2396 = vmax.f32 %v2252, 0.0
    %v2397 = vmax.f32 %v2253, 0.0
    %v2398 = vmax.f32 %v2254, 0.0
    %v2399 = vmax.f32 %v2255, 0.0
    %v2400 = vmax.f32 %v2256, 0.0
    %v2401 = vmax.f32 %v2257, 0.0
    %v2402 = vmax.f32 %v2258, 0.0
    %v2403 = vmax.f32 %v2259, 0.0
    %v2404 = vmax.f32 %v2260, 0.0
    %v2405 = vmax.f32 %v2261, 0.0
    %v2406 = vmax.f32 %v2262, 0.0
    %v2407 = vmax.f32 %v2263, 0.0
    %v2408 = vmax.f32 %v2264, 0.0
    %v2409 = vmax.f32 %v2265, 0.0
    %v2410 = vmax.f32 %v2266, 0.0
    %v2411 = vmax.f32 %v2267, 0.0
    %v2412 = vmax.f32 %v2268, 0.0
    %v2413 = vmax.f32 %v2269, 0.0
    %v2414 = vmax.f32 %v2270, 0.0
    %v2415 = vmax.f32 %v2271, 0.0
    %v2416 = vmax.f32 %v2272, 0.0
    %v2417 = vmax.f32 %v2273, 0.0
    %v2418 = vmax.f32 %v2274, 0.0
    %v2419 = vmax.f32 %v2275, 0.0
    %v2420 = vmax.f32 %v2276, 0.0
    %v2421 = vmax.f32 %v2277, 0.0
    %v2422 = vmax.f32 %v2278, 0.0
    %v2423 = vmax.f32 %v2279, 0.0
    %v2424 = vmax.f32 %v2280, 0.0
    %v2425 = vmax.f32 %v2281, 0.0
    %v2426 = vmax.f32 %v2282, 0.0
    %v2427 = vmax.f32 %v2283, 0.0
    %v2428 = vmax.f32 %v2284, 0.0
    %v2429 = vmax.f32 %v2285, 0.0
    %v2430 = vmax.f32 %v2286, 0.0
    %v2431 = vmax.f32 %v2287, 0.0
    %v2432 = vmax.f32 %v2288, 0.0
    %v2433 = vmax.f32 %v2289, 0.0
    %v2434 = vmax.f32 %v2290, 0.0
    %v2435 = vmax.f32 %v2291, 0.0
    %v2436 = vmax.f32 %v2292, 0.0
    %v2437 = vmax.f32 %v2293, 0.0
    %v2438 = vmax.f32 %v2294, 0.0
    %v2439 = vmax.f32 %v2295, 0.0
    %v2440 = vmax.f32 %v2296, 0.0
    %v2441 = vmax.f32 %v2297, 0.0
    %v2442 = vmax.f32 %v2298, 0.0
    %v2443 = vmax.f32 %v2299, 0.0
    %v2444 = vmax.f32 %v2300, 0.0
    %v2445 = vmax.f32 %v2301, 0.0
    %v2446 = vmax.f32 %v2302, 0.0
    %v2447 = vmax.f32 %v2303, 0.0
    %v2448 = vmax.f32 %v2304, 0.0
    %v2449 = vmax.f32 %v2305, 0.0
    %v2450 = vmax.f32 %v2306, 0.0
    %v2451 = vmax.f32 %v2307, 0.0
    %v2452 = vmax.f32 %v2308, 0.0
    %v2453 = vmax.f32 %v2309, 0.0
    %v2454 = vmax.f32 %v2310, 0.0
    %v2455 = vmax.f32 %v2311, 0.0
    %v2456 = vmax.f32 %v2312, 0.0
    %v2457 = vmax.f32 %v2313, 0.0
    %v2458 = vmax.f32 %v2314, 0.0
    %v2459 = vmax.f32 %v2315, 0.0
    %v2460 = vmax.f32 %v2316, 0.0
    %vm2461 = vcmp.eq.s32.totalorder %v440, 0
    %vm2462 = vcmp.eq.s32.totalorder %v441, 0
    %vm2463 = vcmp.eq.s32.totalorder %v442, 0
    %vm2464 = vcmp.eq.s32.totalorder %v443, 0
    %vm2465 = vcmp.eq.s32.totalorder %v444, 0
    %vm2466 = vcmp.eq.s32.totalorder %v445, 0
    %vm2467 = vcmp.eq.s32.totalorder %v446, 0
    %vm2468 = vcmp.eq.s32.totalorder %v447, 0
    %vm2469 = vcmp.eq.s32.totalorder %v448, 0
    %vm2470 = vcmp.eq.s32.totalorder %v449, 0
    %vm2471 = vcmp.eq.s32.totalorder %v450, 0
    %vm2472 = vcmp.eq.s32.totalorder %v451, 0
    %vm2473 = vcmp.eq.s32.totalorder %v452, 0
    %vm2474 = vcmp.eq.s32.totalorder %v453, 0
    %vm2475 = vcmp.eq.s32.totalorder %v454, 0
    %vm2476 = vcmp.eq.s32.totalorder %v455, 0
    %vm2477 = vcmp.eq.s32.totalorder %v456, 0
    %vm2478 = vcmp.eq.s32.totalorder %v457, 0
    %vm2479 = vcmp.eq.s32.totalorder %v458, 0
    %vm2480 = vcmp.eq.s32.totalorder %v459, 0
    %vm2481 = vcmp.eq.s32.totalorder %v460, 0
    %vm2482 = vcmp.eq.s32.totalorder %v461, 0
    %vm2483 = vcmp.eq.s32.totalorder %v462, 0
    %vm2484 = vcmp.eq.s32.totalorder %v463, 0
    %vm2485 = vcmp.eq.s32.totalorder %v464, 0
    %vm2486 = vcmp.eq.s32.totalorder %v465, 0
    %vm2487 = vcmp.eq.s32.totalorder %v466, 0
    %vm2488 = vcmp.eq.s32.totalorder %v467, 0
    %vm2489 = vcmp.eq.s32.totalorder %v468, 0
    %vm2490 = vcmp.eq.s32.totalorder %v469, 0
    %vm2491 = vcmp.eq.s32.totalorder %v470, 0
    %vm2492 = vcmp.eq.s32.totalorder %v471, 0
    %vm2493 = vcmp.eq.s32.totalorder %v472, 0
    %vm2494 = vcmp.eq.s32.totalorder %v473, 0
    %vm2495 = vcmp.eq.s32.totalorder %v474, 0
    %vm2496 = vcmp.eq.s32.totalorder %v475, 0
    %vm2497 = vcmp.eq.s32.totalorder %v476, 0
    %vm2498 = vcmp.eq.s32.totalorder %v477, 0
    %vm2499 = vcmp.eq.s32.totalorder %v478, 0
    %vm2500 = vcmp.eq.s32.totalorder %v479, 0
    %vm2501 = vcmp.eq.s32.totalorder %v480, 0
    %vm2502 = vcmp.eq.s32.totalorder %v481, 0
    %vm2503 = vcmp.eq.s32.totalorder %v482, 0
    %vm2504 = vcmp.eq.s32.totalorder %v483, 0
    %vm2505 = vcmp.eq.s32.totalorder %v484, 0
    %vm2506 = vcmp.eq.s32.totalorder %v485, 0
    %vm2507 = vcmp.eq.s32.totalorder %v486, 0
    %vm2508 = vcmp.eq.s32.totalorder %v487, 0
    %vm2509 = vcmp.eq.s32.totalorder %v488, 0
    %vm2510 = vcmp.eq.s32.totalorder %v489, 0
    %vm2511 = vcmp.eq.s32.totalorder %v490, 0
    %vm2512 = vcmp.eq.s32.totalorder %v491, 0
    %vm2513 = vcmp.eq.s32.totalorder %v492, 0
    %vm2514 = vcmp.eq.s32.totalorder %v493, 0
    %vm2515 = vcmp.eq.s32.totalorder %v494, 0
    %vm2516 = vcmp.eq.s32.totalorder %v495, 0
    %vm2517 = vcmp.eq.s32.totalorder %v496, 0
    %vm2518 = vcmp.eq.s32.totalorder %v497, 0
    %vm2519 = vcmp.eq.s32.totalorder %v498, 0
    %vm2520 = vcmp.eq.s32.totalorder %v499, 0
    %vm2521 = vcmp.eq.s32.totalorder %v500, 0
    %vm2522 = vcmp.eq.s32.totalorder %v501, 0
    %vm2523 = vcmp.eq.s32.totalorder %v502, 0
    %vm2524 = vcmp.eq.s32.totalorder %v503, 0
    %vm2525 = vcmp.eq.s32.totalorder %v504, 0
    %vm2526 = vcmp.eq.s32.totalorder %v505, 0
    %vm2527 = vcmp.eq.s32.totalorder %v506, 0
    %vm2528 = vcmp.eq.s32.totalorder %v507, 0
    %vm2529 = vcmp.eq.s32.totalorder %v508, 0
    %vm2530 = vcmp.eq.s32.totalorder %v509, 0
    %vm2531 = vcmp.eq.s32.totalorder %v510, 0
    %vm2532 = vcmp.eq.s32.totalorder %v511, 0
    %vm2533 = vcmp.eq.s32.totalorder %v512, 0
    %vm2534 = vcmp.eq.s32.totalorder %v513, 0
    %vm2535 = vcmp.eq.s32.totalorder %v514, 0
    %vm2536 = vcmp.eq.s32.totalorder %v515, 0
    %vm2537 = vcmp.eq.s32.totalorder %v516, 0
    %vm2538 = vcmp.eq.s32.totalorder %v517, 0
    %vm2539 = vcmp.eq.s32.totalorder %v518, 0
    %vm2540 = vcmp.eq.s32.totalorder %v519, 0
    %vm2541 = vcmp.eq.s32.totalorder %v520, 0
    %vm2542 = vcmp.eq.s32.totalorder %v521, 0
    %vm2543 = vcmp.eq.s32.totalorder %v522, 0
    %vm2544 = vcmp.eq.s32.totalorder %v523, 0
    %vm2545 = vcmp.eq.s32.totalorder %v524, 0
    %vm2546 = vcmp.eq.s32.totalorder %v525, 0
    %vm2547 = vcmp.eq.s32.totalorder %v526, 0
    %vm2548 = vcmp.eq.s32.totalorder %v527, 0
    %vm2549 = vcmp.eq.s32.totalorder %v528, 0
    %vm2550 = vcmp.eq.s32.totalorder %v529, 0
    %vm2551 = vcmp.eq.s32.totalorder %v530, 0
    %vm2552 = vcmp.eq.s32.totalorder %v531, 0
    %vm2553 = vcmp.eq.s32.totalorder %v532, 0
    %vm2554 = vcmp.eq.s32.totalorder %v533, 0
    %vm2555 = vcmp.eq.s32.totalorder %v534, 0
    %vm2556 = vcmp.eq.s32.totalorder %v535, 0
    %vm2557 = vcmp.eq.s32.totalorder %v536, 0
    %vm2558 = vcmp.eq.s32.totalorder %v537, 0
    %vm2559 = vcmp.eq.s32.totalorder %v538, 0
    %vm2560 = vcmp.eq.s32.totalorder %v539, 0
    %vm2561 = vcmp.eq.s32.totalorder %v540, 0
    %vm2562 = vcmp.eq.s32.totalorder %v541, 0
    %vm2563 = vcmp.eq.s32.totalorder %v542, 0
    %vm2564 = vcmp.eq.s32.totalorder %v543, 0
    %vm2565 = vcmp.eq.s32.totalorder %v544, 0
    %vm2566 = vcmp.eq.s32.totalorder %v545, 0
    %vm2567 = vcmp.eq.s32.totalorder %v546, 0
    %vm2568 = vcmp.eq.s32.totalorder %v547, 0
    %vm2569 = vcmp.eq.s32.totalorder %v548, 0
    %vm2570 = vcmp.eq.s32.totalorder %v549, 0
    %vm2571 = vcmp.eq.s32.totalorder %v550, 0
    %vm2572 = vcmp.eq.s32.totalorder %v551, 0
    %vm2573 = vcmp.eq.s32.totalorder %v552, 0
    %vm2574 = vcmp.eq.s32.totalorder %v553, 0
    %vm2575 = vcmp.eq.s32.totalorder %v554, 0
    %vm2576 = vcmp.eq.s32.totalorder %v555, 0
    %vm2577 = vcmp.eq.s32.totalorder %v556, 0
    %vm2578 = vcmp.eq.s32.totalorder %v557, 0
    %vm2579 = vcmp.eq.s32.totalorder %v558, 0
    %vm2580 = vcmp.eq.s32.totalorder %v559, 0
    %vm2581 = vcmp.eq.s32.totalorder %v560, 0
    %vm2582 = vcmp.eq.s32.totalorder %v561, 0
    %vm2583 = vcmp.eq.s32.totalorder %v562, 0
    %vm2584 = vcmp.eq.s32.totalorder %v563, 0
    %vm2585 = vcmp.eq.s32.totalorder %v564, 0
    %vm2586 = vcmp.eq.s32.totalorder %v565, 0
    %vm2587 = vcmp.eq.s32.totalorder %v566, 0
    %vm2588 = vcmp.eq.s32.totalorder %v567, 0
    %vm2589 = vcmp.eq.s32.totalorder %v568, 0
    %vm2590 = vcmp.eq.s32.totalorder %v569, 0
    %vm2591 = vcmp.eq.s32.totalorder %v570, 0
    %vm2592 = vcmp.eq.s32.totalorder %v571, 0
    %vm2593 = vcmp.eq.s32.totalorder %v572, 0
    %vm2594 = vcmp.eq.s32.totalorder %v573, 0
    %vm2595 = vcmp.eq.s32.totalorder %v574, 0
    %vm2596 = vcmp.eq.s32.totalorder %v575, 0
    %vm2597 = vcmp.eq.s32.totalorder %v576, 0
    %vm2598 = vcmp.eq.s32.totalorder %v577, 0
    %vm2599 = vcmp.eq.s32.totalorder %v578, 0
    %vm2600 = vcmp.eq.s32.totalorder %v579, 0
    %vm2601 = vcmp.eq.s32.totalorder %v580, 0
    %vm2602 = vcmp.eq.s32.totalorder %v581, 0
    %vm2603 = vcmp.eq.s32.totalorder %v582, 0
    %vm2604 = vcmp.eq.s32.totalorder %v583, 0
    %vm2605 = vcmp.eq.s32.totalorder %v440, 1
    %vm2606 = vcmp.eq.s32.totalorder %v441, 1
    %vm2607 = vcmp.eq.s32.totalorder %v442, 1
    %vm2608 = vcmp.eq.s32.totalorder %v443, 1
    %vm2609 = vcmp.eq.s32.totalorder %v444, 1
    %vm2610 = vcmp.eq.s32.totalorder %v445, 1
    %vm2611 = vcmp.eq.s32.totalorder %v446, 1
    %vm2612 = vcmp.eq.s32.totalorder %v447, 1
    %vm2613 = vcmp.eq.s32.totalorder %v448, 1
    %vm2614 = vcmp.eq.s32.totalorder %v449, 1
    %vm2615 = vcmp.eq.s32.totalorder %v450, 1
    %vm2616 = vcmp.eq.s32.totalorder %v451, 1
    %vm2617 = vcmp.eq.s32.totalorder %v452, 1
    %vm2618 = vcmp.eq.s32.totalorder %v453, 1
    %vm2619 = vcmp.eq.s32.totalorder %v454, 1
    %vm2620 = vcmp.eq.s32.totalorder %v455, 1
    %vm2621 = vcmp.eq.s32.totalorder %v456, 1
    %vm2622 = vcmp.eq.s32.totalorder %v457, 1
    %vm2623 = vcmp.eq.s32.totalorder %v458, 1
    %vm2624 = vcmp.eq.s32.totalorder %v459, 1
    %vm2625 = vcmp.eq.s32.totalorder %v460, 1
    %vm2626 = vcmp.eq.s32.totalorder %v461, 1
    %vm2627 = vcmp.eq.s32.totalorder %v462, 1
    %vm2628 = vcmp.eq.s32.totalorder %v463, 1
    %vm2629 = vcmp.eq.s32.totalorder %v464, 1
    %vm2630 = vcmp.eq.s32.totalorder %v465, 1
    %vm2631 = vcmp.eq.s32.totalorder %v466, 1
    %vm2632 = vcmp.eq.s32.totalorder %v467, 1
    %vm2633 = vcmp.eq.s32.totalorder %v468, 1
    %vm2634 = vcmp.eq.s32.totalorder %v469, 1
    %vm2635 = vcmp.eq.s32.totalorder %v470, 1
    %vm2636 = vcmp.eq.s32.totalorder %v471, 1
    %vm2637 = vcmp.eq.s32.totalorder %v472, 1
    %vm2638 = vcmp.eq.s32.totalorder %v473, 1
    %vm2639 = vcmp.eq.s32.totalorder %v474, 1
    %vm2640 = vcmp.eq.s32.totalorder %v475, 1
    %vm2641 = vcmp.eq.s32.totalorder %v476, 1
    %vm2642 = vcmp.eq.s32.totalorder %v477, 1
    %vm2643 = vcmp.eq.s32.totalorder %v478, 1
    %vm2644 = vcmp.eq.s32.totalorder %v479, 1
    %vm2645 = vcmp.eq.s32.totalorder %v480, 1
    %vm2646 = vcmp.eq.s32.totalorder %v481, 1
    %vm2647 = vcmp.eq.s32.totalorder %v482, 1
    %vm2648 = vcmp.eq.s32.totalorder %v483, 1
    %vm2649 = vcmp.eq.s32.totalorder %v484, 1
    %vm2650 = vcmp.eq.s32.totalorder %v485, 1
    %vm2651 = vcmp.eq.s32.totalorder %v486, 1
    %vm2652 = vcmp.eq.s32.totalorder %v487, 1
    %vm2653 = vcmp.eq.s32.totalorder %v488, 1
    %vm2654 = vcmp.eq.s32.totalorder %v489, 1
    %vm2655 = vcmp.eq.s32.totalorder %v490, 1
    %vm2656 = vcmp.eq.s32.totalorder %v491, 1
    %vm2657 = vcmp.eq.s32.totalorder %v492, 1
    %vm2658 = vcmp.eq.s32.totalorder %v493, 1
    %vm2659 = vcmp.eq.s32.totalorder %v494, 1
    %vm2660 = vcmp.eq.s32.totalorder %v495, 1
    %vm2661 = vcmp.eq.s32.totalorder %v496, 1
    %vm2662 = vcmp.eq.s32.totalorder %v497, 1
    %vm2663 = vcmp.eq.s32.totalorder %v498, 1
    %vm2664 = vcmp.eq.s32.totalorder %v499, 1
    %vm2665 = vcmp.eq.s32.totalorder %v500, 1
    %vm2666 = vcmp.eq.s32.totalorder %v501, 1
    %vm2667 = vcmp.eq.s32.totalorder %v502, 1
    %vm2668 = vcmp.eq.s32.totalorder %v503, 1
    %vm2669 = vcmp.eq.s32.totalorder %v504, 1
    %vm2670 = vcmp.eq.s32.totalorder %v505, 1
    %vm2671 = vcmp.eq.s32.totalorder %v506, 1
    %vm2672 = vcmp.eq.s32.totalorder %v507, 1
    %vm2673 = vcmp.eq.s32.totalorder %v508, 1
    %vm2674 = vcmp.eq.s32.totalorder %v509, 1
    %vm2675 = vcmp.eq.s32.totalorder %v510, 1
    %vm2676 = vcmp.eq.s32.totalorder %v511, 1
    %vm2677 = vcmp.eq.s32.totalorder %v512, 1
    %vm2678 = vcmp.eq.s32.totalorder %v513, 1
    %vm2679 = vcmp.eq.s32.totalorder %v514, 1
    %vm2680 = vcmp.eq.s32.totalorder %v515, 1
    %vm2681 = vcmp.eq.s32.totalorder %v516, 1
    %vm2682 = vcmp.eq.s32.totalorder %v517, 1
    %vm2683 = vcmp.eq.s32.totalorder %v518, 1
    %vm2684 = vcmp.eq.s32.totalorder %v519, 1
    %vm2685 = vcmp.eq.s32.totalorder %v520, 1
    %vm2686 = vcmp.eq.s32.totalorder %v521, 1
    %vm2687 = vcmp.eq.s32.totalorder %v522, 1
    %vm2688 = vcmp.eq.s32.totalorder %v523, 1
    %vm2689 = vcmp.eq.s32.totalorder %v524, 1
    %vm2690 = vcmp.eq.s32.totalorder %v525, 1
    %vm2691 = vcmp.eq.s32.totalorder %v526, 1
    %vm2692 = vcmp.eq.s32.totalorder %v527, 1
    %vm2693 = vcmp.eq.s32.totalorder %v528, 1
    %vm2694 = vcmp.eq.s32.totalorder %v529, 1
    %vm2695 = vcmp.eq.s32.totalorder %v530, 1
    %vm2696 = vcmp.eq.s32.totalorder %v531, 1
    %vm2697 = vcmp.eq.s32.totalorder %v532, 1
    %vm2698 = vcmp.eq.s32.totalorder %v533, 1
    %vm2699 = vcmp.eq.s32.totalorder %v534, 1
    %vm2700 = vcmp.eq.s32.totalorder %v535, 1
    %vm2701 = vcmp.eq.s32.totalorder %v536, 1
    %vm2702 = vcmp.eq.s32.totalorder %v537, 1
    %vm2703 = vcmp.eq.s32.totalorder %v538, 1
    %vm2704 = vcmp.eq.s32.totalorder %v539, 1
    %vm2705 = vcmp.eq.s32.totalorder %v540, 1
    %vm2706 = vcmp.eq.s32.totalorder %v541, 1
    %vm2707 = vcmp.eq.s32.totalorder %v542, 1
    %vm2708 = vcmp.eq.s32.totalorder %v543, 1
    %vm2709 = vcmp.eq.s32.totalorder %v544, 1
    %vm2710 = vcmp.eq.s32.totalorder %v545, 1
    %vm2711 = vcmp.eq.s32.totalorder %v546, 1
    %vm2712 = vcmp.eq.s32.totalorder %v547, 1
    %vm2713 = vcmp.eq.s32.totalorder %v548, 1
    %vm2714 = vcmp.eq.s32.totalorder %v549, 1
    %vm2715 = vcmp.eq.s32.totalorder %v550, 1
    %vm2716 = vcmp.eq.s32.totalorder %v551, 1
    %vm2717 = vcmp.eq.s32.totalorder %v552, 1
    %vm2718 = vcmp.eq.s32.totalorder %v553, 1
    %vm2719 = vcmp.eq.s32.totalorder %v554, 1
    %vm2720 = vcmp.eq.s32.totalorder %v555, 1
    %vm2721 = vcmp.eq.s32.totalorder %v556, 1
    %vm2722 = vcmp.eq.s32.totalorder %v557, 1
    %vm2723 = vcmp.eq.s32.totalorder %v558, 1
    %vm2724 = vcmp.eq.s32.totalorder %v559, 1
    %vm2725 = vcmp.eq.s32.totalorder %v560, 1
    %vm2726 = vcmp.eq.s32.totalorder %v561, 1
    %vm2727 = vcmp.eq.s32.totalorder %v562, 1
    %vm2728 = vcmp.eq.s32.totalorder %v563, 1
    %vm2729 = vcmp.eq.s32.totalorder %v564, 1
    %vm2730 = vcmp.eq.s32.totalorder %v565, 1
    %vm2731 = vcmp.eq.s32.totalorder %v566, 1
    %vm2732 = vcmp.eq.s32.totalorder %v567, 1
    %vm2733 = vcmp.eq.s32.totalorder %v568, 1
    %vm2734 = vcmp.eq.s32.totalorder %v569, 1
    %vm2735 = vcmp.eq.s32.totalorder %v570, 1
    %vm2736 = vcmp.eq.s32.totalorder %v571, 1
    %vm2737 = vcmp.eq.s32.totalorder %v572, 1
    %vm2738 = vcmp.eq.s32.totalorder %v573, 1
    %vm2739 = vcmp.eq.s32.totalorder %v574, 1
    %vm2740 = vcmp.eq.s32.totalorder %v575, 1
    %vm2741 = vcmp.eq.s32.totalorder %v576, 1
    %vm2742 = vcmp.eq.s32.totalorder %v577, 1
    %vm2743 = vcmp.eq.s32.totalorder %v578, 1
    %vm2744 = vcmp.eq.s32.totalorder %v579, 1
    %vm2745 = vcmp.eq.s32.totalorder %v580, 1
    %vm2746 = vcmp.eq.s32.totalorder %v581, 1
    %vm2747 = vcmp.eq.s32.totalorder %v582, 1
    %vm2748 = vcmp.eq.s32.totalorder %v583, 1
    %vm2749 = vcmp.eq.s32.totalorder %v440, 2
    %vm2750 = vcmp.eq.s32.totalorder %v441, 2
    %vm2751 = vcmp.eq.s32.totalorder %v442, 2
    %vm2752 = vcmp.eq.s32.totalorder %v443, 2
    %vm2753 = vcmp.eq.s32.totalorder %v444, 2
    %vm2754 = vcmp.eq.s32.totalorder %v445, 2
    %vm2755 = vcmp.eq.s32.totalorder %v446, 2
    %vm2756 = vcmp.eq.s32.totalorder %v447, 2
    %vm2757 = vcmp.eq.s32.totalorder %v448, 2
    %vm2758 = vcmp.eq.s32.totalorder %v449, 2
    %vm2759 = vcmp.eq.s32.totalorder %v450, 2
    %vm2760 = vcmp.eq.s32.totalorder %v451, 2
    %vm2761 = vcmp.eq.s32.totalorder %v452, 2
    %vm2762 = vcmp.eq.s32.totalorder %v453, 2
    %vm2763 = vcmp.eq.s32.totalorder %v454, 2
    %vm2764 = vcmp.eq.s32.totalorder %v455, 2
    %vm2765 = vcmp.eq.s32.totalorder %v456, 2
    %vm2766 = vcmp.eq.s32.totalorder %v457, 2
    %vm2767 = vcmp.eq.s32.totalorder %v458, 2
    %vm2768 = vcmp.eq.s32.totalorder %v459, 2
    %vm2769 = vcmp.eq.s32.totalorder %v460, 2
    %vm2770 = vcmp.eq.s32.totalorder %v461, 2
    %vm2771 = vcmp.eq.s32.totalorder %v462, 2
    %vm2772 = vcmp.eq.s32.totalorder %v463, 2
    %vm2773 = vcmp.eq.s32.totalorder %v464, 2
    %vm2774 = vcmp.eq.s32.totalorder %v465, 2
    %vm2775 = vcmp.eq.s32.totalorder %v466, 2
    %vm2776 = vcmp.eq.s32.totalorder %v467, 2
    %vm2777 = vcmp.eq.s32.totalorder %v468, 2
    %vm2778 = vcmp.eq.s32.totalorder %v469, 2
    %vm2779 = vcmp.eq.s32.totalorder %v470, 2
    %vm2780 = vcmp.eq.s32.totalorder %v471, 2
    %vm2781 = vcmp.eq.s32.totalorder %v472, 2
    %vm2782 = vcmp.eq.s32.totalorder %v473, 2
    %vm2783 = vcmp.eq.s32.totalorder %v474, 2
    %vm2784 = vcmp.eq.s32.totalorder %v475, 2
    %vm2785 = vcmp.eq.s32.totalorder %v476, 2
    %vm2786 = vcmp.eq.s32.totalorder %v477, 2
    %vm2787 = vcmp.eq.s32.totalorder %v478, 2
    %vm2788 = vcmp.eq.s32.totalorder %v479, 2
    %vm2789 = vcmp.eq.s32.totalorder %v480, 2
    %vm2790 = vcmp.eq.s32.totalorder %v481, 2
    %vm2791 = vcmp.eq.s32.totalorder %v482, 2
    %vm2792 = vcmp.eq.s32.totalorder %v483, 2
    %vm2793 = vcmp.eq.s32.totalorder %v484, 2
    %vm2794 = vcmp.eq.s32.totalorder %v485, 2
    %vm2795 = vcmp.eq.s32.totalorder %v486, 2
    %vm2796 = vcmp.eq.s32.totalorder %v487, 2
    %vm2797 = vcmp.eq.s32.totalorder %v488, 2
    %vm2798 = vcmp.eq.s32.totalorder %v489, 2
    %vm2799 = vcmp.eq.s32.totalorder %v490, 2
    %vm2800 = vcmp.eq.s32.totalorder %v491, 2
    %vm2801 = vcmp.eq.s32.totalorder %v492, 2
    %vm2802 = vcmp.eq.s32.totalorder %v493, 2
    %vm2803 = vcmp.eq.s32.totalorder %v494, 2
    %vm2804 = vcmp.eq.s32.totalorder %v495, 2
    %vm2805 = vcmp.eq.s32.totalorder %v496, 2
    %vm2806 = vcmp.eq.s32.totalorder %v497, 2
    %vm2807 = vcmp.eq.s32.totalorder %v498, 2
    %vm2808 = vcmp.eq.s32.totalorder %v499, 2
    %vm2809 = vcmp.eq.s32.totalorder %v500, 2
    %vm2810 = vcmp.eq.s32.totalorder %v501, 2
    %vm2811 = vcmp.eq.s32.totalorder %v502, 2
    %vm2812 = vcmp.eq.s32.totalorder %v503, 2
    %vm2813 = vcmp.eq.s32.totalorder %v504, 2
    %vm2814 = vcmp.eq.s32.totalorder %v505, 2
    %vm2815 = vcmp.eq.s32.totalorder %v506, 2
    %vm2816 = vcmp.eq.s32.totalorder %v507, 2
    %vm2817 = vcmp.eq.s32.totalorder %v508, 2
    %vm2818 = vcmp.eq.s32.totalorder %v509, 2
    %vm2819 = vcmp.eq.s32.totalorder %v510, 2
    %vm2820 = vcmp.eq.s32.totalorder %v511, 2
    %vm2821 = vcmp.eq.s32.totalorder %v512, 2
    %vm2822 = vcmp.eq.s32.totalorder %v513, 2
    %vm2823 = vcmp.eq.s32.totalorder %v514, 2
    %vm2824 = vcmp.eq.s32.totalorder %v515, 2
    %vm2825 = vcmp.eq.s32.totalorder %v516, 2
    %vm2826 = vcmp.eq.s32.totalorder %v517, 2
    %vm2827 = vcmp.eq.s32.totalorder %v518, 2
    %vm2828 = vcmp.eq.s32.totalorder %v519, 2
    %vm2829 = vcmp.eq.s32.totalorder %v520, 2
    %vm2830 = vcmp.eq.s32.totalorder %v521, 2
    %vm2831 = vcmp.eq.s32.totalorder %v522, 2
    %vm2832 = vcmp.eq.s32.totalorder %v523, 2
    %vm2833 = vcmp.eq.s32.totalorder %v524, 2
    %vm2834 = vcmp.eq.s32.totalorder %v525, 2
    %vm2835 = vcmp.eq.s32.totalorder %v526, 2
    %vm2836 = vcmp.eq.s32.totalorder %v527, 2
    %vm2837 = vcmp.eq.s32.totalorder %v528, 2
    %vm2838 = vcmp.eq.s32.totalorder %v529, 2
    %vm2839 = vcmp.eq.s32.totalorder %v530, 2
    %vm2840 = vcmp.eq.s32.totalorder %v531, 2
    %vm2841 = vcmp.eq.s32.totalorder %v532, 2
    %vm2842 = vcmp.eq.s32.totalorder %v533, 2
    %vm2843 = vcmp.eq.s32.totalorder %v534, 2
    %vm2844 = vcmp.eq.s32.totalorder %v535, 2
    %vm2845 = vcmp.eq.s32.totalorder %v536, 2
    %vm2846 = vcmp.eq.s32.totalorder %v537, 2
    %vm2847 = vcmp.eq.s32.totalorder %v538, 2
    %vm2848 = vcmp.eq.s32.totalorder %v539, 2
    %vm2849 = vcmp.eq.s32.totalorder %v540, 2
    %vm2850 = vcmp.eq.s32.totalorder %v541, 2
    %vm2851 = vcmp.eq.s32.totalorder %v542, 2
    %vm2852 = vcmp.eq.s32.totalorder %v543, 2
    %vm2853 = vcmp.eq.s32.totalorder %v544, 2
    %vm2854 = vcmp.eq.s32.totalorder %v545, 2
    %vm2855 = vcmp.eq.s32.totalorder %v546, 2
    %vm2856 = vcmp.eq.s32.totalorder %v547, 2
    %vm2857 = vcmp.eq.s32.totalorder %v548, 2
    %vm2858 = vcmp.eq.s32.totalorder %v549, 2
    %vm2859 = vcmp.eq.s32.totalorder %v550, 2
    %vm2860 = vcmp.eq.s32.totalorder %v551, 2
    %vm2861 = vcmp.eq.s32.totalorder %v552, 2
    %vm2862 = vcmp.eq.s32.totalorder %v553, 2
    %vm2863 = vcmp.eq.s32.totalorder %v554, 2
    %vm2864 = vcmp.eq.s32.totalorder %v555, 2
    %vm2865 = vcmp.eq.s32.totalorder %v556, 2
    %vm2866 = vcmp.eq.s32.totalorder %v557, 2
    %vm2867 = vcmp.eq.s32.totalorder %v558, 2
    %vm2868 = vcmp.eq.s32.totalorder %v559, 2
    %vm2869 = vcmp.eq.s32.totalorder %v560, 2
    %vm2870 = vcmp.eq.s32.totalorder %v561, 2
    %vm2871 = vcmp.eq.s32.totalorder %v562, 2
    %vm2872 = vcmp.eq.s32.totalorder %v563, 2
    %vm2873 = vcmp.eq.s32.totalorder %v564, 2
    %vm2874 = vcmp.eq.s32.totalorder %v565, 2
    %vm2875 = vcmp.eq.s32.totalorder %v566, 2
    %vm2876 = vcmp.eq.s32.totalorder %v567, 2
    %vm2877 = vcmp.eq.s32.totalorder %v568, 2
    %vm2878 = vcmp.eq.s32.totalorder %v569, 2
    %vm2879 = vcmp.eq.s32.totalorder %v570, 2
    %vm2880 = vcmp.eq.s32.totalorder %v571, 2
    %vm2881 = vcmp.eq.s32.totalorder %v572, 2
    %vm2882 = vcmp.eq.s32.totalorder %v573, 2
    %vm2883 = vcmp.eq.s32.totalorder %v574, 2
    %vm2884 = vcmp.eq.s32.totalorder %v575, 2
    %vm2885 = vcmp.eq.s32.totalorder %v576, 2
    %vm2886 = vcmp.eq.s32.totalorder %v577, 2
    %vm2887 = vcmp.eq.s32.totalorder %v578, 2
    %vm2888 = vcmp.eq.s32.totalorder %v579, 2
    %vm2889 = vcmp.eq.s32.totalorder %v580, 2
    %vm2890 = vcmp.eq.s32.totalorder %v581, 2
    %vm2891 = vcmp.eq.s32.totalorder %v582, 2
    %vm2892 = vcmp.eq.s32.totalorder %v583, 2
    %vm2893 = vcmp.eq.s32.totalorder %v440, 3
    %vm2894 = vcmp.eq.s32.totalorder %v441, 3
    %vm2895 = vcmp.eq.s32.totalorder %v442, 3
    %vm2896 = vcmp.eq.s32.totalorder %v443, 3
    %vm2897 = vcmp.eq.s32.totalorder %v444, 3
    %vm2898 = vcmp.eq.s32.totalorder %v445, 3
    %vm2899 = vcmp.eq.s32.totalorder %v446, 3
    %vm2900 = vcmp.eq.s32.totalorder %v447, 3
    %vm2901 = vcmp.eq.s32.totalorder %v448, 3
    %vm2902 = vcmp.eq.s32.totalorder %v449, 3
    %vm2903 = vcmp.eq.s32.totalorder %v450, 3
    %vm2904 = vcmp.eq.s32.totalorder %v451, 3
    %vm2905 = vcmp.eq.s32.totalorder %v452, 3
    %vm2906 = vcmp.eq.s32.totalorder %v453, 3
    %vm2907 = vcmp.eq.s32.totalorder %v454, 3
    %vm2908 = vcmp.eq.s32.totalorder %v455, 3
    %vm2909 = vcmp.eq.s32.totalorder %v456, 3
    %vm2910 = vcmp.eq.s32.totalorder %v457, 3
    %vm2911 = vcmp.eq.s32.totalorder %v458, 3
    %vm2912 = vcmp.eq.s32.totalorder %v459, 3
    %vm2913 = vcmp.eq.s32.totalorder %v460, 3
    %vm2914 = vcmp.eq.s32.totalorder %v461, 3
    %vm2915 = vcmp.eq.s32.totalorder %v462, 3
    %vm2916 = vcmp.eq.s32.totalorder %v463, 3
    %vm2917 = vcmp.eq.s32.totalorder %v464, 3
    %vm2918 = vcmp.eq.s32.totalorder %v465, 3
    %vm2919 = vcmp.eq.s32.totalorder %v466, 3
    %vm2920 = vcmp.eq.s32.totalorder %v467, 3
    %vm2921 = vcmp.eq.s32.totalorder %v468, 3
    %vm2922 = vcmp.eq.s32.totalorder %v469, 3
    %vm2923 = vcmp.eq.s32.totalorder %v470, 3
    %vm2924 = vcmp.eq.s32.totalorder %v471, 3
    %vm2925 = vcmp.eq.s32.totalorder %v472, 3
    %vm2926 = vcmp.eq.s32.totalorder %v473, 3
    %vm2927 = vcmp.eq.s32.totalorder %v474, 3
    %vm2928 = vcmp.eq.s32.totalorder %v475, 3
    %vm2929 = vcmp.eq.s32.totalorder %v476, 3
    %vm2930 = vcmp.eq.s32.totalorder %v477, 3
    %vm2931 = vcmp.eq.s32.totalorder %v478, 3
    %vm2932 = vcmp.eq.s32.totalorder %v479, 3
    %vm2933 = vcmp.eq.s32.totalorder %v480, 3
    %vm2934 = vcmp.eq.s32.totalorder %v481, 3
    %vm2935 = vcmp.eq.s32.totalorder %v482, 3
    %vm2936 = vcmp.eq.s32.totalorder %v483, 3
    %vm2937 = vcmp.eq.s32.totalorder %v484, 3
    %vm2938 = vcmp.eq.s32.totalorder %v485, 3
    %vm2939 = vcmp.eq.s32.totalorder %v486, 3
    %vm2940 = vcmp.eq.s32.totalorder %v487, 3
    %vm2941 = vcmp.eq.s32.totalorder %v488, 3
    %vm2942 = vcmp.eq.s32.totalorder %v489, 3
    %vm2943 = vcmp.eq.s32.totalorder %v490, 3
    %vm2944 = vcmp.eq.s32.totalorder %v491, 3
    %vm2945 = vcmp.eq.s32.totalorder %v492, 3
    %vm2946 = vcmp.eq.s32.totalorder %v493, 3
    %vm2947 = vcmp.eq.s32.totalorder %v494, 3
    %vm2948 = vcmp.eq.s32.totalorder %v495, 3
    %vm2949 = vcmp.eq.s32.totalorder %v496, 3
    %vm2950 = vcmp.eq.s32.totalorder %v497, 3
    %vm2951 = vcmp.eq.s32.totalorder %v498, 3
    %vm2952 = vcmp.eq.s32.totalorder %v499, 3
    %vm2953 = vcmp.eq.s32.totalorder %v500, 3
    %vm2954 = vcmp.eq.s32.totalorder %v501, 3
    %vm2955 = vcmp.eq.s32.totalorder %v502, 3
    %vm2956 = vcmp.eq.s32.totalorder %v503, 3
    %vm2957 = vcmp.eq.s32.totalorder %v504, 3
    %vm2958 = vcmp.eq.s32.totalorder %v505, 3
    %vm2959 = vcmp.eq.s32.totalorder %v506, 3
    %vm2960 = vcmp.eq.s32.totalorder %v507, 3
    %vm2961 = vcmp.eq.s32.totalorder %v508, 3
    %vm2962 = vcmp.eq.s32.totalorder %v509, 3
    %vm2963 = vcmp.eq.s32.totalorder %v510, 3
    %vm2964 = vcmp.eq.s32.totalorder %v511, 3
    %vm2965 = vcmp.eq.s32.totalorder %v512, 3
    %vm2966 = vcmp.eq.s32.totalorder %v513, 3
    %vm2967 = vcmp.eq.s32.totalorder %v514, 3
    %vm2968 = vcmp.eq.s32.totalorder %v515, 3
    %vm2969 = vcmp.eq.s32.totalorder %v516, 3
    %vm2970 = vcmp.eq.s32.totalorder %v517, 3
    %vm2971 = vcmp.eq.s32.totalorder %v518, 3
    %vm2972 = vcmp.eq.s32.totalorder %v519, 3
    %vm2973 = vcmp.eq.s32.totalorder %v520, 3
    %vm2974 = vcmp.eq.s32.totalorder %v521, 3
    %vm2975 = vcmp.eq.s32.totalorder %v522, 3
    %vm2976 = vcmp.eq.s32.totalorder %v523, 3
    %vm2977 = vcmp.eq.s32.totalorder %v524, 3
    %vm2978 = vcmp.eq.s32.totalorder %v525, 3
    %vm2979 = vcmp.eq.s32.totalorder %v526, 3
    %vm2980 = vcmp.eq.s32.totalorder %v527, 3
    %vm2981 = vcmp.eq.s32.totalorder %v528, 3
    %vm2982 = vcmp.eq.s32.totalorder %v529, 3
    %vm2983 = vcmp.eq.s32.totalorder %v530, 3
    %vm2984 = vcmp.eq.s32.totalorder %v531, 3
    %vm2985 = vcmp.eq.s32.totalorder %v532, 3
    %vm2986 = vcmp.eq.s32.totalorder %v533, 3
    %vm2987 = vcmp.eq.s32.totalorder %v534, 3
    %vm2988 = vcmp.eq.s32.totalorder %v535, 3
    %vm2989 = vcmp.eq.s32.totalorder %v536, 3
    %vm2990 = vcmp.eq.s32.totalorder %v537, 3
    %vm2991 = vcmp.eq.s32.totalorder %v538, 3
    %vm2992 = vcmp.eq.s32.totalorder %v539, 3
    %vm2993 = vcmp.eq.s32.totalorder %v540, 3
    %vm2994 = vcmp.eq.s32.totalorder %v541, 3
    %vm2995 = vcmp.eq.s32.totalorder %v542, 3
    %vm2996 = vcmp.eq.s32.totalorder %v543, 3
    %vm2997 = vcmp.eq.s32.totalorder %v544, 3
    %vm2998 = vcmp.eq.s32.totalorder %v545, 3
    %vm2999 = vcmp.eq.s32.totalorder %v546, 3
    %vm3000 = vcmp.eq.s32.totalorder %v547, 3
    %vm3001 = vcmp.eq.s32.totalorder %v548, 3
    %vm3002 = vcmp.eq.s32.totalorder %v549, 3
    %vm3003 = vcmp.eq.s32.totalorder %v550, 3
    %vm3004 = vcmp.eq.s32.totalorder %v551, 3
    %vm3005 = vcmp.eq.s32.totalorder %v552, 3
    %vm3006 = vcmp.eq.s32.totalorder %v553, 3
    %vm3007 = vcmp.eq.s32.totalorder %v554, 3
    %vm3008 = vcmp.eq.s32.totalorder %v555, 3
    %vm3009 = vcmp.eq.s32.totalorder %v556, 3
    %vm3010 = vcmp.eq.s32.totalorder %v557, 3
    %vm3011 = vcmp.eq.s32.totalorder %v558, 3
    %vm3012 = vcmp.eq.s32.totalorder %v559, 3
    %vm3013 = vcmp.eq.s32.totalorder %v560, 3
    %vm3014 = vcmp.eq.s32.totalorder %v561, 3
    %vm3015 = vcmp.eq.s32.totalorder %v562, 3
    %vm3016 = vcmp.eq.s32.totalorder %v563, 3
    %vm3017 = vcmp.eq.s32.totalorder %v564, 3
    %vm3018 = vcmp.eq.s32.totalorder %v565, 3
    %vm3019 = vcmp.eq.s32.totalorder %v566, 3
    %vm3020 = vcmp.eq.s32.totalorder %v567, 3
    %vm3021 = vcmp.eq.s32.totalorder %v568, 3
    %vm3022 = vcmp.eq.s32.totalorder %v569, 3
    %vm3023 = vcmp.eq.s32.totalorder %v570, 3
    %vm3024 = vcmp.eq.s32.totalorder %v571, 3
    %vm3025 = vcmp.eq.s32.totalorder %v572, 3
    %vm3026 = vcmp.eq.s32.totalorder %v573, 3
    %vm3027 = vcmp.eq.s32.totalorder %v574, 3
    %vm3028 = vcmp.eq.s32.totalorder %v575, 3
    %vm3029 = vcmp.eq.s32.totalorder %v576, 3
    %vm3030 = vcmp.eq.s32.totalorder %v577, 3
    %vm3031 = vcmp.eq.s32.totalorder %v578, 3
    %vm3032 = vcmp.eq.s32.totalorder %v579, 3
    %vm3033 = vcmp.eq.s32.totalorder %v580, 3
    %vm3034 = vcmp.eq.s32.totalorder %v581, 3
    %vm3035 = vcmp.eq.s32.totalorder %v582, 3
    %vm3036 = vcmp.eq.s32.totalorder %v583, 3
    %vm3037 = vcmp.eq.s32.totalorder %v440, 4
    %vm3038 = vcmp.eq.s32.totalorder %v441, 4
    %vm3039 = vcmp.eq.s32.totalorder %v442, 4
    %vm3040 = vcmp.eq.s32.totalorder %v443, 4
    %vm3041 = vcmp.eq.s32.totalorder %v444, 4
    %vm3042 = vcmp.eq.s32.totalorder %v445, 4
    %vm3043 = vcmp.eq.s32.totalorder %v446, 4
    %vm3044 = vcmp.eq.s32.totalorder %v447, 4
    %vm3045 = vcmp.eq.s32.totalorder %v448, 4
    %vm3046 = vcmp.eq.s32.totalorder %v449, 4
    %vm3047 = vcmp.eq.s32.totalorder %v450, 4
    %vm3048 = vcmp.eq.s32.totalorder %v451, 4
    %vm3049 = vcmp.eq.s32.totalorder %v452, 4
    %vm3050 = vcmp.eq.s32.totalorder %v453, 4
    %vm3051 = vcmp.eq.s32.totalorder %v454, 4
    %vm3052 = vcmp.eq.s32.totalorder %v455, 4
    %vm3053 = vcmp.eq.s32.totalorder %v456, 4
    %vm3054 = vcmp.eq.s32.totalorder %v457, 4
    %vm3055 = vcmp.eq.s32.totalorder %v458, 4
    %vm3056 = vcmp.eq.s32.totalorder %v459, 4
    %vm3057 = vcmp.eq.s32.totalorder %v460, 4
    %vm3058 = vcmp.eq.s32.totalorder %v461, 4
    %vm3059 = vcmp.eq.s32.totalorder %v462, 4
    %vm3060 = vcmp.eq.s32.totalorder %v463, 4
    %vm3061 = vcmp.eq.s32.totalorder %v464, 4
    %vm3062 = vcmp.eq.s32.totalorder %v465, 4
    %vm3063 = vcmp.eq.s32.totalorder %v466, 4
    %vm3064 = vcmp.eq.s32.totalorder %v467, 4
    %vm3065 = vcmp.eq.s32.totalorder %v468, 4
    %vm3066 = vcmp.eq.s32.totalorder %v469, 4
    %vm3067 = vcmp.eq.s32.totalorder %v470, 4
    %vm3068 = vcmp.eq.s32.totalorder %v471, 4
    %vm3069 = vcmp.eq.s32.totalorder %v472, 4
    %vm3070 = vcmp.eq.s32.totalorder %v473, 4
    %vm3071 = vcmp.eq.s32.totalorder %v474, 4
    %vm3072 = vcmp.eq.s32.totalorder %v475, 4
    %vm3073 = vcmp.eq.s32.totalorder %v476, 4
    %vm3074 = vcmp.eq.s32.totalorder %v477, 4
    %vm3075 = vcmp.eq.s32.totalorder %v478, 4
    %vm3076 = vcmp.eq.s32.totalorder %v479, 4
    %vm3077 = vcmp.eq.s32.totalorder %v480, 4
    %vm3078 = vcmp.eq.s32.totalorder %v481, 4
    %vm3079 = vcmp.eq.s32.totalorder %v482, 4
    %vm3080 = vcmp.eq.s32.totalorder %v483, 4
    %vm3081 = vcmp.eq.s32.totalorder %v484, 4
    %vm3082 = vcmp.eq.s32.totalorder %v485, 4
    %vm3083 = vcmp.eq.s32.totalorder %v486, 4
    %vm3084 = vcmp.eq.s32.totalorder %v487, 4
    %vm3085 = vcmp.eq.s32.totalorder %v488, 4
    %vm3086 = vcmp.eq.s32.totalorder %v489, 4
    %vm3087 = vcmp.eq.s32.totalorder %v490, 4
    %vm3088 = vcmp.eq.s32.totalorder %v491, 4
    %vm3089 = vcmp.eq.s32.totalorder %v492, 4
    %vm3090 = vcmp.eq.s32.totalorder %v493, 4
    %vm3091 = vcmp.eq.s32.totalorder %v494, 4
    %vm3092 = vcmp.eq.s32.totalorder %v495, 4
    %vm3093 = vcmp.eq.s32.totalorder %v496, 4
    %vm3094 = vcmp.eq.s32.totalorder %v497, 4
    %vm3095 = vcmp.eq.s32.totalorder %v498, 4
    %vm3096 = vcmp.eq.s32.totalorder %v499, 4
    %vm3097 = vcmp.eq.s32.totalorder %v500, 4
    %vm3098 = vcmp.eq.s32.totalorder %v501, 4
    %vm3099 = vcmp.eq.s32.totalorder %v502, 4
    %vm3100 = vcmp.eq.s32.totalorder %v503, 4
    %vm3101 = vcmp.eq.s32.totalorder %v504, 4
    %vm3102 = vcmp.eq.s32.totalorder %v505, 4
    %vm3103 = vcmp.eq.s32.totalorder %v506, 4
    %vm3104 = vcmp.eq.s32.totalorder %v507, 4
    %vm3105 = vcmp.eq.s32.totalorder %v508, 4
    %vm3106 = vcmp.eq.s32.totalorder %v509, 4
    %vm3107 = vcmp.eq.s32.totalorder %v510, 4
    %vm3108 = vcmp.eq.s32.totalorder %v511, 4
    %vm3109 = vcmp.eq.s32.totalorder %v512, 4
    %vm3110 = vcmp.eq.s32.totalorder %v513, 4
    %vm3111 = vcmp.eq.s32.totalorder %v514, 4
    %vm3112 = vcmp.eq.s32.totalorder %v515, 4
    %vm3113 = vcmp.eq.s32.totalorder %v516, 4
    %vm3114 = vcmp.eq.s32.totalorder %v517, 4
    %vm3115 = vcmp.eq.s32.totalorder %v518, 4
    %vm3116 = vcmp.eq.s32.totalorder %v519, 4
    %vm3117 = vcmp.eq.s32.totalorder %v520, 4
    %vm3118 = vcmp.eq.s32.totalorder %v521, 4
    %vm3119 = vcmp.eq.s32.totalorder %v522, 4
    %vm3120 = vcmp.eq.s32.totalorder %v523, 4
    %vm3121 = vcmp.eq.s32.totalorder %v524, 4
    %vm3122 = vcmp.eq.s32.totalorder %v525, 4
    %vm3123 = vcmp.eq.s32.totalorder %v526, 4
    %vm3124 = vcmp.eq.s32.totalorder %v527, 4
    %vm3125 = vcmp.eq.s32.totalorder %v528, 4
    %vm3126 = vcmp.eq.s32.totalorder %v529, 4
    %vm3127 = vcmp.eq.s32.totalorder %v530, 4
    %vm3128 = vcmp.eq.s32.totalorder %v531, 4
    %vm3129 = vcmp.eq.s32.totalorder %v532, 4
    %vm3130 = vcmp.eq.s32.totalorder %v533, 4
    %vm3131 = vcmp.eq.s32.totalorder %v534, 4
    %vm3132 = vcmp.eq.s32.totalorder %v535, 4
    %vm3133 = vcmp.eq.s32.totalorder %v536, 4
    %vm3134 = vcmp.eq.s32.totalorder %v537, 4
    %vm3135 = vcmp.eq.s32.totalorder %v538, 4
    %vm3136 = vcmp.eq.s32.totalorder %v539, 4
    %vm3137 = vcmp.eq.s32.totalorder %v540, 4
    %vm3138 = vcmp.eq.s32.totalorder %v541, 4
    %vm3139 = vcmp.eq.s32.totalorder %v542, 4
    %vm3140 = vcmp.eq.s32.totalorder %v543, 4
    %vm3141 = vcmp.eq.s32.totalorder %v544, 4
    %vm3142 = vcmp.eq.s32.totalorder %v545, 4
    %vm3143 = vcmp.eq.s32.totalorder %v546, 4
    %vm3144 = vcmp.eq.s32.totalorder %v547, 4
    %vm3145 = vcmp.eq.s32.totalorder %v548, 4
    %vm3146 = vcmp.eq.s32.totalorder %v549, 4
    %vm3147 = vcmp.eq.s32.totalorder %v550, 4
    %vm3148 = vcmp.eq.s32.totalorder %v551, 4
    %vm3149 = vcmp.eq.s32.totalorder %v552, 4
    %vm3150 = vcmp.eq.s32.totalorder %v553, 4
    %vm3151 = vcmp.eq.s32.totalorder %v554, 4
    %vm3152 = vcmp.eq.s32.totalorder %v555, 4
    %vm3153 = vcmp.eq.s32.totalorder %v556, 4
    %vm3154 = vcmp.eq.s32.totalorder %v557, 4
    %vm3155 = vcmp.eq.s32.totalorder %v558, 4
    %vm3156 = vcmp.eq.s32.totalorder %v559, 4
    %vm3157 = vcmp.eq.s32.totalorder %v560, 4
    %vm3158 = vcmp.eq.s32.totalorder %v561, 4
    %vm3159 = vcmp.eq.s32.totalorder %v562, 4
    %vm3160 = vcmp.eq.s32.totalorder %v563, 4
    %vm3161 = vcmp.eq.s32.totalorder %v564, 4
    %vm3162 = vcmp.eq.s32.totalorder %v565, 4
    %vm3163 = vcmp.eq.s32.totalorder %v566, 4
    %vm3164 = vcmp.eq.s32.totalorder %v567, 4
    %vm3165 = vcmp.eq.s32.totalorder %v568, 4
    %vm3166 = vcmp.eq.s32.totalorder %v569, 4
    %vm3167 = vcmp.eq.s32.totalorder %v570, 4
    %vm3168 = vcmp.eq.s32.totalorder %v571, 4
    %vm3169 = vcmp.eq.s32.totalorder %v572, 4
    %vm3170 = vcmp.eq.s32.totalorder %v573, 4
    %vm3171 = vcmp.eq.s32.totalorder %v574, 4
    %vm3172 = vcmp.eq.s32.totalorder %v575, 4
    %vm3173 = vcmp.eq.s32.totalorder %v576, 4
    %vm3174 = vcmp.eq.s32.totalorder %v577, 4
    %vm3175 = vcmp.eq.s32.totalorder %v578, 4
    %vm3176 = vcmp.eq.s32.totalorder %v579, 4
    %vm3177 = vcmp.eq.s32.totalorder %v580, 4
    %vm3178 = vcmp.eq.s32.totalorder %v581, 4
    %vm3179 = vcmp.eq.s32.totalorder %v582, 4
    %vm3180 = vcmp.eq.s32.totalorder %v583, 4
    %v3181 = vstv %s79
    %v3182 = vsel %vm3037, %v3181, 0.0
    %v3183 = vsel %vm3038, %v3181, 0.0
    %v3184 = vsel %vm3039, %v3181, 0.0
    %v3185 = vsel %vm3040, %v3181, 0.0
    %v3186 = vsel %vm3041, %v3181, 0.0
    %v3187 = vsel %vm3042, %v3181, 0.0
    %v3188 = vsel %vm3043, %v3181, 0.0
    %v3189 = vsel %vm3044, %v3181, 0.0
    %v3190 = vsel %vm3045, %v3181, 0.0
    %v3191 = vsel %vm3046, %v3181, 0.0
    %v3192 = vsel %vm3047, %v3181, 0.0
    %v3193 = vsel %vm3048, %v3181, 0.0
    %v3194 = vsel %vm3049, %v3181, 0.0
    %v3195 = vsel %vm3050, %v3181, 0.0
    %v3196 = vsel %vm3051, %v3181, 0.0
    %v3197 = vsel %vm3052, %v3181, 0.0
    %v3198 = vsel %vm3053, %v3181, 0.0
    %v3199 = vsel %vm3054, %v3181, 0.0
    %v3200 = vsel %vm3055, %v3181, 0.0
    %v3201 = vsel %vm3056, %v3181, 0.0
    %v3202 = vsel %vm3057, %v3181, 0.0
    %v3203 = vsel %vm3058, %v3181, 0.0
    %v3204 = vsel %vm3059, %v3181, 0.0
    %v3205 = vsel %vm3060, %v3181, 0.0
    %v3206 = vsel %vm3061, %v3181, 0.0
    %v3207 = vsel %vm3062, %v3181, 0.0
    %v3208 = vsel %vm3063, %v3181, 0.0
    %v3209 = vsel %vm3064, %v3181, 0.0
    %v3210 = vsel %vm3065, %v3181, 0.0
    %v3211 = vsel %vm3066, %v3181, 0.0
    %v3212 = vsel %vm3067, %v3181, 0.0
    %v3213 = vsel %vm3068, %v3181, 0.0
    %v3214 = vsel %vm3069, %v3181, 0.0
    %v3215 = vsel %vm3070, %v3181, 0.0
    %v3216 = vsel %vm3071, %v3181, 0.0
    %v3217 = vsel %vm3072, %v3181, 0.0
    %v3218 = vsel %vm3073, %v3181, 0.0
    %v3219 = vsel %vm3074, %v3181, 0.0
    %v3220 = vsel %vm3075, %v3181, 0.0
    %v3221 = vsel %vm3076, %v3181, 0.0
    %v3222 = vsel %vm3077, %v3181, 0.0
    %v3223 = vsel %vm3078, %v3181, 0.0
    %v3224 = vsel %vm3079, %v3181, 0.0
    %v3225 = vsel %vm3080, %v3181, 0.0
    %v3226 = vsel %vm3081, %v3181, 0.0
    %v3227 = vsel %vm3082, %v3181, 0.0
    %v3228 = vsel %vm3083, %v3181, 0.0
    %v3229 = vsel %vm3084, %v3181, 0.0
    %v3230 = vsel %vm3085, %v3181, 0.0
    %v3231 = vsel %vm3086, %v3181, 0.0
    %v3232 = vsel %vm3087, %v3181, 0.0
    %v3233 = vsel %vm3088, %v3181, 0.0
    %v3234 = vsel %vm3089, %v3181, 0.0
    %v3235 = vsel %vm3090, %v3181, 0.0
    %v3236 = vsel %vm3091, %v3181, 0.0
    %v3237 = vsel %vm3092, %v3181, 0.0
    %v3238 = vsel %vm3093, %v3181, 0.0
    %v3239 = vsel %vm3094, %v3181, 0.0
    %v3240 = vsel %vm3095, %v3181, 0.0
    %v3241 = vsel %vm3096, %v3181, 0.0
    %v3242 = vsel %vm3097, %v3181, 0.0
    %v3243 = vsel %vm3098, %v3181, 0.0
    %v3244 = vsel %vm3099, %v3181, 0.0
    %v3245 = vsel %vm3100, %v3181, 0.0
    %v3246 = vsel %vm3101, %v3181, 0.0
    %v3247 = vsel %vm3102, %v3181, 0.0
    %v3248 = vsel %vm3103, %v3181, 0.0
    %v3249 = vsel %vm3104, %v3181, 0.0
    %v3250 = vsel %vm3105, %v3181, 0.0
    %v3251 = vsel %vm3106, %v3181, 0.0
    %v3252 = vsel %vm3107, %v3181, 0.0
    %v3253 = vsel %vm3108, %v3181, 0.0
    %v3254 = vsel %vm3109, %v3181, 0.0
    %v3255 = vsel %vm3110, %v3181, 0.0
    %v3256 = vsel %vm3111, %v3181, 0.0
    %v3257 = vsel %vm3112, %v3181, 0.0
    %v3258 = vsel %vm3113, %v3181, 0.0
    %v3259 = vsel %vm3114, %v3181, 0.0
    %v3260 = vsel %vm3115, %v3181, 0.0
    %v3261 = vsel %vm3116, %v3181, 0.0
    %v3262 = vsel %vm3117, %v3181, 0.0
    %v3263 = vsel %vm3118, %v3181, 0.0
    %v3264 = vsel %vm3119, %v3181, 0.0
    %v3265 = vsel %vm3120, %v3181, 0.0
    %v3266 = vsel %vm3121, %v3181, 0.0
    %v3267 = vsel %vm3122, %v3181, 0.0
    %v3268 = vsel %vm3123, %v3181, 0.0
    %v3269 = vsel %vm3124, %v3181, 0.0
    %v3270 = vsel %vm3125, %v3181, 0.0
    %v3271 = vsel %vm3126, %v3181, 0.0
    %v3272 = vsel %vm3127, %v3181, 0.0
    %v3273 = vsel %vm3128, %v3181, 0.0
    %v3274 = vsel %vm3129, %v3181, 0.0
    %v3275 = vsel %vm3130, %v3181, 0.0
    %v3276 = vsel %vm3131, %v3181, 0.0
    %v3277 = vsel %vm3132, %v3181, 0.0
    %v3278 = vsel %vm3133, %v3181, 0.0
    %v3279 = vsel %vm3134, %v3181, 0.0
    %v3280 = vsel %vm3135, %v3181, 0.0
    %v3281 = vsel %vm3136, %v3181, 0.0
    %v3282 = vsel %vm3137, %v3181, 0.0
    %v3283 = vsel %vm3138, %v3181, 0.0
    %v3284 = vsel %vm3139, %v3181, 0.0
    %v3285 = vsel %vm3140, %v3181, 0.0
    %v3286 = vsel %vm3141, %v3181, 0.0
    %v3287 = vsel %vm3142, %v3181, 0.0
    %v3288 = vsel %vm3143, %v3181, 0.0
    %v3289 = vsel %vm3144, %v3181, 0.0
    %v3290 = vsel %vm3145, %v3181, 0.0
    %v3291 = vsel %vm3146, %v3181, 0.0
    %v3292 = vsel %vm3147, %v3181, 0.0
    %v3293 = vsel %vm3148, %v3181, 0.0
    %v3294 = vsel %vm3149, %v3181, 0.0
    %v3295 = vsel %vm3150, %v3181, 0.0
    %v3296 = vsel %vm3151, %v3181, 0.0
    %v3297 = vsel %vm3152, %v3181, 0.0
    %v3298 = vsel %vm3153, %v3181, 0.0
    %v3299 = vsel %vm3154, %v3181, 0.0
    %v3300 = vsel %vm3155, %v3181, 0.0
    %v3301 = vsel %vm3156, %v3181, 0.0
    %v3302 = vsel %vm3157, %v3181, 0.0
    %v3303 = vsel %vm3158, %v3181, 0.0
    %v3304 = vsel %vm3159, %v3181, 0.0
    %v3305 = vsel %vm3160, %v3181, 0.0
    %v3306 = vsel %vm3161, %v3181, 0.0
    %v3307 = vsel %vm3162, %v3181, 0.0
    %v3308 = vsel %vm3163, %v3181, 0.0
    %v3309 = vsel %vm3164, %v3181, 0.0
    %v3310 = vsel %vm3165, %v3181, 0.0
    %v3311 = vsel %vm3166, %v3181, 0.0
    %v3312 = vsel %vm3167, %v3181, 0.0
    %v3313 = vsel %vm3168, %v3181, 0.0
    %v3314 = vsel %vm3169, %v3181, 0.0
    %v3315 = vsel %vm3170, %v3181, 0.0
    %v3316 = vsel %vm3171, %v3181, 0.0
    %v3317 = vsel %vm3172, %v3181, 0.0
    %v3318 = vsel %vm3173, %v3181, 0.0
    %v3319 = vsel %vm3174, %v3181, 0.0
    %v3320 = vsel %vm3175, %v3181, 0.0
    %v3321 = vsel %vm3176, %v3181, 0.0
    %v3322 = vsel %vm3177, %v3181, 0.0
    %v3323 = vsel %vm3178, %v3181, 0.0
    %v3324 = vsel %vm3179, %v3181, 0.0
    %v3325 = vsel %vm3180, %v3181, 0.0
    %v3326 = vstv %s78
    %v3327 = vsel %vm2893, %v3326, %v3182
    %v3328 = vsel %vm2894, %v3326, %v3183
    %v3329 = vsel %vm2895, %v3326, %v3184
    %v3330 = vsel %vm2896, %v3326, %v3185
    %v3331 = vsel %vm2897, %v3326, %v3186
    %v3332 = vsel %vm2898, %v3326, %v3187
    %v3333 = vsel %vm2899, %v3326, %v3188
    %v3334 = vsel %vm2900, %v3326, %v3189
    %v3335 = vsel %vm2901, %v3326, %v3190
    %v3336 = vsel %vm2902, %v3326, %v3191
    %v3337 = vsel %vm2903, %v3326, %v3192
    %v3338 = vsel %vm2904, %v3326, %v3193
    %v3339 = vsel %vm2905, %v3326, %v3194
    %v3340 = vsel %vm2906, %v3326, %v3195
    %v3341 = vsel %vm2907, %v3326, %v3196
    %v3342 = vsel %vm2908, %v3326, %v3197
    %v3343 = vsel %vm2909, %v3326, %v3198
    %v3344 = vsel %vm2910, %v3326, %v3199
    %v3345 = vsel %vm2911, %v3326, %v3200
    %v3346 = vsel %vm2912, %v3326, %v3201
    %v3347 = vsel %vm2913, %v3326, %v3202
    %v3348 = vsel %vm2914, %v3326, %v3203
    %v3349 = vsel %vm2915, %v3326, %v3204
    %v3350 = vsel %vm2916, %v3326, %v3205
    %v3351 = vsel %vm2917, %v3326, %v3206
    %v3352 = vsel %vm2918, %v3326, %v3207
    %v3353 = vsel %vm2919, %v3326, %v3208
    %v3354 = vsel %vm2920, %v3326, %v3209
    %v3355 = vsel %vm2921, %v3326, %v3210
    %v3356 = vsel %vm2922, %v3326, %v3211
    %v3357 = vsel %vm2923, %v3326, %v3212
    %v3358 = vsel %vm2924, %v3326, %v3213
    %v3359 = vsel %vm2925, %v3326, %v3214
    %v3360 = vsel %vm2926, %v3326, %v3215
    %v3361 = vsel %vm2927, %v3326, %v3216
    %v3362 = vsel %vm2928, %v3326, %v3217
    %v3363 = vsel %vm2929, %v3326, %v3218
    %v3364 = vsel %vm2930, %v3326, %v3219
    %v3365 = vsel %vm2931, %v3326, %v3220
    %v3366 = vsel %vm2932, %v3326, %v3221
    %v3367 = vsel %vm2933, %v3326, %v3222
    %v3368 = vsel %vm2934, %v3326, %v3223
    %v3369 = vsel %vm2935, %v3326, %v3224
    %v3370 = vsel %vm2936, %v3326, %v3225
    %v3371 = vsel %vm2937, %v3326, %v3226
    %v3372 = vsel %vm2938, %v3326, %v3227
    %v3373 = vsel %vm2939, %v3326, %v3228
    %v3374 = vsel %vm2940, %v3326, %v3229
    %v3375 = vsel %vm2941, %v3326, %v3230
    %v3376 = vsel %vm2942, %v3326, %v3231
    %v3377 = vsel %vm2943, %v3326, %v3232
    %v3378 = vsel %vm2944, %v3326, %v3233
    %v3379 = vsel %vm2945, %v3326, %v3234
    %v3380 = vsel %vm2946, %v3326, %v3235
    %v3381 = vsel %vm2947, %v3326, %v3236
    %v3382 = vsel %vm2948, %v3326, %v3237
    %v3383 = vsel %vm2949, %v3326, %v3238
    %v3384 = vsel %vm2950, %v3326, %v3239
    %v3385 = vsel %vm2951, %v3326, %v3240
    %v3386 = vsel %vm2952, %v3326, %v3241
    %v3387 = vsel %vm2953, %v3326, %v3242
    %v3388 = vsel %vm2954, %v3326, %v3243
    %v3389 = vsel %vm2955, %v3326, %v3244
    %v3390 = vsel %vm2956, %v3326, %v3245
    %v3391 = vsel %vm2957, %v3326, %v3246
    %v3392 = vsel %vm2958, %v3326, %v3247
    %v3393 = vsel %vm2959, %v3326, %v3248
    %v3394 = vsel %vm2960, %v3326, %v3249
    %v3395 = vsel %vm2961, %v3326, %v3250
    %v3396 = vsel %vm2962, %v3326, %v3251
    %v3397 = vsel %vm2963, %v3326, %v3252
    %v3398 = vsel %vm2964, %v3326, %v3253
    %v3399 = vsel %vm2965, %v3326, %v3254
    %v3400 = vsel %vm2966, %v3326, %v3255
    %v3401 = vsel %vm2967, %v3326, %v3256
    %v3402 = vsel %vm2968, %v3326, %v3257
    %v3403 = vsel %vm2969, %v3326, %v3258
    %v3404 = vsel %vm2970, %v3326, %v3259
    %v3405 = vsel %vm2971, %v3326, %v3260
    %v3406 = vsel %vm2972, %v3326, %v3261
    %v3407 = vsel %vm2973, %v3326, %v3262
    %v3408 = vsel %vm2974, %v3326, %v3263
    %v3409 = vsel %vm2975, %v3326, %v3264
    %v3410 = vsel %vm2976, %v3326, %v3265
    %v3411 = vsel %vm2977, %v3326, %v3266
    %v3412 = vsel %vm2978, %v3326, %v3267
    %v3413 = vsel %vm2979, %v3326, %v3268
    %v3414 = vsel %vm2980, %v3326, %v3269
    %v3415 = vsel %vm2981, %v3326, %v3270
    %v3416 = vsel %vm2982, %v3326, %v3271
    %v3417 = vsel %vm2983, %v3326, %v3272
    %v3418 = vsel %vm2984, %v3326, %v3273
    %v3419 = vsel %vm2985, %v3326, %v3274
    %v3420 = vsel %vm2986, %v3326, %v3275
    %v3421 = vsel %vm2987, %v3326, %v3276
    %v3422 = vsel %vm2988, %v3326, %v3277
    %v3423 = vsel %vm2989, %v3326, %v3278
    %v3424 = vsel %vm2990, %v3326, %v3279
    %v3425 = vsel %vm2991, %v3326, %v3280
    %v3426 = vsel %vm2992, %v3326, %v3281
    %v3427 = vsel %vm2993, %v3326, %v3282
    %v3428 = vsel %vm2994, %v3326, %v3283
    %v3429 = vsel %vm2995, %v3326, %v3284
    %v3430 = vsel %vm2996, %v3326, %v3285
    %v3431 = vsel %vm2997, %v3326, %v3286
    %v3432 = vsel %vm2998, %v3326, %v3287
    %v3433 = vsel %vm2999, %v3326, %v3288
    %v3434 = vsel %vm3000, %v3326, %v3289
    %v3435 = vsel %vm3001, %v3326, %v3290
    %v3436 = vsel %vm3002, %v3326, %v3291
    %v3437 = vsel %vm3003, %v3326, %v3292
    %v3438 = vsel %vm3004, %v3326, %v3293
    %v3439 = vsel %vm3005, %v3326, %v3294
    %v3440 = vsel %vm3006, %v3326, %v3295
    %v3441 = vsel %vm3007, %v3326, %v3296
    %v3442 = vsel %vm3008, %v3326, %v3297
    %v3443 = vsel %vm3009, %v3326, %v3298
    %v3444 = vsel %vm3010, %v3326, %v3299
    %v3445 = vsel %vm3011, %v3326, %v3300
    %v3446 = vsel %vm3012, %v3326, %v3301
    %v3447 = vsel %vm3013, %v3326, %v3302
    %v3448 = vsel %vm3014, %v3326, %v3303
    %v3449 = vsel %vm3015, %v3326, %v3304
    %v3450 = vsel %vm3016, %v3326, %v3305
    %v3451 = vsel %vm3017, %v3326, %v3306
    %v3452 = vsel %vm3018, %v3326, %v3307
    %v3453 = vsel %vm3019, %v3326, %v3308
    %v3454 = vsel %vm3020, %v3326, %v3309
    %v3455 = vsel %vm3021, %v3326, %v3310
    %v3456 = vsel %vm3022, %v3326, %v3311
    %v3457 = vsel %vm3023, %v3326, %v3312
    %v3458 = vsel %vm3024, %v3326, %v3313
    %v3459 = vsel %vm3025, %v3326, %v3314
    %v3460 = vsel %vm3026, %v3326, %v3315
    %v3461 = vsel %vm3027, %v3326, %v3316
    %v3462 = vsel %vm3028, %v3326, %v3317
    %v3463 = vsel %vm3029, %v3326, %v3318
    %v3464 = vsel %vm3030, %v3326, %v3319
    %v3465 = vsel %vm3031, %v3326, %v3320
    %v3466 = vsel %vm3032, %v3326, %v3321
    %v3467 = vsel %vm3033, %v3326, %v3322
    %v3468 = vsel %vm3034, %v3326, %v3323
    %v3469 = vsel %vm3035, %v3326, %v3324
    %v3470 = vsel %vm3036, %v3326, %v3325
    %v3471 = vstv %s77
    %v3472 = vsel %vm2749, %v3471, %v3327
    %v3473 = vsel %vm2750, %v3471, %v3328
    %v3474 = vsel %vm2751, %v3471, %v3329
    %v3475 = vsel %vm2752, %v3471, %v3330
    %v3476 = vsel %vm2753, %v3471, %v3331
    %v3477 = vsel %vm2754, %v3471, %v3332
    %v3478 = vsel %vm2755, %v3471, %v3333
    %v3479 = vsel %vm2756, %v3471, %v3334
    %v3480 = vsel %vm2757, %v3471, %v3335
    %v3481 = vsel %vm2758, %v3471, %v3336
    %v3482 = vsel %vm2759, %v3471, %v3337
    %v3483 = vsel %vm2760, %v3471, %v3338
    %v3484 = vsel %vm2761, %v3471, %v3339
    %v3485 = vsel %vm2762, %v3471, %v3340
    %v3486 = vsel %vm2763, %v3471, %v3341
    %v3487 = vsel %vm2764, %v3471, %v3342
    %v3488 = vsel %vm2765, %v3471, %v3343
    %v3489 = vsel %vm2766, %v3471, %v3344
    %v3490 = vsel %vm2767, %v3471, %v3345
    %v3491 = vsel %vm2768, %v3471, %v3346
    %v3492 = vsel %vm2769, %v3471, %v3347
    %v3493 = vsel %vm2770, %v3471, %v3348
    %v3494 = vsel %vm2771, %v3471, %v3349
    %v3495 = vsel %vm2772, %v3471, %v3350
    %v3496 = vsel %vm2773, %v3471, %v3351
    %v3497 = vsel %vm2774, %v3471, %v3352
    %v3498 = vsel %vm2775, %v3471, %v3353
    %v3499 = vsel %vm2776, %v3471, %v3354
    %v3500 = vsel %vm2777, %v3471, %v3355
    %v3501 = vsel %vm2778, %v3471, %v3356
    %v3502 = vsel %vm2779, %v3471, %v3357
    %v3503 = vsel %vm2780, %v3471, %v3358
    %v3504 = vsel %vm2781, %v3471, %v3359
    %v3505 = vsel %vm2782, %v3471, %v3360
    %v3506 = vsel %vm2783, %v3471, %v3361
    %v3507 = vsel %vm2784, %v3471, %v3362
    %v3508 = vsel %vm2785, %v3471, %v3363
    %v3509 = vsel %vm2786, %v3471, %v3364
    %v3510 = vsel %vm2787, %v3471, %v3365
    %v3511 = vsel %vm2788, %v3471, %v3366
    %v3512 = vsel %vm2789, %v3471, %v3367
    %v3513 = vsel %vm2790, %v3471, %v3368
    %v3514 = vsel %vm2791, %v3471, %v3369
    %v3515 = vsel %vm2792, %v3471, %v3370
    %v3516 = vsel %vm2793, %v3471, %v3371
    %v3517 = vsel %vm2794, %v3471, %v3372
    %v3518 = vsel %vm2795, %v3471, %v3373
    %v3519 = vsel %vm2796, %v3471, %v3374
    %v3520 = vsel %vm2797, %v3471, %v3375
    %v3521 = vsel %vm2798, %v3471, %v3376
    %v3522 = vsel %vm2799, %v3471, %v3377
    %v3523 = vsel %vm2800, %v3471, %v3378
    %v3524 = vsel %vm2801, %v3471, %v3379
    %v3525 = vsel %vm2802, %v3471, %v3380
    %v3526 = vsel %vm2803, %v3471, %v3381
    %v3527 = vsel %vm2804, %v3471, %v3382
    %v3528 = vsel %vm2805, %v3471, %v3383
    %v3529 = vsel %vm2806, %v3471, %v3384
    %v3530 = vsel %vm2807, %v3471, %v3385
    %v3531 = vsel %vm2808, %v3471, %v3386
    %v3532 = vsel %vm2809, %v3471, %v3387
    %v3533 = vsel %vm2810, %v3471, %v3388
    %v3534 = vsel %vm2811, %v3471, %v3389
    %v3535 = vsel %vm2812, %v3471, %v3390
    %v3536 = vsel %vm2813, %v3471, %v3391
    %v3537 = vsel %vm2814, %v3471, %v3392
    %v3538 = vsel %vm2815, %v3471, %v3393
    %v3539 = vsel %vm2816, %v3471, %v3394
    %v3540 = vsel %vm2817, %v3471, %v3395
    %v3541 = vsel %vm2818, %v3471, %v3396
    %v3542 = vsel %vm2819, %v3471, %v3397
    %v3543 = vsel %vm2820, %v3471, %v3398
    %v3544 = vsel %vm2821, %v3471, %v3399
    %v3545 = vsel %vm2822, %v3471, %v3400
    %v3546 = vsel %vm2823, %v3471, %v3401
    %v3547 = vsel %vm2824, %v3471, %v3402
    %v3548 = vsel %vm2825, %v3471, %v3403
    %v3549 = vsel %vm2826, %v3471, %v3404
    %v3550 = vsel %vm2827, %v3471, %v3405
    %v3551 = vsel %vm2828, %v3471, %v3406
    %v3552 = vsel %vm2829, %v3471, %v3407
    %v3553 = vsel %vm2830, %v3471, %v3408
    %v3554 = vsel %vm2831, %v3471, %v3409
    %v3555 = vsel %vm2832, %v3471, %v3410
    %v3556 = vsel %vm2833, %v3471, %v3411
    %v3557 = vsel %vm2834, %v3471, %v3412
    %v3558 = vsel %vm2835, %v3471, %v3413
    %v3559 = vsel %vm2836, %v3471, %v3414
    %v3560 = vsel %vm2837, %v3471, %v3415
    %v3561 = vsel %vm2838, %v3471, %v3416
    %v3562 = vsel %vm2839, %v3471, %v3417
    %v3563 = vsel %vm2840, %v3471, %v3418
    %v3564 = vsel %vm2841, %v3471, %v3419
    %v3565 = vsel %vm2842, %v3471, %v3420
    %v3566 = vsel %vm2843, %v3471, %v3421
    %v3567 = vsel %vm2844, %v3471, %v3422
    %v3568 = vsel %vm2845, %v3471, %v3423
    %v3569 = vsel %vm2846, %v3471, %v3424
    %v3570 = vsel %vm2847, %v3471, %v3425
    %v3571 = vsel %vm2848, %v3471, %v3426
    %v3572 = vsel %vm2849, %v3471, %v3427
    %v3573 = vsel %vm2850, %v3471, %v3428
    %v3574 = vsel %vm2851, %v3471, %v3429
    %v3575 = vsel %vm2852, %v3471, %v3430
    %v3576 = vsel %vm2853, %v3471, %v3431
    %v3577 = vsel %vm2854, %v3471, %v3432
    %v3578 = vsel %vm2855, %v3471, %v3433
    %v3579 = vsel %vm2856, %v3471, %v3434
    %v3580 = vsel %vm2857, %v3471, %v3435
    %v3581 = vsel %vm2858, %v3471, %v3436
    %v3582 = vsel %vm2859, %v3471, %v3437
    %v3583 = vsel %vm2860, %v3471, %v3438
    %v3584 = vsel %vm2861, %v3471, %v3439
    %v3585 = vsel %vm2862, %v3471, %v3440
    %v3586 = vsel %vm2863, %v3471, %v3441
    %v3587 = vsel %vm2864, %v3471, %v3442
    %v3588 = vsel %vm2865, %v3471, %v3443
    %v3589 = vsel %vm2866, %v3471, %v3444
    %v3590 = vsel %vm2867, %v3471, %v3445
    %v3591 = vsel %vm2868, %v3471, %v3446
    %v3592 = vsel %vm2869, %v3471, %v3447
    %v3593 = vsel %vm2870, %v3471, %v3448
    %v3594 = vsel %vm2871, %v3471, %v3449
    %v3595 = vsel %vm2872, %v3471, %v3450
    %v3596 = vsel %vm2873, %v3471, %v3451
    %v3597 = vsel %vm2874, %v3471, %v3452
    %v3598 = vsel %vm2875, %v3471, %v3453
    %v3599 = vsel %vm2876, %v3471, %v3454
    %v3600 = vsel %vm2877, %v3471, %v3455
    %v3601 = vsel %vm2878, %v3471, %v3456
    %v3602 = vsel %vm2879, %v3471, %v3457
    %v3603 = vsel %vm2880, %v3471, %v3458
    %v3604 = vsel %vm2881, %v3471, %v3459
    %v3605 = vsel %vm2882, %v3471, %v3460
    %v3606 = vsel %vm2883, %v3471, %v3461
    %v3607 = vsel %vm2884, %v3471, %v3462
    %v3608 = vsel %vm2885, %v3471, %v3463
    %v3609 = vsel %vm2886, %v3471, %v3464
    %v3610 = vsel %vm2887, %v3471, %v3465
    %v3611 = vsel %vm2888, %v3471, %v3466
    %v3612 = vsel %vm2889, %v3471, %v3467
    %v3613 = vsel %vm2890, %v3471, %v3468
    %v3614 = vsel %vm2891, %v3471, %v3469
    %v3615 = vsel %vm2892, %v3471, %v3470
    %v3616 = vstv %s76
    %v3617 = vsel %vm2605, %v3616, %v3472
    %v3618 = vsel %vm2606, %v3616, %v3473
    %v3619 = vsel %vm2607, %v3616, %v3474
    %v3620 = vsel %vm2608, %v3616, %v3475
    %v3621 = vsel %vm2609, %v3616, %v3476
    %v3622 = vsel %vm2610, %v3616, %v3477
    %v3623 = vsel %vm2611, %v3616, %v3478
    %v3624 = vsel %vm2612, %v3616, %v3479
    %v3625 = vsel %vm2613, %v3616, %v3480
    %v3626 = vsel %vm2614, %v3616, %v3481
    %v3627 = vsel %vm2615, %v3616, %v3482
    %v3628 = vsel %vm2616, %v3616, %v3483
    %v3629 = vsel %vm2617, %v3616, %v3484
    %v3630 = vsel %vm2618, %v3616, %v3485
    %v3631 = vsel %vm2619, %v3616, %v3486
    %v3632 = vsel %vm2620, %v3616, %v3487
    %v3633 = vsel %vm2621, %v3616, %v3488
    %v3634 = vsel %vm2622, %v3616, %v3489
    %v3635 = vsel %vm2623, %v3616, %v3490
    %v3636 = vsel %vm2624, %v3616, %v3491
    %v3637 = vsel %vm2625, %v3616, %v3492
    %v3638 = vsel %vm2626, %v3616, %v3493
    %v3639 = vsel %vm2627, %v3616, %v3494
    %v3640 = vsel %vm2628, %v3616, %v3495
    %v3641 = vsel %vm2629, %v3616, %v3496
    %v3642 = vsel %vm2630, %v3616, %v3497
    %v3643 = vsel %vm2631, %v3616, %v3498
    %v3644 = vsel %vm2632, %v3616, %v3499
    %v3645 = vsel %vm2633, %v3616, %v3500
    %v3646 = vsel %vm2634, %v3616, %v3501
    %v3647 = vsel %vm2635, %v3616, %v3502
    %v3648 = vsel %vm2636, %v3616, %v3503
    %v3649 = vsel %vm2637, %v3616, %v3504
    %v3650 = vsel %vm2638, %v3616, %v3505
    %v3651 = vsel %vm2639, %v3616, %v3506
    %v3652 = vsel %vm2640, %v3616, %v3507
    %v3653 = vsel %vm2641, %v3616, %v3508
    %v3654 = vsel %vm2642, %v3616, %v3509
    %v3655 = vsel %vm2643, %v3616, %v3510
    %v3656 = vsel %vm2644, %v3616, %v3511
    %v3657 = vsel %vm2645, %v3616, %v3512
    %v3658 = vsel %vm2646, %v3616, %v3513
    %v3659 = vsel %vm2647, %v3616, %v3514
    %v3660 = vsel %vm2648, %v3616, %v3515
    %v3661 = vsel %vm2649, %v3616, %v3516
    %v3662 = vsel %vm2650, %v3616, %v3517
    %v3663 = vsel %vm2651, %v3616, %v3518
    %v3664 = vsel %vm2652, %v3616, %v3519
    %v3665 = vsel %vm2653, %v3616, %v3520
    %v3666 = vsel %vm2654, %v3616, %v3521
    %v3667 = vsel %vm2655, %v3616, %v3522
    %v3668 = vsel %vm2656, %v3616, %v3523
    %v3669 = vsel %vm2657, %v3616, %v3524
    %v3670 = vsel %vm2658, %v3616, %v3525
    %v3671 = vsel %vm2659, %v3616, %v3526
    %v3672 = vsel %vm2660, %v3616, %v3527
    %v3673 = vsel %vm2661, %v3616, %v3528
    %v3674 = vsel %vm2662, %v3616, %v3529
    %v3675 = vsel %vm2663, %v3616, %v3530
    %v3676 = vsel %vm2664, %v3616, %v3531
    %v3677 = vsel %vm2665, %v3616, %v3532
    %v3678 = vsel %vm2666, %v3616, %v3533
    %v3679 = vsel %vm2667, %v3616, %v3534
    %v3680 = vsel %vm2668, %v3616, %v3535
    %v3681 = vsel %vm2669, %v3616, %v3536
    %v3682 = vsel %vm2670, %v3616, %v3537
    %v3683 = vsel %vm2671, %v3616, %v3538
    %v3684 = vsel %vm2672, %v3616, %v3539
    %v3685 = vsel %vm2673, %v3616, %v3540
    %v3686 = vsel %vm2674, %v3616, %v3541
    %v3687 = vsel %vm2675, %v3616, %v3542
    %v3688 = vsel %vm2676, %v3616, %v3543
    %v3689 = vsel %vm2677, %v3616, %v3544
    %v3690 = vsel %vm2678, %v3616, %v3545
    %v3691 = vsel %vm2679, %v3616, %v3546
    %v3692 = vsel %vm2680, %v3616, %v3547
    %v3693 = vsel %vm2681, %v3616, %v3548
    %v3694 = vsel %vm2682, %v3616, %v3549
    %v3695 = vsel %vm2683, %v3616, %v3550
    %v3696 = vsel %vm2684, %v3616, %v3551
    %v3697 = vsel %vm2685, %v3616, %v3552
    %v3698 = vsel %vm2686, %v3616, %v3553
    %v3699 = vsel %vm2687, %v3616, %v3554
    %v3700 = vsel %vm2688, %v3616, %v3555
    %v3701 = vsel %vm2689, %v3616, %v3556
    %v3702 = vsel %vm2690, %v3616, %v3557
    %v3703 = vsel %vm2691, %v3616, %v3558
    %v3704 = vsel %vm2692, %v3616, %v3559
    %v3705 = vsel %vm2693, %v3616, %v3560
    %v3706 = vsel %vm2694, %v3616, %v3561
    %v3707 = vsel %vm2695, %v3616, %v3562
    %v3708 = vsel %vm2696, %v3616, %v3563
    %v3709 = vsel %vm2697, %v3616, %v3564
    %v3710 = vsel %vm2698, %v3616, %v3565
    %v3711 = vsel %vm2699, %v3616, %v3566
    %v3712 = vsel %vm2700, %v3616, %v3567
    %v3713 = vsel %vm2701, %v3616, %v3568
    %v3714 = vsel %vm2702, %v3616, %v3569
    %v3715 = vsel %vm2703, %v3616, %v3570
    %v3716 = vsel %vm2704, %v3616, %v3571
    %v3717 = vsel %vm2705, %v3616, %v3572
    %v3718 = vsel %vm2706, %v3616, %v3573
    %v3719 = vsel %vm2707, %v3616, %v3574
    %v3720 = vsel %vm2708, %v3616, %v3575
    %v3721 = vsel %vm2709, %v3616, %v3576
    %v3722 = vsel %vm2710, %v3616, %v3577
    %v3723 = vsel %vm2711, %v3616, %v3578
    %v3724 = vsel %vm2712, %v3616, %v3579
    %v3725 = vsel %vm2713, %v3616, %v3580
    %v3726 = vsel %vm2714, %v3616, %v3581
    %v3727 = vsel %vm2715, %v3616, %v3582
    %v3728 = vsel %vm2716, %v3616, %v3583
    %v3729 = vsel %vm2717, %v3616, %v3584
    %v3730 = vsel %vm2718, %v3616, %v3585
    %v3731 = vsel %vm2719, %v3616, %v3586
    %v3732 = vsel %vm2720, %v3616, %v3587
    %v3733 = vsel %vm2721, %v3616, %v3588
    %v3734 = vsel %vm2722, %v3616, %v3589
    %v3735 = vsel %vm2723, %v3616, %v3590
    %v3736 = vsel %vm2724, %v3616, %v3591
    %v3737 = vsel %vm2725, %v3616, %v3592
    %v3738 = vsel %vm2726, %v3616, %v3593
    %v3739 = vsel %vm2727, %v3616, %v3594
    %v3740 = vsel %vm2728, %v3616, %v3595
    %v3741 = vsel %vm2729, %v3616, %v3596
    %v3742 = vsel %vm2730, %v3616, %v3597
    %v3743 = vsel %vm2731, %v3616, %v3598
    %v3744 = vsel %vm2732, %v3616, %v3599
    %v3745 = vsel %vm2733, %v3616, %v3600
    %v3746 = vsel %vm2734, %v3616, %v3601
    %v3747 = vsel %vm2735, %v3616, %v3602
    %v3748 = vsel %vm2736, %v3616, %v3603
    %v3749 = vsel %vm2737, %v3616, %v3604
    %v3750 = vsel %vm2738, %v3616, %v3605
    %v3751 = vsel %vm2739, %v3616, %v3606
    %v3752 = vsel %vm2740, %v3616, %v3607
    %v3753 = vsel %vm2741, %v3616, %v3608
    %v3754 = vsel %vm2742, %v3616, %v3609
    %v3755 = vsel %vm2743, %v3616, %v3610
    %v3756 = vsel %vm2744, %v3616, %v3611
    %v3757 = vsel %vm2745, %v3616, %v3612
    %v3758 = vsel %vm2746, %v3616, %v3613
    %v3759 = vsel %vm2747, %v3616, %v3614
    %v3760 = vsel %vm2748, %v3616, %v3615
    %v3761 = vstv %s75
    %v3762 = vsel %vm2461, %v3761, %v3617
    %v3763 = vsel %vm2462, %v3761, %v3618
    %v3764 = vsel %vm2463, %v3761, %v3619
    %v3765 = vsel %vm2464, %v3761, %v3620
    %v3766 = vsel %vm2465, %v3761, %v3621
    %v3767 = vsel %vm2466, %v3761, %v3622
    %v3768 = vsel %vm2467, %v3761, %v3623
    %v3769 = vsel %vm2468, %v3761, %v3624
    %v3770 = vsel %vm2469, %v3761, %v3625
    %v3771 = vsel %vm2470, %v3761, %v3626
    %v3772 = vsel %vm2471, %v3761, %v3627
    %v3773 = vsel %vm2472, %v3761, %v3628
    %v3774 = vsel %vm2473, %v3761, %v3629
    %v3775 = vsel %vm2474, %v3761, %v3630
    %v3776 = vsel %vm2475, %v3761, %v3631
    %v3777 = vsel %vm2476, %v3761, %v3632
    %v3778 = vsel %vm2477, %v3761, %v3633
    %v3779 = vsel %vm2478, %v3761, %v3634
    %v3780 = vsel %vm2479, %v3761, %v3635
    %v3781 = vsel %vm2480, %v3761, %v3636
    %v3782 = vsel %vm2481, %v3761, %v3637
    %v3783 = vsel %vm2482, %v3761, %v3638
    %v3784 = vsel %vm2483, %v3761, %v3639
    %v3785 = vsel %vm2484, %v3761, %v3640
    %v3786 = vsel %vm2485, %v3761, %v3641
    %v3787 = vsel %vm2486, %v3761, %v3642
    %v3788 = vsel %vm2487, %v3761, %v3643
    %v3789 = vsel %vm2488, %v3761, %v3644
    %v3790 = vsel %vm2489, %v3761, %v3645
    %v3791 = vsel %vm2490, %v3761, %v3646
    %v3792 = vsel %vm2491, %v3761, %v3647
    %v3793 = vsel %vm2492, %v3761, %v3648
    %v3794 = vsel %vm2493, %v3761, %v3649
    %v3795 = vsel %vm2494, %v3761, %v3650
    %v3796 = vsel %vm2495, %v3761, %v3651
    %v3797 = vsel %vm2496, %v3761, %v3652
    %v3798 = vsel %vm2497, %v3761, %v3653
    %v3799 = vsel %vm2498, %v3761, %v3654
    %v3800 = vsel %vm2499, %v3761, %v3655
    %v3801 = vsel %vm2500, %v3761, %v3656
    %v3802 = vsel %vm2501, %v3761, %v3657
    %v3803 = vsel %vm2502, %v3761, %v3658
    %v3804 = vsel %vm2503, %v3761, %v3659
    %v3805 = vsel %vm2504, %v3761, %v3660
    %v3806 = vsel %vm2505, %v3761, %v3661
    %v3807 = vsel %vm2506, %v3761, %v3662
    %v3808 = vsel %vm2507, %v3761, %v3663
    %v3809 = vsel %vm2508, %v3761, %v3664
    %v3810 = vsel %vm2509, %v3761, %v3665
    %v3811 = vsel %vm2510, %v3761, %v3666
    %v3812 = vsel %vm2511, %v3761, %v3667
    %v3813 = vsel %vm2512, %v3761, %v3668
    %v3814 = vsel %vm2513, %v3761, %v3669
    %v3815 = vsel %vm2514, %v3761, %v3670
    %v3816 = vsel %vm2515, %v3761, %v3671
    %v3817 = vsel %vm2516, %v3761, %v3672
    %v3818 = vsel %vm2517, %v3761, %v3673
    %v3819 = vsel %vm2518, %v3761, %v3674
    %v3820 = vsel %vm2519, %v3761, %v3675
    %v3821 = vsel %vm2520, %v3761, %v3676
    %v3822 = vsel %vm2521, %v3761, %v3677
    %v3823 = vsel %vm2522, %v3761, %v3678
    %v3824 = vsel %vm2523, %v3761, %v3679
    %v3825 = vsel %vm2524, %v3761, %v3680
    %v3826 = vsel %vm2525, %v3761, %v3681
    %v3827 = vsel %vm2526, %v3761, %v3682
    %v3828 = vsel %vm2527, %v3761, %v3683
    %v3829 = vsel %vm2528, %v3761, %v3684
    %v3830 = vsel %vm2529, %v3761, %v3685
    %v3831 = vsel %vm2530, %v3761, %v3686
    %v3832 = vsel %vm2531, %v3761, %v3687
    %v3833 = vsel %vm2532, %v3761, %v3688
    %v3834 = vsel %vm2533, %v3761, %v3689
    %v3835 = vsel %vm2534, %v3761, %v3690
    %v3836 = vsel %vm2535, %v3761, %v3691
    %v3837 = vsel %vm2536, %v3761, %v3692
    %v3838 = vsel %vm2537, %v3761, %v3693
    %v3839 = vsel %vm2538, %v3761, %v3694
    %v3840 = vsel %vm2539, %v3761, %v3695
    %v3841 = vsel %vm2540, %v3761, %v3696
    %v3842 = vsel %vm2541, %v3761, %v3697
    %v3843 = vsel %vm2542, %v3761, %v3698
    %v3844 = vsel %vm2543, %v3761, %v3699
    %v3845 = vsel %vm2544, %v3761, %v3700
    %v3846 = vsel %vm2545, %v3761, %v3701
    %v3847 = vsel %vm2546, %v3761, %v3702
    %v3848 = vsel %vm2547, %v3761, %v3703
    %v3849 = vsel %vm2548, %v3761, %v3704
    %v3850 = vsel %vm2549, %v3761, %v3705
    %v3851 = vsel %vm2550, %v3761, %v3706
    %v3852 = vsel %vm2551, %v3761, %v3707
    %v3853 = vsel %vm2552, %v3761, %v3708
    %v3854 = vsel %vm2553, %v3761, %v3709
    %v3855 = vsel %vm2554, %v3761, %v3710
    %v3856 = vsel %vm2555, %v3761, %v3711
    %v3857 = vsel %vm2556, %v3761, %v3712
    %v3858 = vsel %vm2557, %v3761, %v3713
    %v3859 = vsel %vm2558, %v3761, %v3714
    %v3860 = vsel %vm2559, %v3761, %v3715
    %v3861 = vsel %vm2560, %v3761, %v3716
    %v3862 = vsel %vm2561, %v3761, %v3717
    %v3863 = vsel %vm2562, %v3761, %v3718
    %v3864 = vsel %vm2563, %v3761, %v3719
    %v3865 = vsel %vm2564, %v3761, %v3720
    %v3866 = vsel %vm2565, %v3761, %v3721
    %v3867 = vsel %vm2566, %v3761, %v3722
    %v3868 = vsel %vm2567, %v3761, %v3723
    %v3869 = vsel %vm2568, %v3761, %v3724
    %v3870 = vsel %vm2569, %v3761, %v3725
    %v3871 = vsel %vm2570, %v3761, %v3726
    %v3872 = vsel %vm2571, %v3761, %v3727
    %v3873 = vsel %vm2572, %v3761, %v3728
    %v3874 = vsel %vm2573, %v3761, %v3729
    %v3875 = vsel %vm2574, %v3761, %v3730
    %v3876 = vsel %vm2575, %v3761, %v3731
    %v3877 = vsel %vm2576, %v3761, %v3732
    %v3878 = vsel %vm2577, %v3761, %v3733
    %v3879 = vsel %vm2578, %v3761, %v3734
    %v3880 = vsel %vm2579, %v3761, %v3735
    %v3881 = vsel %vm2580, %v3761, %v3736
    %v3882 = vsel %vm2581, %v3761, %v3737
    %v3883 = vsel %vm2582, %v3761, %v3738
    %v3884 = vsel %vm2583, %v3761, %v3739
    %v3885 = vsel %vm2584, %v3761, %v3740
    %v3886 = vsel %vm2585, %v3761, %v3741
    %v3887 = vsel %vm2586, %v3761, %v3742
    %v3888 = vsel %vm2587, %v3761, %v3743
    %v3889 = vsel %vm2588, %v3761, %v3744
    %v3890 = vsel %vm2589, %v3761, %v3745
    %v3891 = vsel %vm2590, %v3761, %v3746
    %v3892 = vsel %vm2591, %v3761, %v3747
    %v3893 = vsel %vm2592, %v3761, %v3748
    %v3894 = vsel %vm2593, %v3761, %v3749
    %v3895 = vsel %vm2594, %v3761, %v3750
    %v3896 = vsel %vm2595, %v3761, %v3751
    %v3897 = vsel %vm2596, %v3761, %v3752
    %v3898 = vsel %vm2597, %v3761, %v3753
    %v3899 = vsel %vm2598, %v3761, %v3754
    %v3900 = vsel %vm2599, %v3761, %v3755
    %v3901 = vsel %vm2600, %v3761, %v3756
    %v3902 = vsel %vm2601, %v3761, %v3757
    %v3903 = vsel %vm2602, %v3761, %v3758
    %v3904 = vsel %vm2603, %v3761, %v3759
    %v3905 = vsel %vm2604, %v3761, %v3760
    %v3906 = vmul.f32 %v2317, %v3762
    %v3907 = vmul.f32 %v2318, %v3763
    %v3908 = vmul.f32 %v2319, %v3764
    %v3909 = vmul.f32 %v2320, %v3765
    %v3910 = vmul.f32 %v2321, %v3766
    %v3911 = vmul.f32 %v2322, %v3767
    %v3912 = vmul.f32 %v2323, %v3768
    %v3913 = vmul.f32 %v2324, %v3769
    %v3914 = vmul.f32 %v2325, %v3770
    %v3915 = vmul.f32 %v2326, %v3771
    %v3916 = vmul.f32 %v2327, %v3772
    %v3917 = vmul.f32 %v2328, %v3773
    %v3918 = vmul.f32 %v2329, %v3774
    %v3919 = vmul.f32 %v2330, %v3775
    %v3920 = vmul.f32 %v2331, %v3776
    %v3921 = vmul.f32 %v2332, %v3777
    %v3922 = vmul.f32 %v2333, %v3778
    %v3923 = vmul.f32 %v2334, %v3779
    %v3924 = vmul.f32 %v2335, %v3780
    %v3925 = vmul.f32 %v2336, %v3781
    %v3926 = vmul.f32 %v2337, %v3782
    %v3927 = vmul.f32 %v2338, %v3783
    %v3928 = vmul.f32 %v2339, %v3784
    %v3929 = vmul.f32 %v2340, %v3785
    %v3930 = vmul.f32 %v2341, %v3786
    %v3931 = vmul.f32 %v2342, %v3787
    %v3932 = vmul.f32 %v2343, %v3788
    %v3933 = vmul.f32 %v2344, %v3789
    %v3934 = vmul.f32 %v2345, %v3790
    %v3935 = vmul.f32 %v2346, %v3791
    %v3936 = vmul.f32 %v2347, %v3792
    %v3937 = vmul.f32 %v2348, %v3793
    %v3938 = vmul.f32 %v2349, %v3794
    %v3939 = vmul.f32 %v2350, %v3795
    %v3940 = vmul.f32 %v2351, %v3796
    %v3941 = vmul.f32 %v2352, %v3797
    %v3942 = vmul.f32 %v2353, %v3798
    %v3943 = vmul.f32 %v2354, %v3799
    %v3944 = vmul.f32 %v2355, %v3800
    %v3945 = vmul.f32 %v2356, %v3801
    %v3946 = vmul.f32 %v2357, %v3802
    %v3947 = vmul.f32 %v2358, %v3803
    %v3948 = vmul.f32 %v2359, %v3804
    %v3949 = vmul.f32 %v2360, %v3805
    %v3950 = vmul.f32 %v2361, %v3806
    %v3951 = vmul.f32 %v2362, %v3807
    %v3952 = vmul.f32 %v2363, %v3808
    %v3953 = vmul.f32 %v2364, %v3809
    %v3954 = vmul.f32 %v2365, %v3810
    %v3955 = vmul.f32 %v2366, %v3811
    %v3956 = vmul.f32 %v2367, %v3812
    %v3957 = vmul.f32 %v2368, %v3813
    %v3958 = vmul.f32 %v2369, %v3814
    %v3959 = vmul.f32 %v2370, %v3815
    %v3960 = vmul.f32 %v2371, %v3816
    %v3961 = vmul.f32 %v2372, %v3817
    %v3962 = vmul.f32 %v2373, %v3818
    %v3963 = vmul.f32 %v2374, %v3819
    %v3964 = vmul.f32 %v2375, %v3820
    %v3965 = vmul.f32 %v2376, %v3821
    %v3966 = vmul.f32 %v2377, %v3822
    %v3967 = vmul.f32 %v2378, %v3823
    %v3968 = vmul.f32 %v2379, %v3824
    %v3969 = vmul.f32 %v2380, %v3825
    %v3970 = vmul.f32 %v2381, %v3826
    %v3971 = vmul.f32 %v2382, %v3827
    %v3972 = vmul.f32 %v2383, %v3828
    %v3973 = vmul.f32 %v2384, %v3829
    %v3974 = vmul.f32 %v2385, %v3830
    %v3975 = vmul.f32 %v2386, %v3831
    %v3976 = vmul.f32 %v2387, %v3832
    %v3977 = vmul.f32 %v2388, %v3833
    %v3978 = vmul.f32 %v2389, %v3834
    %v3979 = vmul.f32 %v2390, %v3835
    %v3980 = vmul.f32 %v2391, %v3836
    %v3981 = vmul.f32 %v2392, %v3837
    %v3982 = vmul.f32 %v2393, %v3838
    %v3983 = vmul.f32 %v2394, %v3839
    %v3984 = vmul.f32 %v2395, %v3840
    %v3985 = vmul.f32 %v2396, %v3841
    %v3986 = vmul.f32 %v2397, %v3842
    %v3987 = vmul.f32 %v2398, %v3843
    %v3988 = vmul.f32 %v2399, %v3844
    %v3989 = vmul.f32 %v2400, %v3845
    %v3990 = vmul.f32 %v2401, %v3846
    %v3991 = vmul.f32 %v2402, %v3847
    %v3992 = vmul.f32 %v2403, %v3848
    %v3993 = vmul.f32 %v2404, %v3849
    %v3994 = vmul.f32 %v2405, %v3850
    %v3995 = vmul.f32 %v2406, %v3851
    %v3996 = vmul.f32 %v2407, %v3852
    %v3997 = vmul.f32 %v2408, %v3853
    %v3998 = vmul.f32 %v2409, %v3854
    %v3999 = vmul.f32 %v2410, %v3855
    %v4000 = vmul.f32 %v2411, %v3856
    %v4001 = vmul.f32 %v2412, %v3857
    %v4002 = vmul.f32 %v2413, %v3858
    %v4003 = vmul.f32 %v2414, %v3859
    %v4004 = vmul.f32 %v2415, %v3860
    %v4005 = vmul.f32 %v2416, %v3861
    %v4006 = vmul.f32 %v2417, %v3862
    %v4007 = vmul.f32 %v2418, %v3863
    %v4008 = vmul.f32 %v2419, %v3864
    %v4009 = vmul.f32 %v2420, %v3865
    %v4010 = vmul.f32 %v2421, %v3866
    %v4011 = vmul.f32 %v2422, %v3867
    %v4012 = vmul.f32 %v2423, %v3868
    %v4013 = vmul.f32 %v2424, %v3869
    %v4014 = vmul.f32 %v2425, %v3870
    %v4015 = vmul.f32 %v2426, %v3871
    %v4016 = vmul.f32 %v2427, %v3872
    %v4017 = vmul.f32 %v2428, %v3873
    %v4018 = vmul.f32 %v2429, %v3874
    %v4019 = vmul.f32 %v2430, %v3875
    %v4020 = vmul.f32 %v2431, %v3876
    %v4021 = vmul.f32 %v2432, %v3877
    %v4022 = vmul.f32 %v2433, %v3878
    %v4023 = vmul.f32 %v2434, %v3879
    %v4024 = vmul.f32 %v2435, %v3880
    %v4025 = vmul.f32 %v2436, %v3881
    %v4026 = vmul.f32 %v2437, %v3882
    %v4027 = vmul.f32 %v2438, %v3883
    %v4028 = vmul.f32 %v2439, %v3884
    %v4029 = vmul.f32 %v2440, %v3885
    %v4030 = vmul.f32 %v2441, %v3886
    %v4031 = vmul.f32 %v2442, %v3887
    %v4032 = vmul.f32 %v2443, %v3888
    %v4033 = vmul.f32 %v2444, %v3889
    %v4034 = vmul.f32 %v2445, %v3890
    %v4035 = vmul.f32 %v2446, %v3891
    %v4036 = vmul.f32 %v2447, %v3892
    %v4037 = vmul.f32 %v2448, %v3893
    %v4038 = vmul.f32 %v2449, %v3894
    %v4039 = vmul.f32 %v2450, %v3895
    %v4040 = vmul.f32 %v2451, %v3896
    %v4041 = vmul.f32 %v2452, %v3897
    %v4042 = vmul.f32 %v2453, %v3898
    %v4043 = vmul.f32 %v2454, %v3899
    %v4044 = vmul.f32 %v2455, %v3900
    %v4045 = vmul.f32 %v2456, %v3901
    %v4046 = vmul.f32 %v2457, %v3902
    %v4047 = vmul.f32 %v2458, %v3903
    %v4048 = vmul.f32 %v2459, %v3904
    %v4049 = vmul.f32 %v2460, %v3905
    %4050 = vst [vmem:[#allocation10] sm:$0xff] %v3906
    %4051 = vst [vmem:[#allocation10 + $0x8] sm:$0xff] %v3907
    %4052 = vst [vmem:[#allocation10 + $0x10] sm:$0xff] %v3908
    %4053 = vst [vmem:[#allocation10 + $0x18] sm:$0xff] %v3909
    %4054 = vst [vmem:[#allocation10 + $0x20] sm:$0xff] %v3910
    %4055 = vst [vmem:[#allocation10 + $0x28] sm:$0xff] %v3911
    %4056 = vst [vmem:[#allocation10 + $0x30] sm:$0xff] %v3912
    %4057 = vst [vmem:[#allocation10 + $0x38] sm:$0xff] %v3913
    %4058 = vst [vmem:[#allocation10 + $0x40] sm:$0xff] %v3914
    %4059 = vst [vmem:[#allocation10 + $0x48] sm:$0xff] %v3915
    %4060 = vst [vmem:[#allocation10 + $0x50] sm:$0xff] %v3916
    %4061 = vst [vmem:[#allocation10 + $0x58] sm:$0xff] %v3917
    %4062 = vst [vmem:[#allocation10 + $0x60] sm:$0xff] %v3918
    %4063 = vst [vmem:[#allocation10 + $0x68] sm:$0xff] %v3919
    %4064 = vst [vmem:[#allocation10 + $0x70] sm:$0xff] %v3920
    %4065 = vst [vmem:[#allocation10 + $0x78] sm:$0xff] %v3921
    %4066 = vst [vmem:[#allocation10 + $0x80] sm:$0xff] %v3922
    %4067 = vst [vmem:[#allocation10 + $0x88] sm:$0xff] %v3923
    %4068 = vst [vmem:[#allocation10 + $0x90] sm:$0xff] %v3924
    %4069 = vst [vmem:[#allocation10 + $0x98] sm:$0xff] %v3925
    %4070 = vst [vmem:[#allocation10 + $0xa0] sm:$0xff] %v3926
    %4071 = vst [vmem:[#allocation10 + $0xa8] sm:$0xff] %v3927
    %4072 = vst [vmem:[#allocation10 + $0xb0] sm:$0xff] %v3928
    %4073 = vst [vmem:[#allocation10 + $0xb8] sm:$0xff] %v3929
    %4074 = vst [vmem:[#allocation10 + $0xc0] sm:$0xff] %v3930
    %4075 = vst [vmem:[#allocation10 + $0xc8] sm:$0xff] %v3931
    %4076 = vst [vmem:[#allocation10 + $0xd0] sm:$0xff] %v3932
    %4077 = vst [vmem:[#allocation10 + $0xd8] sm:$0xff] %v3933
    %4078 = vst [vmem:[#allocation10 + $0xe0] sm:$0xff] %v3934
    %4079 = vst [vmem:[#allocation10 + $0xe8] sm:$0xff] %v3935
    %4080 = vst [vmem:[#allocation10 + $0xf0] sm:$0xff] %v3936
    %4081 = vst [vmem:[#allocation10 + $0xf8] sm:$0xff] %v3937
    %4082 = vst [vmem:[#allocation10 + $0x100] sm:$0xff] %v3938
    %4083 = vst [vmem:[#allocation10 + $0x108] sm:$0xff] %v3939
    %4084 = vst [vmem:[#allocation10 + $0x110] sm:$0xff] %v3940
    %4085 = vst [vmem:[#allocation10 + $0x118] sm:$0xff] %v3941
    %4086 = vst [vmem:[#allocation10 + $0x120] sm:$0xff] %v3942
    %4087 = vst [vmem:[#allocation10 + $0x128] sm:$0xff] %v3943
    %4088 = vst [vmem:[#allocation10 + $0x130] sm:$0xff] %v3944
    %4089 = vst [vmem:[#allocation10 + $0x138] sm:$0xff] %v3945
    %4090 = vst [vmem:[#allocation10 + $0x140] sm:$0xff] %v3946
    %4091 = vst [vmem:[#allocation10 + $0x148] sm:$0xff] %v3947
    %4092 = vst [vmem:[#allocation10 + $0x150] sm:$0xff] %v3948
    %4093 = vst [vmem:[#allocation10 + $0x158] sm:$0xff] %v3949
    %4094 = vst [vmem:[#allocation10 + $0x160] sm:$0xff] %v3950
    %4095 = vst [vmem:[#allocation10 + $0x168] sm:$0xff] %v3951
    %4096 = vst [vmem:[#allocation10 + $0x170] sm:$0xff] %v3952
    %4097 = vst [vmem:[#allocation10 + $0x178] sm:$0xff] %v3953
    %4098 = vst [vmem:[#allocation10 + $0x180] sm:$0xff] %v3954
    %4099 = vst [vmem:[#allocation10 + $0x188] sm:$0xff] %v3955
    %4100 = vst [vmem:[#allocation10 + $0x190] sm:$0xff] %v3956
    %4101 = vst [vmem:[#allocation10 + $0x198] sm:$0xff] %v3957
    %4102 = vst [vmem:[#allocation10 + $0x1a0] sm:$0xff] %v3958
    %4103 = vst [vmem:[#allocation10 + $0x1a8] sm:$0xff] %v3959
    %4104 = vst [vmem:[#allocation10 + $0x1b0] sm:$0xff] %v3960
    %4105 = vst [vmem:[#allocation10 + $0x1b8] sm:$0xff] %v3961
    %4106 = vst [vmem:[#allocation10 + $0x1c0] sm:$0xff] %v3962
    %4107 = vst [vmem:[#allocation10 + $0x1c8] sm:$0xff] %v3963
    %4108 = vst [vmem:[#allocation10 + $0x1d0] sm:$0xff] %v3964
    %4109 = vst [vmem:[#allocation10 + $0x1d8] sm:$0xff] %v3965
    %4110 = vst [vmem:[#allocation10 + $0x1e0] sm:$0xff] %v3966
    %4111 = vst [vmem:[#allocation10 + $0x1e8] sm:$0xff] %v3967
    %4112 = vst [vmem:[#allocation10 + $0x1f0] sm:$0xff] %v3968
    %4113 = vst [vmem:[#allocation10 + $0x1f8] sm:$0xff] %v3969
    %4114 = vst [vmem:[#allocation10 + $0x200] sm:$0xff] %v3970
    %4115 = vst [vmem:[#allocation10 + $0x208] sm:$0xff] %v3971
    %4116 = vst [vmem:[#allocation10 + $0x210] sm:$0xff] %v3972
    %4117 = vst [vmem:[#allocation10 + $0x218] sm:$0xff] %v3973
    %4118 = vst [vmem:[#allocation10 + $0x220] sm:$0xff] %v3974
    %4119 = vst [vmem:[#allocation10 + $0x228] sm:$0xff] %v3975
    %4120 = vst [vmem:[#allocation10 + $0x230] sm:$0xff] %v3976
    %4121 = vst [vmem:[#allocation10 + $0x238] sm:$0xff] %v3977
    %4122 = vst [vmem:[#allocation10 + $0x240] sm:$0xff] %v3978
    %4123 = vst [vmem:[#allocation10 + $0x248] sm:$0xff] %v3979
    %4124 = vst [vmem:[#allocation10 + $0x250] sm:$0xff] %v3980
    %4125 = vst [vmem:[#allocation10 + $0x258] sm:$0xff] %v3981
    %4126 = vst [vmem:[#allocation10 + $0x260] sm:$0xff] %v3982
    %4127 = vst [vmem:[#allocation10 + $0x268] sm:$0xff] %v3983
    %4128 = vst [vmem:[#allocation10 + $0x270] sm:$0xff] %v3984
    %4129 = vst [vmem:[#allocation10 + $0x278] sm:$0xff] %v3985
    %4130 = vst [vmem:[#allocation10 + $0x280] sm:$0xff] %v3986
    %4131 = vst [vmem:[#allocation10 + $0x288] sm:$0xff] %v3987
    %4132 = vst [vmem:[#allocation10 + $0x290] sm:$0xff] %v3988
    %4133 = vst [vmem:[#allocation10 + $0x298] sm:$0xff] %v3989
    %4134 = vst [vmem:[#allocation10 + $0x2a0] sm:$0xff] %v3990
    %4135 = vst [vmem:[#allocation10 + $0x2a8] sm:$0xff] %v3991
    %4136 = vst [vmem:[#allocation10 + $0x2b0] sm:$0xff] %v3992
    %4137 = vst [vmem:[#allocation10 + $0x2b8] sm:$0xff] %v3993
    %4138 = vst [vmem:[#allocation10 + $0x2c0] sm:$0xff] %v3994
    %4139 = vst [vmem:[#allocation10 + $0x2c8] sm:$0xff] %v3995
    %4140 = vst [vmem:[#allocation10 + $0x2d0] sm:$0xff] %v3996
    %4141 = vst [vmem:[#allocation10 + $0x2d8] sm:$0xff] %v3997
    %4142 = vst [vmem:[#allocation10 + $0x2e0] sm:$0xff] %v3998
    %4143 = vst [vmem:[#allocation10 + $0x2e8] sm:$0xff] %v3999
    %4144 = vst [vmem:[#allocation10 + $0x2f0] sm:$0xff] %v4000
    %4145 = vst [vmem:[#allocation10 + $0x2f8] sm:$0xff] %v4001
    %4146 = vst [vmem:[#allocation10 + $0x300] sm:$0xff] %v4002
    %4147 = vst [vmem:[#allocation10 + $0x308] sm:$0xff] %v4003
    %4148 = vst [vmem:[#allocation10 + $0x310] sm:$0xff] %v4004
    %4149 = vst [vmem:[#allocation10 + $0x318] sm:$0xff] %v4005
    %4150 = vst [vmem:[#allocation10 + $0x320] sm:$0xff] %v4006
    %4151 = vst [vmem:[#allocation10 + $0x328] sm:$0xff] %v4007
    %4152 = vst [vmem:[#allocation10 + $0x330] sm:$0xff] %v4008
    %4153 = vst [vmem:[#allocation10 + $0x338] sm:$0xff] %v4009
    %4154 = vst [vmem:[#allocation10 + $0x340] sm:$0xff] %v4010
    %4155 = vst [vmem:[#allocation10 + $0x348] sm:$0xff] %v4011
    %4156 = vst [vmem:[#allocation10 + $0x350] sm:$0xff] %v4012
    %4157 = vst [vmem:[#allocation10 + $0x358] sm:$0xff] %v4013
    %4158 = vst [vmem:[#allocation10 + $0x360] sm:$0xff] %v4014
    %4159 = vst [vmem:[#allocation10 + $0x368] sm:$0xff] %v4015
    %4160 = vst [vmem:[#allocation10 + $0x370] sm:$0xff] %v4016
    %4161 = vst [vmem:[#allocation10 + $0x378] sm:$0xff] %v4017
    %4162 = vst [vmem:[#allocation10 + $0x380] sm:$0xff] %v4018
    %4163 = vst [vmem:[#allocation10 + $0x388] sm:$0xff] %v4019
    %4164 = vst [vmem:[#allocation10 + $0x390] sm:$0xff] %v4020
    %4165 = vst [vmem:[#allocation10 + $0x398] sm:$0xff] %v4021
    %4166 = vst [vmem:[#allocation10 + $0x3a0] sm:$0xff] %v4022
    %4167 = vst [vmem:[#allocation10 + $0x3a8] sm:$0xff] %v4023
    %4168 = vst [vmem:[#allocation10 + $0x3b0] sm:$0xff] %v4024
    %4169 = vst [vmem:[#allocation10 + $0x3b8] sm:$0xff] %v4025
    %4170 = vst [vmem:[#allocation10 + $0x3c0] sm:$0xff] %v4026
    %4171 = vst [vmem:[#allocation10 + $0x3c8] sm:$0xff] %v4027
    %4172 = vst [vmem:[#allocation10 + $0x3d0] sm:$0xff] %v4028
    %4173 = vst [vmem:[#allocation10 + $0x3d8] sm:$0xff] %v4029
    %4174 = vst [vmem:[#allocation10 + $0x3e0] sm:$0xff] %v4030
    %4175 = vst [vmem:[#allocation10 + $0x3e8] sm:$0xff] %v4031
    %4176 = vst [vmem:[#allocation10 + $0x3f0] sm:$0xff] %v4032
    %4177 = vst [vmem:[#allocation10 + $0x3f8] sm:$0xff] %v4033
    %4178 = vst [vmem:[#allocation10 + $0x400] sm:$0xff] %v4034
    %4179 = vst [vmem:[#allocation10 + $0x408] sm:$0xff] %v4035
    %4180 = vst [vmem:[#allocation10 + $0x410] sm:$0xff] %v4036
    %4181 = vst [vmem:[#allocation10 + $0x418] sm:$0xff] %v4037
    %4182 = vst [vmem:[#allocation10 + $0x420] sm:$0xff] %v4038
    %4183 = vst [vmem:[#allocation10 + $0x428] sm:$0xff] %v4039
    %4184 = vst [vmem:[#allocation10 + $0x430] sm:$0xff] %v4040
    %4185 = vst [vmem:[#allocation10 + $0x438] sm:$0xff] %v4041
    %4186 = vst [vmem:[#allocation10 + $0x440] sm:$0xff] %v4042
    %4187 = vst [vmem:[#allocation10 + $0x448] sm:$0xff] %v4043
    %4188 = vst [vmem:[#allocation10 + $0x450] sm:$0xff] %v4044
    %4189 = vst [vmem:[#allocation10 + $0x458] sm:$0xff] %v4045
    %4190 = vst [vmem:[#allocation10 + $0x460] sm:$0xff] %v4046
    %4191 = vst [vmem:[#allocation10 + $0x468] sm:$0xff] %v4047
    %4192 = vst [vmem:[#allocation10 + $0x470] sm:$0xff] %v4048
    %4193 = vst [vmem:[#allocation10 + $0x478] sm:$0xff] %v4049
    // Predicated region
    $region34: #{tpu_custom_call.1} parent=1 // pred_check
      _
    $region35: #{tpu_custom_call.1} parent=1 // pred_check_branch
      %4195 = sbr.rel (0) target = $region37
    $region36: #{tpu_custom_call.1} parent=1 // pred_region
      %s4197 = ssub.s32 18432, 17408
      %4198 = vsyncadd [#allocation4], %s4197
      %s4199 = sshll.u32 [#allocation10], 4
      %s4200 = int_to_ptr.vmem [resolvable:$true] %s4199
      %4205 = dma.vmem_to_hbm [thread:$0]  %s4200, 17408, %s4, [#allocation4], 512, 512, 32
    $region37: #{tpu_custom_call.1} parent=1 // pred_fallthru
      _
    // Predicated region
    $region38: #{tpu_custom_call.1} parent=1 // pred_check
      _
    $region39: #{tpu_custom_call.1} parent=1 // pred_check_branch
      %4207 = sbr.rel (0) target = $region41
    $region40: #{tpu_custom_call.1} parent=1 // pred_region
      %4208 = dma.done [#allocation4], 18432
    $region41: #{tpu_custom_call.1} parent=1 // pred_fallthru
      _
    %4209 = vsyncpa [#allocation3], 1
    %4210 = vsyncpa [#allocation8], 1
    %4211 = vsyncpa [#allocation4], 1
    %4212 = vsyncpa [#allocation5], 1

</llo_original>
